<compile_context>
chip_gen: v6e
topology: v6e:2x2x1
jax: 0.10.0
libtpu: 0.0.40
codegen_flags: <defaults>
</compile_context>

<pallas_src>
import numpy as np
import jax
import jax.numpy as jnp
from jax import lax
from jax.experimental import pallas as pl
from jax.experimental.pallas import tpu as pltpu

EPS = 1e-6  # LayerNorm2d eps


def _shift_w(x, dx):
    """y[..., w] = x[..., w + dx], zero where w + dx falls outside [0, W)."""
    if dx == 0:
        return x
    W = x.shape[-1]
    zero_col = jnp.zeros(x.shape[:-1] + (1,), x.dtype)
    if dx == 1:
        return jnp.concatenate([x[..., 1:], zero_col], axis=-1)
    if dx == -1:
        return jnp.concatenate([zero_col, x[..., :W - 1]], axis=-1)
    raise ValueError(dx)


def _nafblock_kernel(xt_ref, xm_ref, xb_ref,          # 2-row top halo, main, 2-row bottom halo
                     lnw_ref, lnb_ref,                # LayerNorm2d affine       (C, 1)
                     w1_ref, b1_ref,                  # conv1 1x1 c->2c          (C, 2C, 1), (2C, 1)
                     wdw_ref, bdw_ref,                # conv2 depthwise 3x3      (9, 2C, 1), (2C, 1)
                     w4_ref, b4_ref,                  # conv4 3x3 groups=4       (4, 9, Cg, Cg, 1), (C, 1)
                     w3_ref, b3_ref,                  # conv3 1x1 c->c           (C, C, 1), (C, 1)
                     gamma_ref,                       # residual scale           (C, 1)
                     o_ref):
    _, TH, C, W = o_ref.shape
    C2 = 2 * C
    Cg = C // 4
    R = TH + 4
    i = pl.program_id(1)
    Htot = pl.num_programs(1) * TH                    # full image height (static)

    # Main rows are reused directly for the residual (no dependence on the
    # concatenated buffer for the store path).
    xm = xm_ref[0].astype(jnp.float32)                                  # (TH, C, W)
    xin = jnp.concatenate(
        [xt_ref[0].astype(jnp.float32), xm, xb_ref[0].astype(jnp.float32)],
        axis=0)                                                          # (R, C, W)

    # ---- LayerNorm2d: normalize over channels (sublane axis), per pixel ----
    inv_c = 1.0 / C
    s = xin[:, 0:1, :]
    for c in range(1, C):
        s = s + xin[:, c:c + 1, :]
    mu = s * inv_c
    xc = xin - mu
    s2 = xc[:, 0:1, :] * xc[:, 0:1, :]
    for c in range(1, C):
        s2 = s2 + xc[:, c:c + 1, :] * xc[:, c:c + 1, :]
    var = s2 * inv_c
    y = xc * lax.rsqrt(var + EPS)
    y = y * lnw_ref[...] + lnb_ref[...]                                  # (C,1) broadcasts

    # ---- conv1 (1x1, c -> 2c): broadcast-FMA over input channels ----
    h = jnp.zeros((R, C2, W), jnp.float32) + b1_ref[...]
    for c in range(C):
        h = h + w1_ref[c] * y[:, c:c + 1, :]                             # (2C,1)*(R,1,W)

    # Halo rows outside the image must be exact zeros before conv2 (it
    # zero-pads its *input*, i.e. conv1(LN(x)), not conv1(LN(clamped row))).
    # NOTE: interior tiles could skip this select via lax.cond on the tile id;
    # it is a single cheap VPU pass so it is kept unconditional.
    row = lax.broadcasted_iota(jnp.int32, (R, 1, 1), 0) + (i * TH - 2)
    row_ok = (row >= 0) & (row < Htot)
    h = jnp.where(row_ok, h, 0.0)

    # ---- conv2 (3x3 depthwise, pad=1) over all 2c channels ----
    # Row taps: free leading-axis slices.  Column taps: zero-filled W shifts
    # (no (W+2)-padded slab buffers).
    d = jnp.zeros((TH + 2, C2, W), jnp.float32)
    for dx in (-1, 0, 1):
        hs = _shift_w(h, dx)
        for ky in range(3):
            k = ky * 3 + (dx + 1)
            d = d + wdw_ref[k] * hs[ky:ky + TH + 2]
    d = d + bdw_ref[...]

    # ---- SimpleGate ----
    g = d[:, :C, :] * d[:, C:, :]                                        # (TH+2, C, W)
    # conv4 zero-pads g itself: zero the rows outside the image again
    # (reuse the row mask computed above).
    g = jnp.where(row_ok[1:TH + 3], g, 0.0)

    # ---- conv4 (3x3, groups=4, pad=1): per-group FMA accumulation ----
    acc = [jnp.zeros((TH, Cg, W), jnp.float32) for _ in range(4)]
    for dx in (-1, 0, 1):
        gs = _shift_w(g, dx)
        for ky in range(3):
            k = ky * 3 + (dx + 1)
            grows = gs[ky:ky + TH]                                       # (TH, C, W)
            for gi in range(4):
                for j in range(Cg):
                    cin = gi * Cg + j
                    acc[gi] = acc[gi] + w4_ref[gi, k, j] * grows[:, cin:cin + 1, :]
    x4 = jnp.concatenate(acc, axis=1) + b4_ref[...]                      # (TH, C, W)

    # ---- conv3 (1x1, c -> c) ----
    x3 = jnp.zeros((TH, C, W), jnp.float32) + b3_ref[...]
    for c in range(C):
        x3 = x3 + w3_ref[c] * x4[:, c:c + 1, :]

    # ---- residual: inp + x * gamma ----
    out = xm + x3 * gamma_ref[...]
    o_ref[0] = out.astype(o_ref.dtype)


def _vmem_limit_bytes():
    """Generation-aware scoped-VMEM limit (v7x: 64 MiB/TC, v5e/v6e: 128 MiB)."""
    cap = 64 * 1024 * 1024
    try:
        info = pltpu.get_tpu_info()
        cap = int(getattr(info, "vmem_capacity_bytes", cap) or cap)
    except Exception:
        pass
    return min(cap * 3 // 4, 96 * 1024 * 1024)


def _pick_tile_h(N, H, W, C, tile_budget_bytes):
    """Largest even divisor of H whose working set fits the VMEM budget, while
    keeping >= 2 grid steps so both v7x TensorCores get work."""
    pad8 = lambda v: ((v + 7) // 8) * 8
    pad128 = lambda v: ((v + 127) // 128) * 128
    # ~6 live 2C-wide tensors + ~6 live C-wide tensors per row (f32, padded).
    bytes_per_row = (6 * pad8(2 * C) + 6 * pad8(C)) * pad128(W) * 4
    cap = max(int(tile_budget_bytes // bytes_per_row) - 8, 2)
    divs = [d for d in range(2, H + 1, 2) if H % d == 0]
    if not divs:
        raise ValueError("H must have an even divisor >= 2")
    fitting = [d for d in divs if d <= cap]
    th = max(fitting) if fitting else divs[0]
    while N * (H // th) < 2:
        smaller = [d for d in divs if d < th]
        if not smaller:
            break
        th = max(smaller)
    return th


def nafblock_mid_pallas(x, packed_params, tile_h=None):
    """x: (N, H, C, W) float32 — width on lanes, channels on sublanes."""
    N, H, C, W = x.shape
    assert C % 4 == 0, "conv4 uses groups=4"
    vmem_limit = _vmem_limit_bytes()
    if tile_h is None:
        tile_h = _pick_tile_h(N, H, W, C, tile_budget_bytes=vmem_limit // 2)
    assert H % tile_h == 0 and tile_h % 2 == 0, "tile_h must divide H and be even"
    n_tiles = H // tile_h
    hb = tile_h // 2            # halo block index unit (2 rows per block)
    last_hblk = H // 2 - 1

    def _const_spec(a):
        zeros = (0,) * a.ndim
        return pl.BlockSpec(a.shape, lambda n, i, _z=zeros: _z)

    in_specs = [
        # 2-row top halo; index clamped at the first tile (duplicated rows are
        # zeroed in-kernel) -> no wrapper-side padded copy of the input.
        pl.BlockSpec((1, 2, C, W),
                     lambda n, i: (n, jnp.maximum(i * hb - 1, 0), 0, 0)),
        # main TILE_H rows
        pl.BlockSpec((1, tile_h, C, W), lambda n, i: (n, i, 0, 0)),
        # 2-row bottom halo; index clamped at the last tile
        pl.BlockSpec((1, 2, C, W),
                     lambda n, i: (n, jnp.minimum((i + 1) * hb, last_hblk), 0, 0)),
    ] + [_const_spec(p) for p in packed_params]

    grid_spec = pltpu.PrefetchScalarGridSpec(
        num_scalar_prefetch=0,
        grid=(N, n_tiles),
        in_specs=in_specs,
        out_specs=pl.BlockSpec((1, tile_h, C, W), lambda n, i: (n, i, 0, 0)),
    )
    return pl.pallas_call(
        _nafblock_kernel,
        out_shape=jax.ShapeDtypeStruct((N, H, C, W), x.dtype),
        grid_spec=grid_spec,
        compiler_params=pltpu.CompilerParams(
            # batch and row-tile axes are independent -> megacore sharding.
            dimension_semantics=("parallel", "parallel"),
            vmem_limit_bytes=vmem_limit,
        ),
    )(x, x, x, *packed_params)


def make_params(key, C):
    """PyTorch-layout (OIHW) parameters."""
    assert C % 4 == 0
    ks = jax.random.split(key, 11)
    dw = 2 * C
    Cg = C // 4
    s = 0.1
    return dict(
        w1=jax.random.normal(ks[0], (dw, C, 1, 1), jnp.float32) * s,
        b1=jax.random.normal(ks[1], (dw,), jnp.float32) * s,
        wdw=jax.random.normal(ks[2], (dw, 1, 3, 3), jnp.float32) * s,
        bdw=jax.random.normal(ks[3], (dw,), jnp.float32) * s,
        w4=jax.random.normal(ks[4], (C, Cg, 3, 3), jnp.float32) * s,
        b4=jax.random.normal(ks[5], (C,), jnp.float32) * s,
        w3=jax.random.normal(ks[6], (C, C, 1, 1), jnp.float32) * s,
        b3=jax.random.normal(ks[7], (C,), jnp.float32) * s,
        lnw=1.0 + jax.random.normal(ks[8], (C,), jnp.float32) * s,
        lnb=jax.random.normal(ks[9], (C,), jnp.float32) * s,
        # torch initializes gamma to zeros (block == identity); use nonzero
        # values so the whole compute path is numerically exercised.
        gamma=jax.random.normal(ks[10], (C,), jnp.float32) * s,
    )


def pack_params(p, C):
    """Repack torch-layout weights into broadcast-friendly kernel shapes."""
    dw = 2 * C
    Cg = C // 4
    w1 = jnp.transpose(p["w1"][:, :, 0, 0], (1, 0))[:, :, None]            # (C, 2C, 1)
    b1 = p["b1"][:, None]
    wdw = jnp.transpose(p["wdw"][:, 0].reshape(dw, 9), (1, 0))[:, :, None]  # (9, 2C, 1)
    bdw = p["bdw"][:, None]
    # (C_out, C_in/g, 3, 3) -> (group, tap, in_in_group, out_in_group, 1)
    w4 = p["w4"].reshape(4, Cg, Cg, 3, 3)            # (gi, m, j, ky, kx)
    w4 = jnp.transpose(w4, (0, 3, 4, 2, 1)).reshape(4, 9, Cg, Cg)[..., None]
    b4 = p["b4"][:, None]
    w3 = jnp.transpose(p["w3"][:, :, 0, 0], (1, 0))[:, :, None]            # (C, C, 1)
    b3 = p["b3"][:, None]
    return (p["lnw"][:, None], p["lnb"][:, None],
            w1, b1, wdw, bdw, w4, b4, w3, b3, p["gamma"][:, None])


def ref_forward(x, p):
    """Plain-JAX NCHW reference mirroring the PyTorch forward."""
    C = x.shape[1]
    dn = ("NCHW", "OIHW", "NCHW")
    hp = lax.Precision.HIGHEST
    mu = x.mean(1, keepdims=True)
    var = ((x - mu) ** 2).mean(1, keepdims=True)
    y = (x - mu) / jnp.sqrt(var + EPS)
    y = y * p["lnw"].reshape(1, C, 1, 1) + p["lnb"].reshape(1, C, 1, 1)
    h = lax.conv_general_dilated(y, p["w1"], (1, 1), "SAME",
                                 dimension_numbers=dn, precision=hp)
    h = h + p["b1"].reshape(1, -1, 1, 1)
    h = lax.conv_general_dilated(h, p["wdw"], (1, 1), "SAME",
                                 dimension_numbers=dn,
                                 feature_group_count=2 * C, precision=hp)
    h = h + p["bdw"].reshape(1, -1, 1, 1)
    g = h[:, :C] * h[:, C:]
    x4 = lax.conv_general_dilated(g, p["w4"], (1, 1), "SAME",
                                  dimension_numbers=dn,
                                  feature_group_count=4, precision=hp)
    x4 = x4 + p["b4"].reshape(1, -1, 1, 1)
    x3 = lax.conv_general_dilated(x4, p["w3"], (1, 1), "SAME",
                                  dimension_numbers=dn, precision=hp)
    x3 = x3 + p["b3"].reshape(1, -1, 1, 1)
    return x + x3 * p["gamma"].reshape(1, C, 1, 1)


if __name__ == "__main__":
    key = jax.random.PRNGKey(0)
    kx, kp = jax.random.split(key)
    N, C, H, W = 2, 4, 16, 16                       # NCHW, as in the torch module
    x_nchw = jax.random.normal(kx, (N, C, H, W), jnp.float32)
    params = make_params(kp, C)
    packed = pack_params(params, C)
    ref = ref_forward(x_nchw, params)

    # Kernel layout: (N, H, C, W) — the transpose lives only in this harness.
    x_k = jnp.transpose(x_nchw, (0, 2, 1, 3))

    # 1) auto tile_h (VMEM-budgeted; whole image per row tile at this size)
    out_k = jax.block_until_ready(nafblock_mid_pallas(x_k, packed))
    out_nchw = jnp.transpose(out_k, (0, 2, 1, 3))
    np.testing.assert_allclose(np.asarray(out_nchw), np.asarray(ref),
                               rtol=1e-3, atol=1e-3)

    # 2) small forced tile_h to exercise interior (non-clamped) halo tiles
    out_k2 = jax.block_until_ready(nafblock_mid_pallas(x_k, packed, tile_h=4))
    out_nchw2 = jnp.transpose(out_k2, (0, 2, 1, 3))
    np.testing.assert_allclose(np.asarray(out_nchw2), np.asarray(ref),
                               rtol=1e-3, atol=1e-3)

    print("KERNEL_OK")
</pallas_src>

<mosaic_0001>
module attributes {stable_mosaic.version = 11 : i64} {
  func.func @_nafblock_kernel(%arg0: i32, %arg1: i32, %arg2: memref<1x2x4x16xf32, #tpu.memory_space<vmem>>, %arg3: memref<1x16x4x16xf32, #tpu.memory_space<vmem>>, %arg4: memref<1x2x4x16xf32, #tpu.memory_space<vmem>>, %arg5: memref<4x1xf32, #tpu.memory_space<vmem>>, %arg6: memref<4x1xf32, #tpu.memory_space<vmem>>, %arg7: memref<4x8x1xf32, #tpu.memory_space<vmem>>, %arg8: memref<8x1xf32, #tpu.memory_space<vmem>>, %arg9: memref<9x8x1xf32, #tpu.memory_space<vmem>>, %arg10: memref<8x1xf32, #tpu.memory_space<vmem>>, %arg11: memref<4x9x1x1x1xf32, #tpu.memory_space<vmem>>, %arg12: memref<4x1xf32, #tpu.memory_space<vmem>>, %arg13: memref<4x4x1xf32, #tpu.memory_space<vmem>>, %arg14: memref<4x1xf32, #tpu.memory_space<vmem>>, %arg15: memref<4x1xf32, #tpu.memory_space<vmem>>, %arg16: memref<1x16x4x16xf32, #tpu.memory_space<vmem>>) attributes {dimension_semantics = [#tpu.dimension_semantics<parallel>, #tpu.dimension_semantics<parallel>], iteration_bounds = array<i64: 2, 1>, scalar_prefetch = 0 : i64, scratch_operands = 0 : i64, tpu.core_type = #tpu.core_type<tc>, window_params = [{transform_indices = @transform_0, window_bounds = array<i64: 1, 2, 4, 16>}, {transform_indices = @transform_1, window_bounds = array<i64: 1, 16, 4, 16>}, {transform_indices = @transform_2, window_bounds = array<i64: 1, 2, 4, 16>}, {pipeline_mode = #tpu.pipeline_mode<synchronous>, transform_indices = @transform_3, window_bounds = array<i64: 4, 1>}, {pipeline_mode = #tpu.pipeline_mode<synchronous>, transform_indices = @transform_4, window_bounds = array<i64: 4, 1>}, {pipeline_mode = #tpu.pipeline_mode<synchronous>, transform_indices = @transform_5, window_bounds = array<i64: 4, 8, 1>}, {pipeline_mode = #tpu.pipeline_mode<synchronous>, transform_indices = @transform_6, window_bounds = array<i64: 8, 1>}, {pipeline_mode = #tpu.pipeline_mode<synchronous>, transform_indices = @transform_7, window_bounds = array<i64: 9, 8, 1>}, {pipeline_mode = #tpu.pipeline_mode<synchronous>, transform_indices = @transform_8, window_bounds = array<i64: 8, 1>}, {pipeline_mode = #tpu.pipeline_mode<synchronous>, transform_indices = @transform_9, window_bounds = array<i64: 4, 9, 1, 1, 1>}, {pipeline_mode = #tpu.pipeline_mode<synchronous>, transform_indices = @transform_10, window_bounds = array<i64: 4, 1>}, {pipeline_mode = #tpu.pipeline_mode<synchronous>, transform_indices = @transform_11, window_bounds = array<i64: 4, 4, 1>}, {pipeline_mode = #tpu.pipeline_mode<synchronous>, transform_indices = @transform_12, window_bounds = array<i64: 4, 1>}, {pipeline_mode = #tpu.pipeline_mode<synchronous>, transform_indices = @transform_13, window_bounds = array<i64: 4, 1>}, {transform_indices = @transform_14, window_bounds = array<i64: 1, 16, 4, 16>}]} {
    %c0 = arith.constant 0 : index
    %c0_0 = arith.constant 0 : index
    %c0_1 = arith.constant 0 : index
    %c0_2 = arith.constant 0 : index
    %0 = vector.load %arg3[%c0, %c0_0, %c0_1, %c0_2] : memref<1x16x4x16xf32, #tpu.memory_space<vmem>>, vector<1x16x4x16xf32>
    %1 = vector.shape_cast %0 : vector<1x16x4x16xf32> to vector<16x4x16xf32>
    %c0_3 = arith.constant 0 : index
    %c0_4 = arith.constant 0 : index
    %c0_5 = arith.constant 0 : index
    %c0_6 = arith.constant 0 : index
    %2 = vector.load %arg2[%c0_3, %c0_4, %c0_5, %c0_6] : memref<1x2x4x16xf32, #tpu.memory_space<vmem>>, vector<1x2x4x16xf32>
    %3 = vector.shape_cast %2 : vector<1x2x4x16xf32> to vector<2x4x16xf32>
    %c0_7 = arith.constant 0 : index
    %c0_8 = arith.constant 0 : index
    %c0_9 = arith.constant 0 : index
    %c0_10 = arith.constant 0 : index
    %4 = vector.load %arg4[%c0_7, %c0_8, %c0_9, %c0_10] : memref<1x2x4x16xf32, #tpu.memory_space<vmem>>, vector<1x2x4x16xf32>
    %5 = vector.shape_cast %4 : vector<1x2x4x16xf32> to vector<2x4x16xf32>
    %6 = tpu.concatenate %3, %1, %5 in 0 : vector<2x4x16xf32>, vector<16x4x16xf32>, vector<2x4x16xf32> -> vector<20x4x16xf32>
    %7 = vector.extract_strided_slice %6 {offsets = [0, 0, 0], sizes = [20, 1, 16], strides = [1, 1, 1]} : vector<20x4x16xf32> to vector<20x1x16xf32>
    %8 = vector.extract_strided_slice %6 {offsets = [0, 1, 0], sizes = [20, 1, 16], strides = [1, 1, 1]} : vector<20x4x16xf32> to vector<20x1x16xf32>
    %9 = arith.addf %7, %8 : vector<20x1x16xf32>
    %10 = vector.extract_strided_slice %6 {offsets = [0, 2, 0], sizes = [20, 1, 16], strides = [1, 1, 1]} : vector<20x4x16xf32> to vector<20x1x16xf32>
    %11 = arith.addf %9, %10 : vector<20x1x16xf32>
    %12 = vector.extract_strided_slice %6 {offsets = [0, 3, 0], sizes = [20, 1, 16], strides = [1, 1, 1]} : vector<20x4x16xf32> to vector<20x1x16xf32>
    %13 = arith.addf %11, %12 : vector<20x1x16xf32>
    %cst = arith.constant 2.500000e-01 : f32
    %14 = vector.broadcast %cst : f32 to vector<20x1x16xf32>
    %15 = arith.mulf %13, %14 : vector<20x1x16xf32>
    %16 = vector.broadcast %15 : vector<20x1x16xf32> to vector<20x4x16xf32>
    %17 = arith.subf %6, %16 : vector<20x4x16xf32>
    %18 = vector.extract_strided_slice %17 {offsets = [0, 0, 0], sizes = [20, 1, 16], strides = [1, 1, 1]} : vector<20x4x16xf32> to vector<20x1x16xf32>
    %19 = vector.extract_strided_slice %17 {offsets = [0, 0, 0], sizes = [20, 1, 16], strides = [1, 1, 1]} : vector<20x4x16xf32> to vector<20x1x16xf32>
    %20 = arith.mulf %18, %19 : vector<20x1x16xf32>
    %21 = vector.extract_strided_slice %17 {offsets = [0, 1, 0], sizes = [20, 1, 16], strides = [1, 1, 1]} : vector<20x4x16xf32> to vector<20x1x16xf32>
    %22 = vector.extract_strided_slice %17 {offsets = [0, 1, 0], sizes = [20, 1, 16], strides = [1, 1, 1]} : vector<20x4x16xf32> to vector<20x1x16xf32>
    %23 = arith.mulf %21, %22 : vector<20x1x16xf32>
    %24 = arith.addf %20, %23 : vector<20x1x16xf32>
    %25 = vector.extract_strided_slice %17 {offsets = [0, 2, 0], sizes = [20, 1, 16], strides = [1, 1, 1]} : vector<20x4x16xf32> to vector<20x1x16xf32>
    %26 = vector.extract_strided_slice %17 {offsets = [0, 2, 0], sizes = [20, 1, 16], strides = [1, 1, 1]} : vector<20x4x16xf32> to vector<20x1x16xf32>
    %27 = arith.mulf %25, %26 : vector<20x1x16xf32>
    %28 = arith.addf %24, %27 : vector<20x1x16xf32>
    %29 = vector.extract_strided_slice %17 {offsets = [0, 3, 0], sizes = [20, 1, 16], strides = [1, 1, 1]} : vector<20x4x16xf32> to vector<20x1x16xf32>
    %30 = vector.extract_strided_slice %17 {offsets = [0, 3, 0], sizes = [20, 1, 16], strides = [1, 1, 1]} : vector<20x4x16xf32> to vector<20x1x16xf32>
    %31 = arith.mulf %29, %30 : vector<20x1x16xf32>
    %32 = arith.addf %28, %31 : vector<20x1x16xf32>
    %cst_11 = arith.constant 2.500000e-01 : f32
    %33 = vector.broadcast %cst_11 : f32 to vector<20x1x16xf32>
    %34 = arith.mulf %32, %33 : vector<20x1x16xf32>
    %cst_12 = arith.constant 9.99999997E-7 : f32
    %35 = vector.broadcast %cst_12 : f32 to vector<20x1x16xf32>
    %36 = arith.addf %34, %35 : vector<20x1x16xf32>
    %37 = math.rsqrt %36 : vector<20x1x16xf32>
    %38 = vector.broadcast %37 : vector<20x1x16xf32> to vector<20x4x16xf32>
    %39 = arith.mulf %17, %38 : vector<20x4x16xf32>
    %c0_13 = arith.constant 0 : index
    %c0_14 = arith.constant 0 : index
    %40 = vector.load %arg5[%c0_13, %c0_14] : memref<4x1xf32, #tpu.memory_space<vmem>>, vector<4x1xf32>
    %41 = vector.shape_cast %40 : vector<4x1xf32> to vector<1x4x1xf32>
    %42 = vector.broadcast %41 : vector<1x4x1xf32> to vector<20x4x16xf32>
    %43 = arith.mulf %39, %42 : vector<20x4x16xf32>
    %c0_15 = arith.constant 0 : index
    %c0_16 = arith.constant 0 : index
    %44 = vector.load %arg6[%c0_15, %c0_16] : memref<4x1xf32, #tpu.memory_space<vmem>>, vector<4x1xf32>
    %45 = vector.shape_cast %44 : vector<4x1xf32> to vector<1x4x1xf32>
    %46 = vector.broadcast %45 : vector<1x4x1xf32> to vector<20x4x16xf32>
    %47 = arith.addf %43, %46 : vector<20x4x16xf32>
    %cst_17 = arith.constant 0.000000e+00 : f32
    %48 = vector.broadcast %cst_17 : f32 to vector<20x8x16xf32>
    %c0_18 = arith.constant 0 : index
    %c0_19 = arith.constant 0 : index
    %49 = vector.load %arg8[%c0_18, %c0_19] : memref<8x1xf32, #tpu.memory_space<vmem>>, vector<8x1xf32>
    %50 = vector.shape_cast %49 : vector<8x1xf32> to vector<1x8x1xf32>
    %51 = vector.broadcast %50 : vector<1x8x1xf32> to vector<20x8x16xf32>
    %52 = arith.addf %48, %51 : vector<20x8x16xf32>
    %c0_20 = arith.constant 0 : index
    %c0_21 = arith.constant 0 : index
    %c0_22 = arith.constant 0 : index
    %53 = vector.load %arg7[%c0_20, %c0_21, %c0_22] : memref<4x8x1xf32, #tpu.memory_space<vmem>>, vector<1x8x1xf32>
    %54 = vector.shape_cast %53 : vector<1x8x1xf32> to vector<8x1xf32>
    %55 = vector.extract_strided_slice %47 {offsets = [0, 0, 0], sizes = [20, 1, 16], strides = [1, 1, 1]} : vector<20x4x16xf32> to vector<20x1x16xf32>
    %56 = vector.shape_cast %54 : vector<8x1xf32> to vector<1x8x1xf32>
    %57 = vector.broadcast %56 : vector<1x8x1xf32> to vector<20x8x16xf32>
    %58 = vector.broadcast %55 : vector<20x1x16xf32> to vector<20x8x16xf32>
    %59 = arith.mulf %57, %58 : vector<20x8x16xf32>
    %60 = arith.addf %52, %59 : vector<20x8x16xf32>
    %c1 = arith.constant 1 : index
    %c0_23 = arith.constant 0 : index
    %c0_24 = arith.constant 0 : index
    %61 = vector.load %arg7[%c1, %c0_23, %c0_24] : memref<4x8x1xf32, #tpu.memory_space<vmem>>, vector<1x8x1xf32>
    %62 = vector.shape_cast %61 : vector<1x8x1xf32> to vector<8x1xf32>
    %63 = vector.extract_strided_slice %47 {offsets = [0, 1, 0], sizes = [20, 1, 16], strides = [1, 1, 1]} : vector<20x4x16xf32> to vector<20x1x16xf32>
    %64 = vector.shape_cast %62 : vector<8x1xf32> to vector<1x8x1xf32>
    %65 = vector.broadcast %64 : vector<1x8x1xf32> to vector<20x8x16xf32>
    %66 = vector.broadcast %63 : vector<20x1x16xf32> to vector<20x8x16xf32>
    %67 = arith.mulf %65, %66 : vector<20x8x16xf32>
    %68 = arith.addf %60, %67 : vector<20x8x16xf32>
    %c2 = arith.constant 2 : index
    %c0_25 = arith.constant 0 : index
    %c0_26 = arith.constant 0 : index
    %69 = vector.load %arg7[%c2, %c0_25, %c0_26] : memref<4x8x1xf32, #tpu.memory_space<vmem>>, vector<1x8x1xf32>
    %70 = vector.shape_cast %69 : vector<1x8x1xf32> to vector<8x1xf32>
    %71 = vector.extract_strided_slice %47 {offsets = [0, 2, 0], sizes = [20, 1, 16], strides = [1, 1, 1]} : vector<20x4x16xf32> to vector<20x1x16xf32>
    %72 = vector.shape_cast %70 : vector<8x1xf32> to vector<1x8x1xf32>
    %73 = vector.broadcast %72 : vector<1x8x1xf32> to vector<20x8x16xf32>
    %74 = vector.broadcast %71 : vector<20x1x16xf32> to vector<20x8x16xf32>
    %75 = arith.mulf %73, %74 : vector<20x8x16xf32>
    %76 = arith.addf %68, %75 : vector<20x8x16xf32>
    %c3 = arith.constant 3 : index
    %c0_27 = arith.constant 0 : index
    %c0_28 = arith.constant 0 : index
    %77 = vector.load %arg7[%c3, %c0_27, %c0_28] : memref<4x8x1xf32, #tpu.memory_space<vmem>>, vector<1x8x1xf32>
    %78 = vector.shape_cast %77 : vector<1x8x1xf32> to vector<8x1xf32>
    %79 = vector.extract_strided_slice %47 {offsets = [0, 3, 0], sizes = [20, 1, 16], strides = [1, 1, 1]} : vector<20x4x16xf32> to vector<20x1x16xf32>
    %80 = vector.shape_cast %78 : vector<8x1xf32> to vector<1x8x1xf32>
    %81 = vector.broadcast %80 : vector<1x8x1xf32> to vector<20x8x16xf32>
    %82 = vector.broadcast %79 : vector<20x1x16xf32> to vector<20x8x16xf32>
    %83 = arith.mulf %81, %82 : vector<20x8x16xf32>
    %84 = arith.addf %76, %83 : vector<20x8x16xf32>
    %85 = tpu.iota {dimensions = array<i32: 0>} : vector<20x1x1xi32>
    %c16_i32 = arith.constant 16 : i32
    %86 = arith.muli %arg1, %c16_i32 : i32
    %c2_i32 = arith.constant 2 : i32
    %87 = arith.subi %86, %c2_i32 : i32
    %88 = vector.broadcast %87 : i32 to vector<20x1x1xi32>
    %89 = arith.addi %85, %88 : vector<20x1x1xi32>
    %c0_i32 = arith.constant 0 : i32
    %90 = vector.broadcast %c0_i32 : i32 to vector<20x1x1xi32>
    %91 = arith.cmpi sge, %89, %90 : vector<20x1x1xi32>
    %c16_i32_29 = arith.constant 16 : i32
    %92 = vector.broadcast %c16_i32_29 : i32 to vector<20x1x1xi32>
    %93 = arith.cmpi slt, %89, %92 : vector<20x1x1xi32>
    %94 = arith.andi %91, %93 : vector<20x1x1xi1>
    %cst_30 = arith.constant 0.000000e+00 : f32
    %95 = vector.shape_cast %94 : vector<20x1x1xi1> to vector<20x1x1xi1>
    %96 = vector.broadcast %95 : vector<20x1x1xi1> to vector<20x8x16xi1>
    %97 = vector.broadcast %cst_30 : f32 to vector<20x8x16xf32>
    %98 = arith.select %96, %84, %97 : vector<20x8x16xi1>, vector<20x8x16xf32>
    %cst_31 = arith.constant 0.000000e+00 : f32
    %99 = vector.broadcast %cst_31 : f32 to vector<18x8x16xf32>
    %cst_32 = arith.constant 0.000000e+00 : f32
    %100 = vector.broadcast %cst_32 : f32 to vector<20x8x1xf32>
    %101 = vector.extract_strided_slice %98 {offsets = [0, 0, 0], sizes = [20, 8, 15], strides = [1, 1, 1]} : vector<20x8x16xf32> to vector<20x8x15xf32>
    %102 = tpu.concatenate %100, %101 in 2 : vector<20x8x1xf32>, vector<20x8x15xf32> -> vector<20x8x16xf32>
    %c0_33 = arith.constant 0 : index
    %c0_34 = arith.constant 0 : index
    %c0_35 = arith.constant 0 : index
    %103 = vector.load %arg9[%c0_33, %c0_34, %c0_35] : memref<9x8x1xf32, #tpu.memory_space<vmem>>, vector<1x8x1xf32>
    %104 = vector.shape_cast %103 : vector<1x8x1xf32> to vector<8x1xf32>
    %105 = vector.extract_strided_slice %102 {offsets = [0, 0, 0], sizes = [18, 8, 16], strides = [1, 1, 1]} : vector<20x8x16xf32> to vector<18x8x16xf32>
    %106 = vector.shape_cast %104 : vector<8x1xf32> to vector<1x8x1xf32>
    %107 = vector.broadcast %106 : vector<1x8x1xf32> to vector<18x8x16xf32>
    %108 = arith.mulf %107, %105 : vector<18x8x16xf32>
    %109 = arith.addf %99, %108 : vector<18x8x16xf32>
    %c3_36 = arith.constant 3 : index
    %c0_37 = arith.constant 0 : index
    %c0_38 = arith.constant 0 : index
    %110 = vector.load %arg9[%c3_36, %c0_37, %c0_38] : memref<9x8x1xf32, #tpu.memory_space<vmem>>, vector<1x8x1xf32>
    %111 = vector.shape_cast %110 : vector<1x8x1xf32> to vector<8x1xf32>
    %112 = vector.extract_strided_slice %102 {offsets = [1, 0, 0], sizes = [18, 8, 16], strides = [1, 1, 1]} : vector<20x8x16xf32> to vector<18x8x16xf32>
    %113 = vector.shape_cast %111 : vector<8x1xf32> to vector<1x8x1xf32>
    %114 = vector.broadcast %113 : vector<1x8x1xf32> to vector<18x8x16xf32>
    %115 = arith.mulf %114, %112 : vector<18x8x16xf32>
    %116 = arith.addf %109, %115 : vector<18x8x16xf32>
    %c6 = arith.constant 6 : index
    %c0_39 = arith.constant 0 : index
    %c0_40 = arith.constant 0 : index
    %117 = vector.load %arg9[%c6, %c0_39, %c0_40] : memref<9x8x1xf32, #tpu.memory_space<vmem>>, vector<1x8x1xf32>
    %118 = vector.shape_cast %117 : vector<1x8x1xf32> to vector<8x1xf32>
    %119 = vector.extract_strided_slice %102 {offsets = [2, 0, 0], sizes = [18, 8, 16], strides = [1, 1, 1]} : vector<20x8x16xf32> to vector<18x8x16xf32>
    %120 = vector.shape_cast %118 : vector<8x1xf32> to vector<1x8x1xf32>
    %121 = vector.broadcast %120 : vector<1x8x1xf32> to vector<18x8x16xf32>
    %122 = arith.mulf %121, %119 : vector<18x8x16xf32>
    %123 = arith.addf %116, %122 : vector<18x8x16xf32>
    %c1_41 = arith.constant 1 : index
    %c0_42 = arith.constant 0 : index
    %c0_43 = arith.constant 0 : index
    %124 = vector.load %arg9[%c1_41, %c0_42, %c0_43] : memref<9x8x1xf32, #tpu.memory_space<vmem>>, vector<1x8x1xf32>
    %125 = vector.shape_cast %124 : vector<1x8x1xf32> to vector<8x1xf32>
    %126 = vector.extract_strided_slice %98 {offsets = [0, 0, 0], sizes = [18, 8, 16], strides = [1, 1, 1]} : vector<20x8x16xf32> to vector<18x8x16xf32>
    %127 = vector.shape_cast %125 : vector<8x1xf32> to vector<1x8x1xf32>
    %128 = vector.broadcast %127 : vector<1x8x1xf32> to vector<18x8x16xf32>
    %129 = arith.mulf %128, %126 : vector<18x8x16xf32>
    %130 = arith.addf %123, %129 : vector<18x8x16xf32>
    %c4 = arith.constant 4 : index
    %c0_44 = arith.constant 0 : index
    %c0_45 = arith.constant 0 : index
    %131 = vector.load %arg9[%c4, %c0_44, %c0_45] : memref<9x8x1xf32, #tpu.memory_space<vmem>>, vector<1x8x1xf32>
    %132 = vector.shape_cast %131 : vector<1x8x1xf32> to vector<8x1xf32>
    %133 = vector.extract_strided_slice %98 {offsets = [1, 0, 0], sizes = [18, 8, 16], strides = [1, 1, 1]} : vector<20x8x16xf32> to vector<18x8x16xf32>
    %134 = vector.shape_cast %132 : vector<8x1xf32> to vector<1x8x1xf32>
    %135 = vector.broadcast %134 : vector<1x8x1xf32> to vector<18x8x16xf32>
    %136 = arith.mulf %135, %133 : vector<18x8x16xf32>
    %137 = arith.addf %130, %136 : vector<18x8x16xf32>
    %c7 = arith.constant 7 : index
    %c0_46 = arith.constant 0 : index
    %c0_47 = arith.constant 0 : index
    %138 = vector.load %arg9[%c7, %c0_46, %c0_47] : memref<9x8x1xf32, #tpu.memory_space<vmem>>, vector<1x8x1xf32>
    %139 = vector.shape_cast %138 : vector<1x8x1xf32> to vector<8x1xf32>
    %140 = vector.extract_strided_slice %98 {offsets = [2, 0, 0], sizes = [18, 8, 16], strides = [1, 1, 1]} : vector<20x8x16xf32> to vector<18x8x16xf32>
    %141 = vector.shape_cast %139 : vector<8x1xf32> to vector<1x8x1xf32>
    %142 = vector.broadcast %141 : vector<1x8x1xf32> to vector<18x8x16xf32>
    %143 = arith.mulf %142, %140 : vector<18x8x16xf32>
    %144 = arith.addf %137, %143 : vector<18x8x16xf32>
    %cst_48 = arith.constant 0.000000e+00 : f32
    %145 = vector.broadcast %cst_48 : f32 to vector<20x8x1xf32>
    %146 = vector.extract_strided_slice %98 {offsets = [0, 0, 1], sizes = [20, 8, 15], strides = [1, 1, 1]} : vector<20x8x16xf32> to vector<20x8x15xf32>
    %147 = tpu.concatenate %146, %145 in 2 : vector<20x8x15xf32>, vector<20x8x1xf32> -> vector<20x8x16xf32>
    %c2_49 = arith.constant 2 : index
    %c0_50 = arith.constant 0 : index
    %c0_51 = arith.constant 0 : index
    %148 = vector.load %arg9[%c2_49, %c0_50, %c0_51] : memref<9x8x1xf32, #tpu.memory_space<vmem>>, vector<1x8x1xf32>
    %149 = vector.shape_cast %148 : vector<1x8x1xf32> to vector<8x1xf32>
    %150 = vector.extract_strided_slice %147 {offsets = [0, 0, 0], sizes = [18, 8, 16], strides = [1, 1, 1]} : vector<20x8x16xf32> to vector<18x8x16xf32>
    %151 = vector.shape_cast %149 : vector<8x1xf32> to vector<1x8x1xf32>
    %152 = vector.broadcast %151 : vector<1x8x1xf32> to vector<18x8x16xf32>
    %153 = arith.mulf %152, %150 : vector<18x8x16xf32>
    %154 = arith.addf %144, %153 : vector<18x8x16xf32>
    %c5 = arith.constant 5 : index
    %c0_52 = arith.constant 0 : index
    %c0_53 = arith.constant 0 : index
    %155 = vector.load %arg9[%c5, %c0_52, %c0_53] : memref<9x8x1xf32, #tpu.memory_space<vmem>>, vector<1x8x1xf32>
    %156 = vector.shape_cast %155 : vector<1x8x1xf32> to vector<8x1xf32>
    %157 = vector.extract_strided_slice %147 {offsets = [1, 0, 0], sizes = [18, 8, 16], strides = [1, 1, 1]} : vector<20x8x16xf32> to vector<18x8x16xf32>
    %158 = vector.shape_cast %156 : vector<8x1xf32> to vector<1x8x1xf32>
    %159 = vector.broadcast %158 : vector<1x8x1xf32> to vector<18x8x16xf32>
    %160 = arith.mulf %159, %157 : vector<18x8x16xf32>
    %161 = arith.addf %154, %160 : vector<18x8x16xf32>
    %c8 = arith.constant 8 : index
    %c0_54 = arith.constant 0 : index
    %c0_55 = arith.constant 0 : index
    %162 = vector.load %arg9[%c8, %c0_54, %c0_55] : memref<9x8x1xf32, #tpu.memory_space<vmem>>, vector<1x8x1xf32>
    %163 = vector.shape_cast %162 : vector<1x8x1xf32> to vector<8x1xf32>
    %164 = vector.extract_strided_slice %147 {offsets = [2, 0, 0], sizes = [18, 8, 16], strides = [1, 1, 1]} : vector<20x8x16xf32> to vector<18x8x16xf32>
    %165 = vector.shape_cast %163 : vector<8x1xf32> to vector<1x8x1xf32>
    %166 = vector.broadcast %165 : vector<1x8x1xf32> to vector<18x8x16xf32>
    %167 = arith.mulf %166, %164 : vector<18x8x16xf32>
    %168 = arith.addf %161, %167 : vector<18x8x16xf32>
    %c0_56 = arith.constant 0 : index
    %c0_57 = arith.constant 0 : index
    %169 = vector.load %arg10[%c0_56, %c0_57] : memref<8x1xf32, #tpu.memory_space<vmem>>, vector<8x1xf32>
    %170 = vector.shape_cast %169 : vector<8x1xf32> to vector<1x8x1xf32>
    %171 = vector.broadcast %170 : vector<1x8x1xf32> to vector<18x8x16xf32>
    %172 = arith.addf %168, %171 : vector<18x8x16xf32>
    %173 = vector.extract_strided_slice %172 {offsets = [0, 0, 0], sizes = [18, 4, 16], strides = [1, 1, 1]} : vector<18x8x16xf32> to vector<18x4x16xf32>
    %174 = vector.extract_strided_slice %172 {offsets = [0, 4, 0], sizes = [18, 4, 16], strides = [1, 1, 1]} : vector<18x8x16xf32> to vector<18x4x16xf32>
    %175 = arith.mulf %173, %174 : vector<18x4x16xf32>
    %176 = vector.extract_strided_slice %94 {offsets = [1, 0, 0], sizes = [18, 1, 1], strides = [1, 1, 1]} : vector<20x1x1xi1> to vector<18x1x1xi1>
    %cst_58 = arith.constant 0.000000e+00 : f32
    %177 = vector.shape_cast %176 : vector<18x1x1xi1> to vector<18x1x1xi1>
    %178 = vector.broadcast %177 : vector<18x1x1xi1> to vector<18x4x16xi1>
    %179 = vector.broadcast %cst_58 : f32 to vector<18x4x16xf32>
    %180 = arith.select %178, %175, %179 : vector<18x4x16xi1>, vector<18x4x16xf32>
    %cst_59 = arith.constant 0.000000e+00 : f32
    %181 = vector.broadcast %cst_59 : f32 to vector<16x1x16xf32>
    %cst_60 = arith.constant 0.000000e+00 : f32
    %182 = vector.broadcast %cst_60 : f32 to vector<16x1x16xf32>
    %cst_61 = arith.constant 0.000000e+00 : f32
    %183 = vector.broadcast %cst_61 : f32 to vector<16x1x16xf32>
    %cst_62 = arith.constant 0.000000e+00 : f32
    %184 = vector.broadcast %cst_62 : f32 to vector<16x1x16xf32>
    %cst_63 = arith.constant 0.000000e+00 : f32
    %185 = vector.broadcast %cst_63 : f32 to vector<18x4x1xf32>
    %186 = vector.extract_strided_slice %180 {offsets = [0, 0, 0], sizes = [18, 4, 15], strides = [1, 1, 1]} : vector<18x4x16xf32> to vector<18x4x15xf32>
    %187 = tpu.concatenate %185, %186 in 2 : vector<18x4x1xf32>, vector<18x4x15xf32> -> vector<18x4x16xf32>
    %188 = vector.extract_strided_slice %187 {offsets = [0, 0, 0], sizes = [16, 4, 16], strides = [1, 1, 1]} : vector<18x4x16xf32> to vector<16x4x16xf32>
    %c0_64 = arith.constant 0 : index
    %c0_65 = arith.constant 0 : index
    %c0_66 = arith.constant 0 : index
    %c0_67 = arith.constant 0 : index
    %c0_68 = arith.constant 0 : index
    %189 = vector.load %arg11[%c0_64, %c0_65, %c0_66, %c0_67, %c0_68] : memref<4x9x1x1x1xf32, #tpu.memory_space<vmem>>, vector<1x1x1x1x1xf32>
    %190 = vector.shape_cast %189 : vector<1x1x1x1x1xf32> to vector<1x1xf32>
    %191 = vector.extract_strided_slice %188 {offsets = [0, 0, 0], sizes = [16, 1, 16], strides = [1, 1, 1]} : vector<16x4x16xf32> to vector<16x1x16xf32>
    %192 = vector.shape_cast %190 : vector<1x1xf32> to vector<1x1x1xf32>
    %193 = vector.broadcast %192 : vector<1x1x1xf32> to vector<16x1x16xf32>
    %194 = arith.mulf %193, %191 : vector<16x1x16xf32>
    %195 = arith.addf %181, %194 : vector<16x1x16xf32>
    %c1_69 = arith.constant 1 : index
    %c0_70 = arith.constant 0 : index
    %c0_71 = arith.constant 0 : index
    %c0_72 = arith.constant 0 : index
    %c0_73 = arith.constant 0 : index
    %196 = vector.load %arg11[%c1_69, %c0_70, %c0_71, %c0_72, %c0_73] : memref<4x9x1x1x1xf32, #tpu.memory_space<vmem>>, vector<1x1x1x1x1xf32>
    %197 = vector.shape_cast %196 : vector<1x1x1x1x1xf32> to vector<1x1xf32>
    %198 = vector.extract_strided_slice %188 {offsets = [0, 1, 0], sizes = [16, 1, 16], strides = [1, 1, 1]} : vector<16x4x16xf32> to vector<16x1x16xf32>
    %199 = vector.shape_cast %197 : vector<1x1xf32> to vector<1x1x1xf32>
    %200 = vector.broadcast %199 : vector<1x1x1xf32> to vector<16x1x16xf32>
    %201 = arith.mulf %200, %198 : vector<16x1x16xf32>
    %202 = arith.addf %182, %201 : vector<16x1x16xf32>
    %c2_74 = arith.constant 2 : index
    %c0_75 = arith.constant 0 : index
    %c0_76 = arith.constant 0 : index
    %c0_77 = arith.constant 0 : index
    %c0_78 = arith.constant 0 : index
    %203 = vector.load %arg11[%c2_74, %c0_75, %c0_76, %c0_77, %c0_78] : memref<4x9x1x1x1xf32, #tpu.memory_space<vmem>>, vector<1x1x1x1x1xf32>
    %204 = vector.shape_cast %203 : vector<1x1x1x1x1xf32> to vector<1x1xf32>
    %205 = vector.extract_strided_slice %188 {offsets = [0, 2, 0], sizes = [16, 1, 16], strides = [1, 1, 1]} : vector<16x4x16xf32> to vector<16x1x16xf32>
    %206 = vector.shape_cast %204 : vector<1x1xf32> to vector<1x1x1xf32>
    %207 = vector.broadcast %206 : vector<1x1x1xf32> to vector<16x1x16xf32>
    %208 = arith.mulf %207, %205 : vector<16x1x16xf32>
    %209 = arith.addf %183, %208 : vector<16x1x16xf32>
    %c3_79 = arith.constant 3 : index
    %c0_80 = arith.constant 0 : index
    %c0_81 = arith.constant 0 : index
    %c0_82 = arith.constant 0 : index
    %c0_83 = arith.constant 0 : index
    %210 = vector.load %arg11[%c3_79, %c0_80, %c0_81, %c0_82, %c0_83] : memref<4x9x1x1x1xf32, #tpu.memory_space<vmem>>, vector<1x1x1x1x1xf32>
    %211 = vector.shape_cast %210 : vector<1x1x1x1x1xf32> to vector<1x1xf32>
    %212 = vector.extract_strided_slice %188 {offsets = [0, 3, 0], sizes = [16, 1, 16], strides = [1, 1, 1]} : vector<16x4x16xf32> to vector<16x1x16xf32>
    %213 = vector.shape_cast %211 : vector<1x1xf32> to vector<1x1x1xf32>
    %214 = vector.broadcast %213 : vector<1x1x1xf32> to vector<16x1x16xf32>
    %215 = arith.mulf %214, %212 : vector<16x1x16xf32>
    %216 = arith.addf %184, %215 : vector<16x1x16xf32>
    %217 = vector.extract_strided_slice %187 {offsets = [1, 0, 0], sizes = [16, 4, 16], strides = [1, 1, 1]} : vector<18x4x16xf32> to vector<16x4x16xf32>
    %c0_84 = arith.constant 0 : index
    %c3_85 = arith.constant 3 : index
    %c0_86 = arith.constant 0 : index
    %c0_87 = arith.constant 0 : index
    %c0_88 = arith.constant 0 : index
    %218 = vector.load %arg11[%c0_84, %c3_85, %c0_86, %c0_87, %c0_88] : memref<4x9x1x1x1xf32, #tpu.memory_space<vmem>>, vector<1x1x1x1x1xf32>
    %219 = vector.shape_cast %218 : vector<1x1x1x1x1xf32> to vector<1x1xf32>
    %220 = vector.extract_strided_slice %217 {offsets = [0, 0, 0], sizes = [16, 1, 16], strides = [1, 1, 1]} : vector<16x4x16xf32> to vector<16x1x16xf32>
    %221 = vector.shape_cast %219 : vector<1x1xf32> to vector<1x1x1xf32>
    %222 = vector.broadcast %221 : vector<1x1x1xf32> to vector<16x1x16xf32>
    %223 = arith.mulf %222, %220 : vector<16x1x16xf32>
    %224 = arith.addf %195, %223 : vector<16x1x16xf32>
    %c1_89 = arith.constant 1 : index
    %c3_90 = arith.constant 3 : index
    %c0_91 = arith.constant 0 : index
    %c0_92 = arith.constant 0 : index
    %c0_93 = arith.constant 0 : index
    %225 = vector.load %arg11[%c1_89, %c3_90, %c0_91, %c0_92, %c0_93] : memref<4x9x1x1x1xf32, #tpu.memory_space<vmem>>, vector<1x1x1x1x1xf32>
    %226 = vector.shape_cast %225 : vector<1x1x1x1x1xf32> to vector<1x1xf32>
    %227 = vector.extract_strided_slice %217 {offsets = [0, 1, 0], sizes = [16, 1, 16], strides = [1, 1, 1]} : vector<16x4x16xf32> to vector<16x1x16xf32>
    %228 = vector.shape_cast %226 : vector<1x1xf32> to vector<1x1x1xf32>
    %229 = vector.broadcast %228 : vector<1x1x1xf32> to vector<16x1x16xf32>
    %230 = arith.mulf %229, %227 : vector<16x1x16xf32>
    %231 = arith.addf %202, %230 : vector<16x1x16xf32>
    %c2_94 = arith.constant 2 : index
    %c3_95 = arith.constant 3 : index
    %c0_96 = arith.constant 0 : index
    %c0_97 = arith.constant 0 : index
    %c0_98 = arith.constant 0 : index
    %232 = vector.load %arg11[%c2_94, %c3_95, %c0_96, %c0_97, %c0_98] : memref<4x9x1x1x1xf32, #tpu.memory_space<vmem>>, vector<1x1x1x1x1xf32>
    %233 = vector.shape_cast %232 : vector<1x1x1x1x1xf32> to vector<1x1xf32>
    %234 = vector.extract_strided_slice %217 {offsets = [0, 2, 0], sizes = [16, 1, 16], strides = [1, 1, 1]} : vector<16x4x16xf32> to vector<16x1x16xf32>
    %235 = vector.shape_cast %233 : vector<1x1xf32> to vector<1x1x1xf32>
    %236 = vector.broadcast %235 : vector<1x1x1xf32> to vector<16x1x16xf32>
    %237 = arith.mulf %236, %234 : vector<16x1x16xf32>
    %238 = arith.addf %209, %237 : vector<16x1x16xf32>
    %c3_99 = arith.constant 3 : index
    %c3_100 = arith.constant 3 : index
    %c0_101 = arith.constant 0 : index
    %c0_102 = arith.constant 0 : index
    %c0_103 = arith.constant 0 : index
    %239 = vector.load %arg11[%c3_99, %c3_100, %c0_101, %c0_102, %c0_103] : memref<4x9x1x1x1xf32, #tpu.memory_space<vmem>>, vector<1x1x1x1x1xf32>
    %240 = vector.shape_cast %239 : vector<1x1x1x1x1xf32> to vector<1x1xf32>
    %241 = vector.extract_strided_slice %217 {offsets = [0, 3, 0], sizes = [16, 1, 16], strides = [1, 1, 1]} : vector<16x4x16xf32> to vector<16x1x16xf32>
    %242 = vector.shape_cast %240 : vector<1x1xf32> to vector<1x1x1xf32>
    %243 = vector.broadcast %242 : vector<1x1x1xf32> to vector<16x1x16xf32>
    %244 = arith.mulf %243, %241 : vector<16x1x16xf32>
    %245 = arith.addf %216, %244 : vector<16x1x16xf32>
    %246 = vector.extract_strided_slice %187 {offsets = [2, 0, 0], sizes = [16, 4, 16], strides = [1, 1, 1]} : vector<18x4x16xf32> to vector<16x4x16xf32>
    %c0_104 = arith.constant 0 : index
    %c6_105 = arith.constant 6 : index
    %c0_106 = arith.constant 0 : index
    %c0_107 = arith.constant 0 : index
    %c0_108 = arith.constant 0 : index
    %247 = vector.load %arg11[%c0_104, %c6_105, %c0_106, %c0_107, %c0_108] : memref<4x9x1x1x1xf32, #tpu.memory_space<vmem>>, vector<1x1x1x1x1xf32>
    %248 = vector.shape_cast %247 : vector<1x1x1x1x1xf32> to vector<1x1xf32>
    %249 = vector.extract_strided_slice %246 {offsets = [0, 0, 0], sizes = [16, 1, 16], strides = [1, 1, 1]} : vector<16x4x16xf32> to vector<16x1x16xf32>
    %250 = vector.shape_cast %248 : vector<1x1xf32> to vector<1x1x1xf32>
    %251 = vector.broadcast %250 : vector<1x1x1xf32> to vector<16x1x16xf32>
    %252 = arith.mulf %251, %249 : vector<16x1x16xf32>
    %253 = arith.addf %224, %252 : vector<16x1x16xf32>
    %c1_109 = arith.constant 1 : index
    %c6_110 = arith.constant 6 : index
    %c0_111 = arith.constant 0 : index
    %c0_112 = arith.constant 0 : index
    %c0_113 = arith.constant 0 : index
    %254 = vector.load %arg11[%c1_109, %c6_110, %c0_111, %c0_112, %c0_113] : memref<4x9x1x1x1xf32, #tpu.memory_space<vmem>>, vector<1x1x1x1x1xf32>
    %255 = vector.shape_cast %254 : vector<1x1x1x1x1xf32> to vector<1x1xf32>
    %256 = vector.extract_strided_slice %246 {offsets = [0, 1, 0], sizes = [16, 1, 16], strides = [1, 1, 1]} : vector<16x4x16xf32> to vector<16x1x16xf32>
    %257 = vector.shape_cast %255 : vector<1x1xf32> to vector<1x1x1xf32>
    %258 = vector.broadcast %257 : vector<1x1x1xf32> to vector<16x1x16xf32>
    %259 = arith.mulf %258, %256 : vector<16x1x16xf32>
    %260 = arith.addf %231, %259 : vector<16x1x16xf32>
    %c2_114 = arith.constant 2 : index
    %c6_115 = arith.constant 6 : index
    %c0_116 = arith.constant 0 : index
    %c0_117 = arith.constant 0 : index
    %c0_118 = arith.constant 0 : index
    %261 = vector.load %arg11[%c2_114, %c6_115, %c0_116, %c0_117, %c0_118] : memref<4x9x1x1x1xf32, #tpu.memory_space<vmem>>, vector<1x1x1x1x1xf32>
    %262 = vector.shape_cast %261 : vector<1x1x1x1x1xf32> to vector<1x1xf32>
    %263 = vector.extract_strided_slice %246 {offsets = [0, 2, 0], sizes = [16, 1, 16], strides = [1, 1, 1]} : vector<16x4x16xf32> to vector<16x1x16xf32>
    %264 = vector.shape_cast %262 : vector<1x1xf32> to vector<1x1x1xf32>
    %265 = vector.broadcast %264 : vector<1x1x1xf32> to vector<16x1x16xf32>
    %266 = arith.mulf %265, %263 : vector<16x1x16xf32>
    %267 = arith.addf %238, %266 : vector<16x1x16xf32>
    %c3_119 = arith.constant 3 : index
    %c6_120 = arith.constant 6 : index
    %c0_121 = arith.constant 0 : index
    %c0_122 = arith.constant 0 : index
    %c0_123 = arith.constant 0 : index
    %268 = vector.load %arg11[%c3_119, %c6_120, %c0_121, %c0_122, %c0_123] : memref<4x9x1x1x1xf32, #tpu.memory_space<vmem>>, vector<1x1x1x1x1xf32>
    %269 = vector.shape_cast %268 : vector<1x1x1x1x1xf32> to vector<1x1xf32>
    %270 = vector.extract_strided_slice %246 {offsets = [0, 3, 0], sizes = [16, 1, 16], strides = [1, 1, 1]} : vector<16x4x16xf32> to vector<16x1x16xf32>
    %271 = vector.shape_cast %269 : vector<1x1xf32> to vector<1x1x1xf32>
    %272 = vector.broadcast %271 : vector<1x1x1xf32> to vector<16x1x16xf32>
    %273 = arith.mulf %272, %270 : vector<16x1x16xf32>
    %274 = arith.addf %245, %273 : vector<16x1x16xf32>
    %275 = vector.extract_strided_slice %180 {offsets = [0, 0, 0], sizes = [16, 4, 16], strides = [1, 1, 1]} : vector<18x4x16xf32> to vector<16x4x16xf32>
    %c0_124 = arith.constant 0 : index
    %c1_125 = arith.constant 1 : index
    %c0_126 = arith.constant 0 : index
    %c0_127 = arith.constant 0 : index
    %c0_128 = arith.constant 0 : index
    %276 = vector.load %arg11[%c0_124, %c1_125, %c0_126, %c0_127, %c0_128] : memref<4x9x1x1x1xf32, #tpu.memory_space<vmem>>, vector<1x1x1x1x1xf32>
    %277 = vector.shape_cast %276 : vector<1x1x1x1x1xf32> to vector<1x1xf32>
    %278 = vector.extract_strided_slice %275 {offsets = [0, 0, 0], sizes = [16, 1, 16], strides = [1, 1, 1]} : vector<16x4x16xf32> to vector<16x1x16xf32>
    %279 = vector.shape_cast %277 : vector<1x1xf32> to vector<1x1x1xf32>
    %280 = vector.broadcast %279 : vector<1x1x1xf32> to vector<16x1x16xf32>
    %281 = arith.mulf %280, %278 : vector<16x1x16xf32>
    %282 = arith.addf %253, %281 : vector<16x1x16xf32>
    %c1_129 = arith.constant 1 : index
    %c1_130 = arith.constant 1 : index
    %c0_131 = arith.constant 0 : index
    %c0_132 = arith.constant 0 : index
    %c0_133 = arith.constant 0 : index
    %283 = vector.load %arg11[%c1_129, %c1_130, %c0_131, %c0_132, %c0_133] : memref<4x9x1x1x1xf32, #tpu.memory_space<vmem>>, vector<1x1x1x1x1xf32>
    %284 = vector.shape_cast %283 : vector<1x1x1x1x1xf32> to vector<1x1xf32>
    %285 = vector.extract_strided_slice %275 {offsets = [0, 1, 0], sizes = [16, 1, 16], strides = [1, 1, 1]} : vector<16x4x16xf32> to vector<16x1x16xf32>
    %286 = vector.shape_cast %284 : vector<1x1xf32> to vector<1x1x1xf32>
    %287 = vector.broadcast %286 : vector<1x1x1xf32> to vector<16x1x16xf32>
    %288 = arith.mulf %287, %285 : vector<16x1x16xf32>
    %289 = arith.addf %260, %288 : vector<16x1x16xf32>
    %c2_134 = arith.constant 2 : index
    %c1_135 = arith.constant 1 : index
    %c0_136 = arith.constant 0 : index
    %c0_137 = arith.constant 0 : index
    %c0_138 = arith.constant 0 : index
    %290 = vector.load %arg11[%c2_134, %c1_135, %c0_136, %c0_137, %c0_138] : memref<4x9x1x1x1xf32, #tpu.memory_space<vmem>>, vector<1x1x1x1x1xf32>
    %291 = vector.shape_cast %290 : vector<1x1x1x1x1xf32> to vector<1x1xf32>
    %292 = vector.extract_strided_slice %275 {offsets = [0, 2, 0], sizes = [16, 1, 16], strides = [1, 1, 1]} : vector<16x4x16xf32> to vector<16x1x16xf32>
    %293 = vector.shape_cast %291 : vector<1x1xf32> to vector<1x1x1xf32>
    %294 = vector.broadcast %293 : vector<1x1x1xf32> to vector<16x1x16xf32>
    %295 = arith.mulf %294, %292 : vector<16x1x16xf32>
    %296 = arith.addf %267, %295 : vector<16x1x16xf32>
    %c3_139 = arith.constant 3 : index
    %c1_140 = arith.constant 1 : index
    %c0_141 = arith.constant 0 : index
    %c0_142 = arith.constant 0 : index
    %c0_143 = arith.constant 0 : index
    %297 = vector.load %arg11[%c3_139, %c1_140, %c0_141, %c0_142, %c0_143] : memref<4x9x1x1x1xf32, #tpu.memory_space<vmem>>, vector<1x1x1x1x1xf32>
    %298 = vector.shape_cast %297 : vector<1x1x1x1x1xf32> to vector<1x1xf32>
    %299 = vector.extract_strided_slice %275 {offsets = [0, 3, 0], sizes = [16, 1, 16], strides = [1, 1, 1]} : vector<16x4x16xf32> to vector<16x1x16xf32>
    %300 = vector.shape_cast %298 : vector<1x1xf32> to vector<1x1x1xf32>
    %301 = vector.broadcast %300 : vector<1x1x1xf32> to vector<16x1x16xf32>
    %302 = arith.mulf %301, %299 : vector<16x1x16xf32>
    %303 = arith.addf %274, %302 : vector<16x1x16xf32>
    %304 = vector.extract_strided_slice %180 {offsets = [1, 0, 0], sizes = [16, 4, 16], strides = [1, 1, 1]} : vector<18x4x16xf32> to vector<16x4x16xf32>
    %c0_144 = arith.constant 0 : index
    %c4_145 = arith.constant 4 : index
    %c0_146 = arith.constant 0 : index
    %c0_147 = arith.constant 0 : index
    %c0_148 = arith.constant 0 : index
    %305 = vector.load %arg11[%c0_144, %c4_145, %c0_146, %c0_147, %c0_148] : memref<4x9x1x1x1xf32, #tpu.memory_space<vmem>>, vector<1x1x1x1x1xf32>
    %306 = vector.shape_cast %305 : vector<1x1x1x1x1xf32> to vector<1x1xf32>
    %307 = vector.extract_strided_slice %304 {offsets = [0, 0, 0], sizes = [16, 1, 16], strides = [1, 1, 1]} : vector<16x4x16xf32> to vector<16x1x16xf32>
    %308 = vector.shape_cast %306 : vector<1x1xf32> to vector<1x1x1xf32>
    %309 = vector.broadcast %308 : vector<1x1x1xf32> to vector<16x1x16xf32>
    %310 = arith.mulf %309, %307 : vector<16x1x16xf32>
    %311 = arith.addf %282, %310 : vector<16x1x16xf32>
    %c1_149 = arith.constant 1 : index
    %c4_150 = arith.constant 4 : index
    %c0_151 = arith.constant 0 : index
    %c0_152 = arith.constant 0 : index
    %c0_153 = arith.constant 0 : index
    %312 = vector.load %arg11[%c1_149, %c4_150, %c0_151, %c0_152, %c0_153] : memref<4x9x1x1x1xf32, #tpu.memory_space<vmem>>, vector<1x1x1x1x1xf32>
    %313 = vector.shape_cast %312 : vector<1x1x1x1x1xf32> to vector<1x1xf32>
    %314 = vector.extract_strided_slice %304 {offsets = [0, 1, 0], sizes = [16, 1, 16], strides = [1, 1, 1]} : vector<16x4x16xf32> to vector<16x1x16xf32>
    %315 = vector.shape_cast %313 : vector<1x1xf32> to vector<1x1x1xf32>
    %316 = vector.broadcast %315 : vector<1x1x1xf32> to vector<16x1x16xf32>
    %317 = arith.mulf %316, %314 : vector<16x1x16xf32>
    %318 = arith.addf %289, %317 : vector<16x1x16xf32>
    %c2_154 = arith.constant 2 : index
    %c4_155 = arith.constant 4 : index
    %c0_156 = arith.constant 0 : index
    %c0_157 = arith.constant 0 : index
    %c0_158 = arith.constant 0 : index
    %319 = vector.load %arg11[%c2_154, %c4_155, %c0_156, %c0_157, %c0_158] : memref<4x9x1x1x1xf32, #tpu.memory_space<vmem>>, vector<1x1x1x1x1xf32>
    %320 = vector.shape_cast %319 : vector<1x1x1x1x1xf32> to vector<1x1xf32>
    %321 = vector.extract_strided_slice %304 {offsets = [0, 2, 0], sizes = [16, 1, 16], strides = [1, 1, 1]} : vector<16x4x16xf32> to vector<16x1x16xf32>
    %322 = vector.shape_cast %320 : vector<1x1xf32> to vector<1x1x1xf32>
    %323 = vector.broadcast %322 : vector<1x1x1xf32> to vector<16x1x16xf32>
    %324 = arith.mulf %323, %321 : vector<16x1x16xf32>
    %325 = arith.addf %296, %324 : vector<16x1x16xf32>
    %c3_159 = arith.constant 3 : index
    %c4_160 = arith.constant 4 : index
    %c0_161 = arith.constant 0 : index
    %c0_162 = arith.constant 0 : index
    %c0_163 = arith.constant 0 : index
    %326 = vector.load %arg11[%c3_159, %c4_160, %c0_161, %c0_162, %c0_163] : memref<4x9x1x1x1xf32, #tpu.memory_space<vmem>>, vector<1x1x1x1x1xf32>
    %327 = vector.shape_cast %326 : vector<1x1x1x1x1xf32> to vector<1x1xf32>
    %328 = vector.extract_strided_slice %304 {offsets = [0, 3, 0], sizes = [16, 1, 16], strides = [1, 1, 1]} : vector<16x4x16xf32> to vector<16x1x16xf32>
    %329 = vector.shape_cast %327 : vector<1x1xf32> to vector<1x1x1xf32>
    %330 = vector.broadcast %329 : vector<1x1x1xf32> to vector<16x1x16xf32>
    %331 = arith.mulf %330, %328 : vector<16x1x16xf32>
    %332 = arith.addf %303, %331 : vector<16x1x16xf32>
    %333 = vector.extract_strided_slice %180 {offsets = [2, 0, 0], sizes = [16, 4, 16], strides = [1, 1, 1]} : vector<18x4x16xf32> to vector<16x4x16xf32>
    %c0_164 = arith.constant 0 : index
    %c7_165 = arith.constant 7 : index
    %c0_166 = arith.constant 0 : index
    %c0_167 = arith.constant 0 : index
    %c0_168 = arith.constant 0 : index
    %334 = vector.load %arg11[%c0_164, %c7_165, %c0_166, %c0_167, %c0_168] : memref<4x9x1x1x1xf32, #tpu.memory_space<vmem>>, vector<1x1x1x1x1xf32>
    %335 = vector.shape_cast %334 : vector<1x1x1x1x1xf32> to vector<1x1xf32>
    %336 = vector.extract_strided_slice %333 {offsets = [0, 0, 0], sizes = [16, 1, 16], strides = [1, 1, 1]} : vector<16x4x16xf32> to vector<16x1x16xf32>
    %337 = vector.shape_cast %335 : vector<1x1xf32> to vector<1x1x1xf32>
    %338 = vector.broadcast %337 : vector<1x1x1xf32> to vector<16x1x16xf32>
    %339 = arith.mulf %338, %336 : vector<16x1x16xf32>
    %340 = arith.addf %311, %339 : vector<16x1x16xf32>
    %c1_169 = arith.constant 1 : index
    %c7_170 = arith.constant 7 : index
    %c0_171 = arith.constant 0 : index
    %c0_172 = arith.constant 0 : index
    %c0_173 = arith.constant 0 : index
    %341 = vector.load %arg11[%c1_169, %c7_170, %c0_171, %c0_172, %c0_173] : memref<4x9x1x1x1xf32, #tpu.memory_space<vmem>>, vector<1x1x1x1x1xf32>
    %342 = vector.shape_cast %341 : vector<1x1x1x1x1xf32> to vector<1x1xf32>
    %343 = vector.extract_strided_slice %333 {offsets = [0, 1, 0], sizes = [16, 1, 16], strides = [1, 1, 1]} : vector<16x4x16xf32> to vector<16x1x16xf32>
    %344 = vector.shape_cast %342 : vector<1x1xf32> to vector<1x1x1xf32>
    %345 = vector.broadcast %344 : vector<1x1x1xf32> to vector<16x1x16xf32>
    %346 = arith.mulf %345, %343 : vector<16x1x16xf32>
    %347 = arith.addf %318, %346 : vector<16x1x16xf32>
    %c2_174 = arith.constant 2 : index
    %c7_175 = arith.constant 7 : index
    %c0_176 = arith.constant 0 : index
    %c0_177 = arith.constant 0 : index
    %c0_178 = arith.constant 0 : index
    %348 = vector.load %arg11[%c2_174, %c7_175, %c0_176, %c0_177, %c0_178] : memref<4x9x1x1x1xf32, #tpu.memory_space<vmem>>, vector<1x1x1x1x1xf32>
    %349 = vector.shape_cast %348 : vector<1x1x1x1x1xf32> to vector<1x1xf32>
    %350 = vector.extract_strided_slice %333 {offsets = [0, 2, 0], sizes = [16, 1, 16], strides = [1, 1, 1]} : vector<16x4x16xf32> to vector<16x1x16xf32>
    %351 = vector.shape_cast %349 : vector<1x1xf32> to vector<1x1x1xf32>
    %352 = vector.broadcast %351 : vector<1x1x1xf32> to vector<16x1x16xf32>
    %353 = arith.mulf %352, %350 : vector<16x1x16xf32>
    %354 = arith.addf %325, %353 : vector<16x1x16xf32>
    %c3_179 = arith.constant 3 : index
    %c7_180 = arith.constant 7 : index
    %c0_181 = arith.constant 0 : index
    %c0_182 = arith.constant 0 : index
    %c0_183 = arith.constant 0 : index
    %355 = vector.load %arg11[%c3_179, %c7_180, %c0_181, %c0_182, %c0_183] : memref<4x9x1x1x1xf32, #tpu.memory_space<vmem>>, vector<1x1x1x1x1xf32>
    %356 = vector.shape_cast %355 : vector<1x1x1x1x1xf32> to vector<1x1xf32>
    %357 = vector.extract_strided_slice %333 {offsets = [0, 3, 0], sizes = [16, 1, 16], strides = [1, 1, 1]} : vector<16x4x16xf32> to vector<16x1x16xf32>
    %358 = vector.shape_cast %356 : vector<1x1xf32> to vector<1x1x1xf32>
    %359 = vector.broadcast %358 : vector<1x1x1xf32> to vector<16x1x16xf32>
    %360 = arith.mulf %359, %357 : vector<16x1x16xf32>
    %361 = arith.addf %332, %360 : vector<16x1x16xf32>
    %cst_184 = arith.constant 0.000000e+00 : f32
    %362 = vector.broadcast %cst_184 : f32 to vector<18x4x1xf32>
    %363 = vector.extract_strided_slice %180 {offsets = [0, 0, 1], sizes = [18, 4, 15], strides = [1, 1, 1]} : vector<18x4x16xf32> to vector<18x4x15xf32>
    %364 = tpu.concatenate %363, %362 in 2 : vector<18x4x15xf32>, vector<18x4x1xf32> -> vector<18x4x16xf32>
    %365 = vector.extract_strided_slice %364 {offsets = [0, 0, 0], sizes = [16, 4, 16], strides = [1, 1, 1]} : vector<18x4x16xf32> to vector<16x4x16xf32>
    %c0_185 = arith.constant 0 : index
    %c2_186 = arith.constant 2 : index
    %c0_187 = arith.constant 0 : index
    %c0_188 = arith.constant 0 : index
    %c0_189 = arith.constant 0 : index
    %366 = vector.load %arg11[%c0_185, %c2_186, %c0_187, %c0_188, %c0_189] : memref<4x9x1x1x1xf32, #tpu.memory_space<vmem>>, vector<1x1x1x1x1xf32>
    %367 = vector.shape_cast %366 : vector<1x1x1x1x1xf32> to vector<1x1xf32>
    %368 = vector.extract_strided_slice %365 {offsets = [0, 0, 0], sizes = [16, 1, 16], strides = [1, 1, 1]} : vector<16x4x16xf32> to vector<16x1x16xf32>
    %369 = vector.shape_cast %367 : vector<1x1xf32> to vector<1x1x1xf32>
    %370 = vector.broadcast %369 : vector<1x1x1xf32> to vector<16x1x16xf32>
    %371 = arith.mulf %370, %368 : vector<16x1x16xf32>
    %372 = arith.addf %340, %371 : vector<16x1x16xf32>
    %c1_190 = arith.constant 1 : index
    %c2_191 = arith.constant 2 : index
    %c0_192 = arith.constant 0 : index
    %c0_193 = arith.constant 0 : index
    %c0_194 = arith.constant 0 : index
    %373 = vector.load %arg11[%c1_190, %c2_191, %c0_192, %c0_193, %c0_194] : memref<4x9x1x1x1xf32, #tpu.memory_space<vmem>>, vector<1x1x1x1x1xf32>
    %374 = vector.shape_cast %373 : vector<1x1x1x1x1xf32> to vector<1x1xf32>
    %375 = vector.extract_strided_slice %365 {offsets = [0, 1, 0], sizes = [16, 1, 16], strides = [1, 1, 1]} : vector<16x4x16xf32> to vector<16x1x16xf32>
    %376 = vector.shape_cast %374 : vector<1x1xf32> to vector<1x1x1xf32>
    %377 = vector.broadcast %376 : vector<1x1x1xf32> to vector<16x1x16xf32>
    %378 = arith.mulf %377, %375 : vector<16x1x16xf32>
    %379 = arith.addf %347, %378 : vector<16x1x16xf32>
    %c2_195 = arith.constant 2 : index
    %c2_196 = arith.constant 2 : index
    %c0_197 = arith.constant 0 : index
    %c0_198 = arith.constant 0 : index
    %c0_199 = arith.constant 0 : index
    %380 = vector.load %arg11[%c2_195, %c2_196, %c0_197, %c0_198, %c0_199] : memref<4x9x1x1x1xf32, #tpu.memory_space<vmem>>, vector<1x1x1x1x1xf32>
    %381 = vector.shape_cast %380 : vector<1x1x1x1x1xf32> to vector<1x1xf32>
    %382 = vector.extract_strided_slice %365 {offsets = [0, 2, 0], sizes = [16, 1, 16], strides = [1, 1, 1]} : vector<16x4x16xf32> to vector<16x1x16xf32>
    %383 = vector.shape_cast %381 : vector<1x1xf32> to vector<1x1x1xf32>
    %384 = vector.broadcast %383 : vector<1x1x1xf32> to vector<16x1x16xf32>
    %385 = arith.mulf %384, %382 : vector<16x1x16xf32>
    %386 = arith.addf %354, %385 : vector<16x1x16xf32>
    %c3_200 = arith.constant 3 : index
    %c2_201 = arith.constant 2 : index
    %c0_202 = arith.constant 0 : index
    %c0_203 = arith.constant 0 : index
    %c0_204 = arith.constant 0 : index
    %387 = vector.load %arg11[%c3_200, %c2_201, %c0_202, %c0_203, %c0_204] : memref<4x9x1x1x1xf32, #tpu.memory_space<vmem>>, vector<1x1x1x1x1xf32>
    %388 = vector.shape_cast %387 : vector<1x1x1x1x1xf32> to vector<1x1xf32>
    %389 = vector.extract_strided_slice %365 {offsets = [0, 3, 0], sizes = [16, 1, 16], strides = [1, 1, 1]} : vector<16x4x16xf32> to vector<16x1x16xf32>
    %390 = vector.shape_cast %388 : vector<1x1xf32> to vector<1x1x1xf32>
    %391 = vector.broadcast %390 : vector<1x1x1xf32> to vector<16x1x16xf32>
    %392 = arith.mulf %391, %389 : vector<16x1x16xf32>
    %393 = arith.addf %361, %392 : vector<16x1x16xf32>
    %394 = vector.extract_strided_slice %364 {offsets = [1, 0, 0], sizes = [16, 4, 16], strides = [1, 1, 1]} : vector<18x4x16xf32> to vector<16x4x16xf32>
    %c0_205 = arith.constant 0 : index
    %c5_206 = arith.constant 5 : index
    %c0_207 = arith.constant 0 : index
    %c0_208 = arith.constant 0 : index
    %c0_209 = arith.constant 0 : index
    %395 = vector.load %arg11[%c0_205, %c5_206, %c0_207, %c0_208, %c0_209] : memref<4x9x1x1x1xf32, #tpu.memory_space<vmem>>, vector<1x1x1x1x1xf32>
    %396 = vector.shape_cast %395 : vector<1x1x1x1x1xf32> to vector<1x1xf32>
    %397 = vector.extract_strided_slice %394 {offsets = [0, 0, 0], sizes = [16, 1, 16], strides = [1, 1, 1]} : vector<16x4x16xf32> to vector<16x1x16xf32>
    %398 = vector.shape_cast %396 : vector<1x1xf32> to vector<1x1x1xf32>
    %399 = vector.broadcast %398 : vector<1x1x1xf32> to vector<16x1x16xf32>
    %400 = arith.mulf %399, %397 : vector<16x1x16xf32>
    %401 = arith.addf %372, %400 : vector<16x1x16xf32>
    %c1_210 = arith.constant 1 : index
    %c5_211 = arith.constant 5 : index
    %c0_212 = arith.constant 0 : index
    %c0_213 = arith.constant 0 : index
    %c0_214 = arith.constant 0 : index
    %402 = vector.load %arg11[%c1_210, %c5_211, %c0_212, %c0_213, %c0_214] : memref<4x9x1x1x1xf32, #tpu.memory_space<vmem>>, vector<1x1x1x1x1xf32>
    %403 = vector.shape_cast %402 : vector<1x1x1x1x1xf32> to vector<1x1xf32>
    %404 = vector.extract_strided_slice %394 {offsets = [0, 1, 0], sizes = [16, 1, 16], strides = [1, 1, 1]} : vector<16x4x16xf32> to vector<16x1x16xf32>
    %405 = vector.shape_cast %403 : vector<1x1xf32> to vector<1x1x1xf32>
    %406 = vector.broadcast %405 : vector<1x1x1xf32> to vector<16x1x16xf32>
    %407 = arith.mulf %406, %404 : vector<16x1x16xf32>
    %408 = arith.addf %379, %407 : vector<16x1x16xf32>
    %c2_215 = arith.constant 2 : index
    %c5_216 = arith.constant 5 : index
    %c0_217 = arith.constant 0 : index
    %c0_218 = arith.constant 0 : index
    %c0_219 = arith.constant 0 : index
    %409 = vector.load %arg11[%c2_215, %c5_216, %c0_217, %c0_218, %c0_219] : memref<4x9x1x1x1xf32, #tpu.memory_space<vmem>>, vector<1x1x1x1x1xf32>
    %410 = vector.shape_cast %409 : vector<1x1x1x1x1xf32> to vector<1x1xf32>
    %411 = vector.extract_strided_slice %394 {offsets = [0, 2, 0], sizes = [16, 1, 16], strides = [1, 1, 1]} : vector<16x4x16xf32> to vector<16x1x16xf32>
    %412 = vector.shape_cast %410 : vector<1x1xf32> to vector<1x1x1xf32>
    %413 = vector.broadcast %412 : vector<1x1x1xf32> to vector<16x1x16xf32>
    %414 = arith.mulf %413, %411 : vector<16x1x16xf32>
    %415 = arith.addf %386, %414 : vector<16x1x16xf32>
    %c3_220 = arith.constant 3 : index
    %c5_221 = arith.constant 5 : index
    %c0_222 = arith.constant 0 : index
    %c0_223 = arith.constant 0 : index
    %c0_224 = arith.constant 0 : index
    %416 = vector.load %arg11[%c3_220, %c5_221, %c0_222, %c0_223, %c0_224] : memref<4x9x1x1x1xf32, #tpu.memory_space<vmem>>, vector<1x1x1x1x1xf32>
    %417 = vector.shape_cast %416 : vector<1x1x1x1x1xf32> to vector<1x1xf32>
    %418 = vector.extract_strided_slice %394 {offsets = [0, 3, 0], sizes = [16, 1, 16], strides = [1, 1, 1]} : vector<16x4x16xf32> to vector<16x1x16xf32>
    %419 = vector.shape_cast %417 : vector<1x1xf32> to vector<1x1x1xf32>
    %420 = vector.broadcast %419 : vector<1x1x1xf32> to vector<16x1x16xf32>
    %421 = arith.mulf %420, %418 : vector<16x1x16xf32>
    %422 = arith.addf %393, %421 : vector<16x1x16xf32>
    %423 = vector.extract_strided_slice %364 {offsets = [2, 0, 0], sizes = [16, 4, 16], strides = [1, 1, 1]} : vector<18x4x16xf32> to vector<16x4x16xf32>
    %c0_225 = arith.constant 0 : index
    %c8_226 = arith.constant 8 : index
    %c0_227 = arith.constant 0 : index
    %c0_228 = arith.constant 0 : index
    %c0_229 = arith.constant 0 : index
    %424 = vector.load %arg11[%c0_225, %c8_226, %c0_227, %c0_228, %c0_229] : memref<4x9x1x1x1xf32, #tpu.memory_space<vmem>>, vector<1x1x1x1x1xf32>
    %425 = vector.shape_cast %424 : vector<1x1x1x1x1xf32> to vector<1x1xf32>
    %426 = vector.extract_strided_slice %423 {offsets = [0, 0, 0], sizes = [16, 1, 16], strides = [1, 1, 1]} : vector<16x4x16xf32> to vector<16x1x16xf32>
    %427 = vector.shape_cast %425 : vector<1x1xf32> to vector<1x1x1xf32>
    %428 = vector.broadcast %427 : vector<1x1x1xf32> to vector<16x1x16xf32>
    %429 = arith.mulf %428, %426 : vector<16x1x16xf32>
    %430 = arith.addf %401, %429 : vector<16x1x16xf32>
    %c1_230 = arith.constant 1 : index
    %c8_231 = arith.constant 8 : index
    %c0_232 = arith.constant 0 : index
    %c0_233 = arith.constant 0 : index
    %c0_234 = arith.constant 0 : index
    %431 = vector.load %arg11[%c1_230, %c8_231, %c0_232, %c0_233, %c0_234] : memref<4x9x1x1x1xf32, #tpu.memory_space<vmem>>, vector<1x1x1x1x1xf32>
    %432 = vector.shape_cast %431 : vector<1x1x1x1x1xf32> to vector<1x1xf32>
    %433 = vector.extract_strided_slice %423 {offsets = [0, 1, 0], sizes = [16, 1, 16], strides = [1, 1, 1]} : vector<16x4x16xf32> to vector<16x1x16xf32>
    %434 = vector.shape_cast %432 : vector<1x1xf32> to vector<1x1x1xf32>
    %435 = vector.broadcast %434 : vector<1x1x1xf32> to vector<16x1x16xf32>
    %436 = arith.mulf %435, %433 : vector<16x1x16xf32>
    %437 = arith.addf %408, %436 : vector<16x1x16xf32>
    %c2_235 = arith.constant 2 : index
    %c8_236 = arith.constant 8 : index
    %c0_237 = arith.constant 0 : index
    %c0_238 = arith.constant 0 : index
    %c0_239 = arith.constant 0 : index
    %438 = vector.load %arg11[%c2_235, %c8_236, %c0_237, %c0_238, %c0_239] : memref<4x9x1x1x1xf32, #tpu.memory_space<vmem>>, vector<1x1x1x1x1xf32>
    %439 = vector.shape_cast %438 : vector<1x1x1x1x1xf32> to vector<1x1xf32>
    %440 = vector.extract_strided_slice %423 {offsets = [0, 2, 0], sizes = [16, 1, 16], strides = [1, 1, 1]} : vector<16x4x16xf32> to vector<16x1x16xf32>
    %441 = vector.shape_cast %439 : vector<1x1xf32> to vector<1x1x1xf32>
    %442 = vector.broadcast %441 : vector<1x1x1xf32> to vector<16x1x16xf32>
    %443 = arith.mulf %442, %440 : vector<16x1x16xf32>
    %444 = arith.addf %415, %443 : vector<16x1x16xf32>
    %c3_240 = arith.constant 3 : index
    %c8_241 = arith.constant 8 : index
    %c0_242 = arith.constant 0 : index
    %c0_243 = arith.constant 0 : index
    %c0_244 = arith.constant 0 : index
    %445 = vector.load %arg11[%c3_240, %c8_241, %c0_242, %c0_243, %c0_244] : memref<4x9x1x1x1xf32, #tpu.memory_space<vmem>>, vector<1x1x1x1x1xf32>
    %446 = vector.shape_cast %445 : vector<1x1x1x1x1xf32> to vector<1x1xf32>
    %447 = vector.extract_strided_slice %423 {offsets = [0, 3, 0], sizes = [16, 1, 16], strides = [1, 1, 1]} : vector<16x4x16xf32> to vector<16x1x16xf32>
    %448 = vector.shape_cast %446 : vector<1x1xf32> to vector<1x1x1xf32>
    %449 = vector.broadcast %448 : vector<1x1x1xf32> to vector<16x1x16xf32>
    %450 = arith.mulf %449, %447 : vector<16x1x16xf32>
    %451 = arith.addf %422, %450 : vector<16x1x16xf32>
    %452 = tpu.concatenate %430, %437, %444, %451 in 1 : vector<16x1x16xf32>, vector<16x1x16xf32>, vector<16x1x16xf32>, vector<16x1x16xf32> -> vector<16x4x16xf32>
    %c0_245 = arith.constant 0 : index
    %c0_246 = arith.constant 0 : index
    %453 = vector.load %arg12[%c0_245, %c0_246] : memref<4x1xf32, #tpu.memory_space<vmem>>, vector<4x1xf32>
    %454 = vector.shape_cast %453 : vector<4x1xf32> to vector<1x4x1xf32>
    %455 = vector.broadcast %454 : vector<1x4x1xf32> to vector<16x4x16xf32>
    %456 = arith.addf %452, %455 : vector<16x4x16xf32>
    %cst_247 = arith.constant 0.000000e+00 : f32
    %457 = vector.broadcast %cst_247 : f32 to vector<16x4x16xf32>
    %c0_248 = arith.constant 0 : index
    %c0_249 = arith.constant 0 : index
    %458 = vector.load %arg14[%c0_248, %c0_249] : memref<4x1xf32, #tpu.memory_space<vmem>>, vector<4x1xf32>
    %459 = vector.shape_cast %458 : vector<4x1xf32> to vector<1x4x1xf32>
    %460 = vector.broadcast %459 : vector<1x4x1xf32> to vector<16x4x16xf32>
    %461 = arith.addf %457, %460 : vector<16x4x16xf32>
    %c0_250 = arith.constant 0 : index
    %c0_251 = arith.constant 0 : index
    %c0_252 = arith.constant 0 : index
    %462 = vector.load %arg13[%c0_250, %c0_251, %c0_252] : memref<4x4x1xf32, #tpu.memory_space<vmem>>, vector<1x4x1xf32>
    %463 = vector.shape_cast %462 : vector<1x4x1xf32> to vector<4x1xf32>
    %464 = vector.extract_strided_slice %456 {offsets = [0, 0, 0], sizes = [16, 1, 16], strides = [1, 1, 1]} : vector<16x4x16xf32> to vector<16x1x16xf32>
    %465 = vector.shape_cast %463 : vector<4x1xf32> to vector<1x4x1xf32>
    %466 = vector.broadcast %465 : vector<1x4x1xf32> to vector<16x4x16xf32>
    %467 = vector.broadcast %464 : vector<16x1x16xf32> to vector<16x4x16xf32>
    %468 = arith.mulf %466, %467 : vector<16x4x16xf32>
    %469 = arith.addf %461, %468 : vector<16x4x16xf32>
    %c1_253 = arith.constant 1 : index
    %c0_254 = arith.constant 0 : index
    %c0_255 = arith.constant 0 : index
    %470 = vector.load %arg13[%c1_253, %c0_254, %c0_255] : memref<4x4x1xf32, #tpu.memory_space<vmem>>, vector<1x4x1xf32>
    %471 = vector.shape_cast %470 : vector<1x4x1xf32> to vector<4x1xf32>
    %472 = vector.extract_strided_slice %456 {offsets = [0, 1, 0], sizes = [16, 1, 16], strides = [1, 1, 1]} : vector<16x4x16xf32> to vector<16x1x16xf32>
    %473 = vector.shape_cast %471 : vector<4x1xf32> to vector<1x4x1xf32>
    %474 = vector.broadcast %473 : vector<1x4x1xf32> to vector<16x4x16xf32>
    %475 = vector.broadcast %472 : vector<16x1x16xf32> to vector<16x4x16xf32>
    %476 = arith.mulf %474, %475 : vector<16x4x16xf32>
    %477 = arith.addf %469, %476 : vector<16x4x16xf32>
    %c2_256 = arith.constant 2 : index
    %c0_257 = arith.constant 0 : index
    %c0_258 = arith.constant 0 : index
    %478 = vector.load %arg13[%c2_256, %c0_257, %c0_258] : memref<4x4x1xf32, #tpu.memory_space<vmem>>, vector<1x4x1xf32>
    %479 = vector.shape_cast %478 : vector<1x4x1xf32> to vector<4x1xf32>
    %480 = vector.extract_strided_slice %456 {offsets = [0, 2, 0], sizes = [16, 1, 16], strides = [1, 1, 1]} : vector<16x4x16xf32> to vector<16x1x16xf32>
    %481 = vector.shape_cast %479 : vector<4x1xf32> to vector<1x4x1xf32>
    %482 = vector.broadcast %481 : vector<1x4x1xf32> to vector<16x4x16xf32>
    %483 = vector.broadcast %480 : vector<16x1x16xf32> to vector<16x4x16xf32>
    %484 = arith.mulf %482, %483 : vector<16x4x16xf32>
    %485 = arith.addf %477, %484 : vector<16x4x16xf32>
    %c3_259 = arith.constant 3 : index
    %c0_260 = arith.constant 0 : index
    %c0_261 = arith.constant 0 : index
    %486 = vector.load %arg13[%c3_259, %c0_260, %c0_261] : memref<4x4x1xf32, #tpu.memory_space<vmem>>, vector<1x4x1xf32>
    %487 = vector.shape_cast %486 : vector<1x4x1xf32> to vector<4x1xf32>
    %488 = vector.extract_strided_slice %456 {offsets = [0, 3, 0], sizes = [16, 1, 16], strides = [1, 1, 1]} : vector<16x4x16xf32> to vector<16x1x16xf32>
    %489 = vector.shape_cast %487 : vector<4x1xf32> to vector<1x4x1xf32>
    %490 = vector.broadcast %489 : vector<1x4x1xf32> to vector<16x4x16xf32>
    %491 = vector.broadcast %488 : vector<16x1x16xf32> to vector<16x4x16xf32>
    %492 = arith.mulf %490, %491 : vector<16x4x16xf32>
    %493 = arith.addf %485, %492 : vector<16x4x16xf32>
    %c0_262 = arith.constant 0 : index
    %c0_263 = arith.constant 0 : index
    %494 = vector.load %arg15[%c0_262, %c0_263] : memref<4x1xf32, #tpu.memory_space<vmem>>, vector<4x1xf32>
    %495 = vector.shape_cast %494 : vector<4x1xf32> to vector<1x4x1xf32>
    %496 = vector.broadcast %495 : vector<1x4x1xf32> to vector<16x4x16xf32>
    %497 = arith.mulf %493, %496 : vector<16x4x16xf32>
    %498 = arith.addf %1, %497 : vector<16x4x16xf32>
    %c0_264 = arith.constant 0 : index
    %c0_265 = arith.constant 0 : index
    %c0_266 = arith.constant 0 : index
    %c0_267 = arith.constant 0 : index
    %499 = vector.load %arg16[%c0_264, %c0_265, %c0_266, %c0_267] : memref<1x16x4x16xf32, #tpu.memory_space<vmem>>, vector<1x16x4x16xf32>
    %500 = vector.shape_cast %499 : vector<1x16x4x16xf32> to vector<16x4x16xf32>
    %501 = vector.shape_cast %498 : vector<16x4x16xf32> to vector<1x16x4x16xf32>
    tpu.vector_store %arg16[%c0_264, %c0_265, %c0_266, %c0_267], %501 {strides = array<i32>} : memref<1x16x4x16xf32, #tpu.memory_space<vmem>>, vector<1x16x4x16xf32>,
    return
  }
  func.func @transform_0(%arg0: i32, %arg1: i32) -> (i32, i32, i32, i32) {
    %c8_i32 = arith.constant 8 : i32
    %0 = arith.muli %arg1, %c8_i32 : i32
    %c1_i32 = arith.constant 1 : i32
    %1 = arith.subi %0, %c1_i32 : i32
    %c0_i32 = arith.constant 0 : i32
    %2 = arith.maxsi %1, %c0_i32 : i32
    %c0_i32_0 = arith.constant 0 : i32
    %c0_i32_1 = arith.constant 0 : i32
    %c0_i32_2 = arith.constant 0 : i32
    return %arg0, %2, %c0_i32_0, %c0_i32_1 : i32, i32, i32, i32
  }
  func.func @transform_1(%arg0: i32, %arg1: i32) -> (i32, i32, i32, i32) {
    %c0_i32 = arith.constant 0 : i32
    %c0_i32_0 = arith.constant 0 : i32
    %c0_i32_1 = arith.constant 0 : i32
    return %arg0, %arg1, %c0_i32, %c0_i32_0 : i32, i32, i32, i32
  }
  func.func @transform_2(%arg0: i32, %arg1: i32) -> (i32, i32, i32, i32) {
    %c1_i32 = arith.constant 1 : i32
    %0 = arith.addi %arg1, %c1_i32 : i32
    %c8_i32 = arith.constant 8 : i32
    %1 = arith.muli %0, %c8_i32 : i32
    %c7_i32 = arith.constant 7 : i32
    %2 = arith.minsi %1, %c7_i32 : i32
    %c0_i32 = arith.constant 0 : i32
    %c0_i32_0 = arith.constant 0 : i32
    %c0_i32_1 = arith.constant 0 : i32
    return %arg0, %2, %c0_i32, %c0_i32_0 : i32, i32, i32, i32
  }
  func.func @transform_3(%arg0: i32, %arg1: i32) -> (i32, i32) {
    %c0_i32 = arith.constant 0 : i32
    %c0_i32_0 = arith.constant 0 : i32
    %c0_i32_1 = arith.constant 0 : i32
    return %c0_i32, %c0_i32_0 : i32, i32
  }
  func.func @transform_4(%arg0: i32, %arg1: i32) -> (i32, i32) {
    %c0_i32 = arith.constant 0 : i32
    %c0_i32_0 = arith.constant 0 : i32
    %c0_i32_1 = arith.constant 0 : i32
    return %c0_i32, %c0_i32_0 : i32, i32
  }
  func.func @transform_5(%arg0: i32, %arg1: i32) -> (i32, i32, i32) {
    %c0_i32 = arith.constant 0 : i32
    %c0_i32_0 = arith.constant 0 : i32
    %c0_i32_1 = arith.constant 0 : i32
    %c0_i32_2 = arith.constant 0 : i32
    return %c0_i32, %c0_i32_0, %c0_i32_1 : i32, i32, i32
  }
  func.func @transform_6(%arg0: i32, %arg1: i32) -> (i32, i32) {
    %c0_i32 = arith.constant 0 : i32
    %c0_i32_0 = arith.constant 0 : i32
    %c0_i32_1 = arith.constant 0 : i32
    return %c0_i32, %c0_i32_0 : i32, i32
  }
  func.func @transform_7(%arg0: i32, %arg1: i32) -> (i32, i32, i32) {
    %c0_i32 = arith.constant 0 : i32
    %c0_i32_0 = arith.constant 0 : i32
    %c0_i32_1 = arith.constant 0 : i32
    %c0_i32_2 = arith.constant 0 : i32
    return %c0_i32, %c0_i32_0, %c0_i32_1 : i32, i32, i32
  }
  func.func @transform_8(%arg0: i32, %arg1: i32) -> (i32, i32) {
    %c0_i32 = arith.constant 0 : i32
    %c0_i32_0 = arith.constant 0 : i32
    %c0_i32_1 = arith.constant 0 : i32
    return %c0_i32, %c0_i32_0 : i32, i32
  }
  func.func @transform_9(%arg0: i32, %arg1: i32) -> (i32, i32, i32, i32, i32) {
    %c0_i32 = arith.constant 0 : i32
    %c0_i32_0 = arith.constant 0 : i32
    %c0_i32_1 = arith.constant 0 : i32
    %c0_i32_2 = arith.constant 0 : i32
    %c0_i32_3 = arith.constant 0 : i32
    %c0_i32_4 = arith.constant 0 : i32
    return %c0_i32, %c0_i32_0, %c0_i32_1, %c0_i32_2, %c0_i32_3 : i32, i32, i32, i32, i32
  }
  func.func @transform_10(%arg0: i32, %arg1: i32) -> (i32, i32) {
    %c0_i32 = arith.constant 0 : i32
    %c0_i32_0 = arith.constant 0 : i32
    %c0_i32_1 = arith.constant 0 : i32
    return %c0_i32, %c0_i32_0 : i32, i32
  }
  func.func @transform_11(%arg0: i32, %arg1: i32) -> (i32, i32, i32) {
    %c0_i32 = arith.constant 0 : i32
    %c0_i32_0 = arith.constant 0 : i32
    %c0_i32_1 = arith.constant 0 : i32
    %c0_i32_2 = arith.constant 0 : i32
    return %c0_i32, %c0_i32_0, %c0_i32_1 : i32, i32, i32
  }
  func.func @transform_12(%arg0: i32, %arg1: i32) -> (i32, i32) {
    %c0_i32 = arith.constant 0 : i32
    %c0_i32_0 = arith.constant 0 : i32
    %c0_i32_1 = arith.constant 0 : i32
    return %c0_i32, %c0_i32_0 : i32, i32
  }
  func.func @transform_13(%arg0: i32, %arg1: i32) -> (i32, i32) {
    %c0_i32 = arith.constant 0 : i32
    %c0_i32_0 = arith.constant 0 : i32
    %c0_i32_1 = arith.constant 0 : i32
    return %c0_i32, %c0_i32_0 : i32, i32
  }
  func.func @transform_14(%arg0: i32, %arg1: i32) -> (i32, i32, i32, i32) {
    %c0_i32 = arith.constant 0 : i32
    %c0_i32_0 = arith.constant 0 : i32
    %c0_i32_1 = arith.constant 0 : i32
    return %arg0, %arg1, %c0_i32, %c0_i32_0 : i32, i32, i32, i32
  }
}

</mosaic_0001>

<llo_original>
// kernel: tpu_custom_call.1
$region0: #{tpu_custom_call.1}
  #allocation0 [shape = 'u32[]', space=smem, size = 0x4, offset = 0x4, fixed_abs, tag = 'smem constant byte address 0x4 - core index']
  #allocation1 [shape = 'u32[144,128]{1,0:T(1,128)}', space=vmem, size = 0x12000, scoped, tag = 'internal scratch']
  %s0 = inlined_call_operand.vmem [shape: f32[2,16,4,16], index: 0, kind: input, shape index: {}]
  %s1 = inlined_call_operand.hbm [shape: f32[2,16,4,16], index: 1, kind: input, shape index: {}]
  %s2 = inlined_call_operand.hbm [shape: f32[2,16,4,16], index: 2, kind: input, shape index: {}]
  %s3 = inlined_call_operand.vmem [shape: f32[4,1], index: 3, kind: input, shape index: {}]
  %s4 = inlined_call_operand.vmem [shape: f32[4,1], index: 4, kind: input, shape index: {}]
  %s5 = inlined_call_operand.vmem [shape: f32[4,8,1], index: 5, kind: input, shape index: {}]
  %s6 = inlined_call_operand.vmem [shape: f32[8,1], index: 6, kind: input, shape index: {}]
  %s7 = inlined_call_operand.vmem [shape: f32[9,8,1], index: 7, kind: input, shape index: {}]
  %s8 = inlined_call_operand.vmem [shape: f32[8,1], index: 8, kind: input, shape index: {}]
  %s9 = inlined_call_operand.vmem [shape: f32[4,9,1,1,1], index: 9, kind: input, shape index: {}]
  %s10 = inlined_call_operand.vmem [shape: f32[4,1], index: 10, kind: input, shape index: {}]
  %s11 = inlined_call_operand.vmem [shape: f32[4,4,1], index: 11, kind: input, shape index: {}]
  %s12 = inlined_call_operand.vmem [shape: f32[4,1], index: 12, kind: input, shape index: {}]
  %s13 = inlined_call_operand.vmem [shape: f32[4,1], index: 13, kind: input, shape index: {}]
  %s14 = inlined_call_operand.hbm [shape: f32[2,16,4,16], index: 14, kind: output, shape index: {}]
  %s15 = sld [smem:[#allocation0]]
  $region97: #{tpu_custom_call.1} parent=0
    _
  %s17 = ssub.s32 1, %s15
  %s18 = scalar_select 0, %s17, %s15
  $region1: #{tpu_custom_call.1} parent=0
    #allocation2 [shape = 'u8[65536]{0}', space=vmem, size = 0x10000, scoped, tag = 'input window, operand 1']
    #allocation3 [shape = 's32[2]{0}', space=sflag, size = 0x8, scoped, tag = 'scoped memory for tpu_custom_call.1']
    #allocation4 [shape = 's32[2]{0}', space=sflag, size = 0x8, scoped, tag = 'scoped memory for tpu_custom_call.1']
    #allocation5 [shape = 'u8[8192]{0}', space=vmem, size = 0x2000, scoped, tag = 'input window, operand 2']
    #allocation6 [shape = 's32[2]{0}', space=sflag, size = 0x8, scoped, tag = 'scoped memory for tpu_custom_call.1']
    #allocation7 [shape = 'u8[65536]{0}', space=vmem, size = 0x10000, scoped, tag = 'output window, operand 0']
    %19 = vsyncpa [#allocation3], 0
    %s20 = scalar_lea.sflag [#allocation3], 1
    %21 = vsyncpa %s20, 0
    %22 = vsyncpa [#allocation6], 0
    %s23 = scalar_lea.sflag [#allocation6], 1
    %24 = vsyncpa %s23, 0
    %25 = vsyncpa [#allocation4], 0
    %s26 = scalar_lea.sflag [#allocation4], 1
    %27 = vsyncpa %s26, 0
    loop: start=0, step=1, limit=4
    $region2: #{tpu_custom_call.1} parent=1 // loop_pre_header
      _
    $region3: #{tpu_custom_call.1} parent=1 // loop_header
      %s29 = sphi 0, %s33
      %p30 = scmp.ge.s32.totalorder %s29, 4
      %s36 = sphi 0, %s48
      %s37 = sphi 0, %s44
      %s38 = sphi 0, %s36
      %s39 = sphi 0, %s37
      %s40 = sphi 0, %s38
      %s41 = sphi 0, %s39
      %s61 = sphi 0, %s63
      %s64 = sphi 0, %s61
      %s65 = sphi 0, %s64
      %s81 = sphi 0, %s65
      %s89 = sphi 0, %s91
      %s92 = sphi 0, %s89
      %s93 = sphi 0, %s92
      %s109 = sphi 0, %s93
      %s125 = sphi 0, %s127
      %s128 = sphi 0, %s125
      %s129 = sphi 0, %s128
      %s145 = sphi 0, %s129
      %s149 = sphi 0, %s149
      %s151 = sphi 0, %s149
      %s152 = sphi 0, %s151
      %s166 = sphi 0, %s152
      %s170 = sphi 0, %s170
      %s172 = sphi 0, %s170
      %s173 = sphi 0, %s172
      %s187 = sphi 0, %s173
      %s191 = sphi 0, %s191
      %s193 = sphi 0, %s191
      %s194 = sphi 0, %s193
      %s208 = sphi 0, %s194
      %s212 = sphi 0, %s212
      %s214 = sphi 0, %s212
      %s215 = sphi 0, %s214
      %s229 = sphi 0, %s215
      %s233 = sphi 0, %s233
      %s235 = sphi 0, %s233
      %s236 = sphi 0, %s235
      %s250 = sphi 0, %s236
      %s254 = sphi 0, %s254
      %s256 = sphi 0, %s254
      %s257 = sphi 0, %s256
      %s271 = sphi 0, %s257
      %s275 = sphi 0, %s275
      %s277 = sphi 0, %s275
      %s278 = sphi 0, %s277
      %s292 = sphi 0, %s278
      %s296 = sphi 0, %s296
      %s298 = sphi 0, %s296
      %s299 = sphi 0, %s298
      %s313 = sphi 0, %s299
      %s317 = sphi 0, %s317
      %s319 = sphi 0, %s317
      %s320 = sphi 0, %s319
      %s334 = sphi 0, %s320
      %s338 = sphi 0, %s338
      %s340 = sphi 0, %s338
      %s341 = sphi 0, %s340
      %s355 = sphi 0, %s341
      %s359 = sphi 0, %s359
      %s361 = sphi 0, %s359
      %s362 = sphi 0, %s361
      %s376 = sphi 0, %s362
      %s384 = sphi 0, %s386
      %s387 = sphi 0, %s384
      %s388 = sphi 0, %s387
      %s404 = sphi 0, %s388
    $region4: #{tpu_custom_call.1} parent=1 // loop_header_branch
      %32 = sbr.rel (%p30) target = $region8
    $region5: #{tpu_custom_call.1} parent=1 // loop_body
      %s34 = ssub.s32 %s29, 1
      %s35 = ssub.s32 %s29, 2
      %s42 = sadd.s32 1, %s37
      %p43 = scmp.ge.s32.totalorder %s42, 1
      %s44 = scalar_select %p43, 0, %s42
      %s45 = sadd.s32 1, %s36
      %s46 = scalar_select %p43, %s45, %s36
      %p47 = scmp.ge.s32.totalorder %s46, 2
      %s48 = scalar_select %p47, 0, %s46
      %s49 = smul.u32 %s37, 8
      %s50 = ssub.s32 %s49, 1
      %p51 = scmp.gt.s32.totalorder %s50, 0
      %s52 = scalar_select %p51, %s50, 0
      %s53 = smul.u32 %s44, 8
      %s54 = ssub.s32 %s53, 1
      %p55 = scmp.gt.s32.totalorder %s54, 0
      %s56 = scalar_select %p55, %s54, 0
      %s57 = ssub.s32 %s36, %s48
      %s58 = ssub.s32 %s52, %s56
      %s59 = sor.u32 %s57, %s58
      %p60 = scmp.eq.s32.totalorder %s59, 0
      %s62 = sadd.s32 %s61, 1
      %s63 = scalar_select %p60, %s61, %s62
      %p66 = pneg %p60
      %p67 = scmp.eq.s32.totalorder %s29, 1
      %p68 = por %p66, %p67
      %p69 = scmp.ne.s32.totalorder %s61, %s64
      %p70 = scmp.eq.s32.totalorder %s29, 0
      %p71 = por %p69, %p70
      %p72 = scmp.ne.s32.totalorder %s61, %s64
      %p73 = scmp.eq.s32.totalorder %s34, 1
      %p74 = por %p72, %p73
      %p75 = scmp.ne.s32.totalorder %s64, %s65
      %p76 = scmp.eq.s32.totalorder %s34, 0
      %p77 = por %p75, %p76
      %p78 = scmp.ne.s32.totalorder %s64, %s65
      %p79 = scmp.eq.s32.totalorder %s35, 1
      %p80 = por %p78, %p79
      %p82 = scmp.ne.s32.totalorder %s65, %s81
      %p83 = scmp.eq.s32.totalorder %s35, 0
      %p84 = por %p82, %p83
      %s85 = ssub.s32 %s36, %s48
      %s86 = ssub.s32 %s37, %s44
      %s87 = sor.u32 %s85, %s86
      %p88 = scmp.eq.s32.totalorder %s87, 0
      %s90 = sadd.s32 %s89, 1
      %s91 = scalar_select %p88, %s89, %s90
      %p94 = pneg %p88
      %p95 = scmp.eq.s32.totalorder %s29, 1
      %p96 = por %p94, %p95
      %p97 = scmp.ne.s32.totalorder %s89, %s92
      %p98 = scmp.eq.s32.totalorder %s29, 0
      %p99 = por %p97, %p98
      %p100 = scmp.ne.s32.totalorder %s89, %s92
      %p101 = scmp.eq.s32.totalorder %s34, 1
      %p102 = por %p100, %p101
      %p103 = scmp.ne.s32.totalorder %s92, %s93
      %p104 = scmp.eq.s32.totalorder %s34, 0
      %p105 = por %p103, %p104
      %p106 = scmp.ne.s32.totalorder %s92, %s93
      %p107 = scmp.eq.s32.totalorder %s35, 1
      %p108 = por %p106, %p107
      %p110 = scmp.ne.s32.totalorder %s93, %s109
      %p111 = scmp.eq.s32.totalorder %s35, 0
      %p112 = por %p110, %p111
      %s113 = sadd.s32 %s37, 1
      %s114 = smul.u32 %s113, 8
      %p115 = scmp.lt.s32.totalorder %s114, 7
      %s116 = scalar_select %p115, %s114, 7
      %s117 = sadd.s32 %s44, 1
      %s118 = smul.u32 %s117, 8
      %p119 = scmp.lt.s32.totalorder %s118, 7
      %s120 = scalar_select %p119, %s118, 7
      %s121 = ssub.s32 %s36, %s48
      %s122 = ssub.s32 %s116, %s120
      %s123 = sor.u32 %s121, %s122
      %p124 = scmp.eq.s32.totalorder %s123, 0
      %s126 = sadd.s32 %s125, 1
      %s127 = scalar_select %p124, %s125, %s126
      %p130 = pneg %p124
      %p131 = scmp.eq.s32.totalorder %s29, 1
      %p132 = por %p130, %p131
      %p133 = scmp.ne.s32.totalorder %s125, %s128
      %p134 = scmp.eq.s32.totalorder %s29, 0
      %p135 = por %p133, %p134
      %p136 = scmp.ne.s32.totalorder %s125, %s128
      %p137 = scmp.eq.s32.totalorder %s34, 1
      %p138 = por %p136, %p137
      %p139 = scmp.ne.s32.totalorder %s128, %s129
      %p140 = scmp.eq.s32.totalorder %s34, 0
      %p141 = por %p139, %p140
      %p142 = scmp.ne.s32.totalorder %s128, %s129
      %p143 = scmp.eq.s32.totalorder %s35, 1
      %p144 = por %p142, %p143
      %p146 = scmp.ne.s32.totalorder %s129, %s145
      %p147 = scmp.eq.s32.totalorder %s35, 0
      %p148 = por %p146, %p147
      %s150 = sadd.s32 %s149, 1
      %p153 = scmp.eq.s32.totalorder %s29, 1
      %p154 = scmp.ne.s32.totalorder %s149, %s151
      %p155 = scmp.eq.s32.totalorder %s29, 0
      %p156 = por %p154, %p155
      %p157 = scmp.ne.s32.totalorder %s149, %s151
      %p158 = scmp.eq.s32.totalorder %s34, 1
      %p159 = por %p157, %p158
      %p160 = scmp.ne.s32.totalorder %s151, %s152
      %p161 = scmp.eq.s32.totalorder %s34, 0
      %p162 = por %p160, %p161
      %p163 = scmp.ne.s32.totalorder %s151, %s152
      %p164 = scmp.eq.s32.totalorder %s35, 1
      %p165 = por %p163, %p164
      %p167 = scmp.ne.s32.totalorder %s152, %s166
      %p168 = scmp.eq.s32.totalorder %s35, 0
      %p169 = por %p167, %p168
      %s171 = sadd.s32 %s170, 1
      %p174 = scmp.eq.s32.totalorder %s29, 1
      %p175 = scmp.ne.s32.totalorder %s170, %s172
      %p176 = scmp.eq.s32.totalorder %s29, 0
      %p177 = por %p175, %p176
      %p178 = scmp.ne.s32.totalorder %s170, %s172
      %p179 = scmp.eq.s32.totalorder %s34, 1
      %p180 = por %p178, %p179
      %p181 = scmp.ne.s32.totalorder %s172, %s173
      %p182 = scmp.eq.s32.totalorder %s34, 0
      %p183 = por %p181, %p182
      %p184 = scmp.ne.s32.totalorder %s172, %s173
      %p185 = scmp.eq.s32.totalorder %s35, 1
      %p186 = por %p184, %p185
      %p188 = scmp.ne.s32.totalorder %s173, %s187
      %p189 = scmp.eq.s32.totalorder %s35, 0
      %p190 = por %p188, %p189
      %s192 = sadd.s32 %s191, 1
      %p195 = scmp.eq.s32.totalorder %s29, 1
      %p196 = scmp.ne.s32.totalorder %s191, %s193
      %p197 = scmp.eq.s32.totalorder %s29, 0
      %p198 = por %p196, %p197
      %p199 = scmp.ne.s32.totalorder %s191, %s193
      %p200 = scmp.eq.s32.totalorder %s34, 1
      %p201 = por %p199, %p200
      %p202 = scmp.ne.s32.totalorder %s193, %s194
      %p203 = scmp.eq.s32.totalorder %s34, 0
      %p204 = por %p202, %p203
      %p205 = scmp.ne.s32.totalorder %s193, %s194
      %p206 = scmp.eq.s32.totalorder %s35, 1
      %p207 = por %p205, %p206
      %p209 = scmp.ne.s32.totalorder %s194, %s208
      %p210 = scmp.eq.s32.totalorder %s35, 0
      %p211 = por %p209, %p210
      %s213 = sadd.s32 %s212, 1
      %p216 = scmp.eq.s32.totalorder %s29, 1
      %p217 = scmp.ne.s32.totalorder %s212, %s214
      %p218 = scmp.eq.s32.totalorder %s29, 0
      %p219 = por %p217, %p218
      %p220 = scmp.ne.s32.totalorder %s212, %s214
      %p221 = scmp.eq.s32.totalorder %s34, 1
      %p222 = por %p220, %p221
      %p223 = scmp.ne.s32.totalorder %s214, %s215
      %p224 = scmp.eq.s32.totalorder %s34, 0
      %p225 = por %p223, %p224
      %p226 = scmp.ne.s32.totalorder %s214, %s215
      %p227 = scmp.eq.s32.totalorder %s35, 1
      %p228 = por %p226, %p227
      %p230 = scmp.ne.s32.totalorder %s215, %s229
      %p231 = scmp.eq.s32.totalorder %s35, 0
      %p232 = por %p230, %p231
      %s234 = sadd.s32 %s233, 1
      %p237 = scmp.eq.s32.totalorder %s29, 1
      %p238 = scmp.ne.s32.totalorder %s233, %s235
      %p239 = scmp.eq.s32.totalorder %s29, 0
      %p240 = por %p238, %p239
      %p241 = scmp.ne.s32.totalorder %s233, %s235
      %p242 = scmp.eq.s32.totalorder %s34, 1
      %p243 = por %p241, %p242
      %p244 = scmp.ne.s32.totalorder %s235, %s236
      %p245 = scmp.eq.s32.totalorder %s34, 0
      %p246 = por %p244, %p245
      %p247 = scmp.ne.s32.totalorder %s235, %s236
      %p248 = scmp.eq.s32.totalorder %s35, 1
      %p249 = por %p247, %p248
      %p251 = scmp.ne.s32.totalorder %s236, %s250
      %p252 = scmp.eq.s32.totalorder %s35, 0
      %p253 = por %p251, %p252
      %s255 = sadd.s32 %s254, 1
      %p258 = scmp.eq.s32.totalorder %s29, 1
      %p259 = scmp.ne.s32.totalorder %s254, %s256
      %p260 = scmp.eq.s32.totalorder %s29, 0
      %p261 = por %p259, %p260
      %p262 = scmp.ne.s32.totalorder %s254, %s256
      %p263 = scmp.eq.s32.totalorder %s34, 1
      %p264 = por %p262, %p263
      %p265 = scmp.ne.s32.totalorder %s256, %s257
      %p266 = scmp.eq.s32.totalorder %s34, 0
      %p267 = por %p265, %p266
      %p268 = scmp.ne.s32.totalorder %s256, %s257
      %p269 = scmp.eq.s32.totalorder %s35, 1
      %p270 = por %p268, %p269
      %p272 = scmp.ne.s32.totalorder %s257, %s271
      %p273 = scmp.eq.s32.totalorder %s35, 0
      %p274 = por %p272, %p273
      %s276 = sadd.s32 %s275, 1
      %p279 = scmp.eq.s32.totalorder %s29, 1
      %p280 = scmp.ne.s32.totalorder %s275, %s277
      %p281 = scmp.eq.s32.totalorder %s29, 0
      %p282 = por %p280, %p281
      %p283 = scmp.ne.s32.totalorder %s275, %s277
      %p284 = scmp.eq.s32.totalorder %s34, 1
      %p285 = por %p283, %p284
      %p286 = scmp.ne.s32.totalorder %s277, %s278
      %p287 = scmp.eq.s32.totalorder %s34, 0
      %p288 = por %p286, %p287
      %p289 = scmp.ne.s32.totalorder %s277, %s278
      %p290 = scmp.eq.s32.totalorder %s35, 1
      %p291 = por %p289, %p290
      %p293 = scmp.ne.s32.totalorder %s278, %s292
      %p294 = scmp.eq.s32.totalorder %s35, 0
      %p295 = por %p293, %p294
      %s297 = sadd.s32 %s296, 1
      %p300 = scmp.eq.s32.totalorder %s29, 1
      %p301 = scmp.ne.s32.totalorder %s296, %s298
      %p302 = scmp.eq.s32.totalorder %s29, 0
      %p303 = por %p301, %p302
      %p304 = scmp.ne.s32.totalorder %s296, %s298
      %p305 = scmp.eq.s32.totalorder %s34, 1
      %p306 = por %p304, %p305
      %p307 = scmp.ne.s32.totalorder %s298, %s299
      %p308 = scmp.eq.s32.totalorder %s34, 0
      %p309 = por %p307, %p308
      %p310 = scmp.ne.s32.totalorder %s298, %s299
      %p311 = scmp.eq.s32.totalorder %s35, 1
      %p312 = por %p310, %p311
      %p314 = scmp.ne.s32.totalorder %s299, %s313
      %p315 = scmp.eq.s32.totalorder %s35, 0
      %p316 = por %p314, %p315
      %s318 = sadd.s32 %s317, 1
      %p321 = scmp.eq.s32.totalorder %s29, 1
      %p322 = scmp.ne.s32.totalorder %s317, %s319
      %p323 = scmp.eq.s32.totalorder %s29, 0
      %p324 = por %p322, %p323
      %p325 = scmp.ne.s32.totalorder %s317, %s319
      %p326 = scmp.eq.s32.totalorder %s34, 1
      %p327 = por %p325, %p326
      %p328 = scmp.ne.s32.totalorder %s319, %s320
      %p329 = scmp.eq.s32.totalorder %s34, 0
      %p330 = por %p328, %p329
      %p331 = scmp.ne.s32.totalorder %s319, %s320
      %p332 = scmp.eq.s32.totalorder %s35, 1
      %p333 = por %p331, %p332
      %p335 = scmp.ne.s32.totalorder %s320, %s334
      %p336 = scmp.eq.s32.totalorder %s35, 0
      %p337 = por %p335, %p336
      %s339 = sadd.s32 %s338, 1
      %p342 = scmp.eq.s32.totalorder %s29, 1
      %p343 = scmp.ne.s32.totalorder %s338, %s340
      %p344 = scmp.eq.s32.totalorder %s29, 0
      %p345 = por %p343, %p344
      %p346 = scmp.ne.s32.totalorder %s338, %s340
      %p347 = scmp.eq.s32.totalorder %s34, 1
      %p348 = por %p346, %p347
      %p349 = scmp.ne.s32.totalorder %s340, %s341
      %p350 = scmp.eq.s32.totalorder %s34, 0
      %p351 = por %p349, %p350
      %p352 = scmp.ne.s32.totalorder %s340, %s341
      %p353 = scmp.eq.s32.totalorder %s35, 1
      %p354 = por %p352, %p353
      %p356 = scmp.ne.s32.totalorder %s341, %s355
      %p357 = scmp.eq.s32.totalorder %s35, 0
      %p358 = por %p356, %p357
      %s360 = sadd.s32 %s359, 1
      %p363 = scmp.eq.s32.totalorder %s29, 1
      %p364 = scmp.ne.s32.totalorder %s359, %s361
      %p365 = scmp.eq.s32.totalorder %s29, 0
      %p366 = por %p364, %p365
      %p367 = scmp.ne.s32.totalorder %s359, %s361
      %p368 = scmp.eq.s32.totalorder %s34, 1
      %p369 = por %p367, %p368
      %p370 = scmp.ne.s32.totalorder %s361, %s362
      %p371 = scmp.eq.s32.totalorder %s34, 0
      %p372 = por %p370, %p371
      %p373 = scmp.ne.s32.totalorder %s361, %s362
      %p374 = scmp.eq.s32.totalorder %s35, 1
      %p375 = por %p373, %p374
      %p377 = scmp.ne.s32.totalorder %s362, %s376
      %p378 = scmp.eq.s32.totalorder %s35, 0
      %p379 = por %p377, %p378
      %s380 = ssub.s32 %s36, %s48
      %s381 = ssub.s32 %s37, %s44
      %s382 = sor.u32 %s380, %s381
      %p383 = scmp.eq.s32.totalorder %s382, 0
      %s385 = sadd.s32 %s384, 1
      %s386 = scalar_select %p383, %s384, %s385
      %p389 = pneg %p383
      %p390 = scmp.eq.s32.totalorder %s29, 1
      %p391 = por %p389, %p390
      %p392 = scmp.ne.s32.totalorder %s384, %s387
      %p393 = scmp.eq.s32.totalorder %s29, 0
      %p394 = por %p392, %p393
      %p395 = scmp.ne.s32.totalorder %s384, %s387
      %p396 = scmp.eq.s32.totalorder %s34, 1
      %p397 = por %p395, %p396
      %p398 = scmp.ne.s32.totalorder %s387, %s388
      %p399 = scmp.eq.s32.totalorder %s34, 0
      %p400 = por %p398, %p399
      %p401 = scmp.ne.s32.totalorder %s387, %s388
      %p402 = scmp.eq.s32.totalorder %s35, 1
      %p403 = por %p401, %p402
      %p405 = scmp.ne.s32.totalorder %s388, %s404
      %p406 = scmp.eq.s32.totalorder %s35, 0
      %p407 = por %p405, %p406
      %p408 = scmp.le.s32.totalorder 1, %s29
      %p409 = scmp.lt.s32.totalorder %s29, 3
      %p410 = pnand %p408, %p409
      %p411 = pneg %p410
      // Predicated region
      $region9: #{tpu_custom_call.1} parent=5 // pred_check
        _
      $region10: #{tpu_custom_call.1} parent=5 // pred_check_branch
        %413 = sbr.rel (%p410) target = $region12
      $region11: #{tpu_custom_call.1} parent=5 // pred_region
        %s414 = ssub.s32 %s29, 1
        // Predicated region
        $region13: #{tpu_custom_call.1} parent=11 // pred_check
          %p415 = pneg %p162
        $region14: #{tpu_custom_call.1} parent=11 // pred_check_branch
          %417 = sbr.rel (%p415) target = $region16
        $region15: #{tpu_custom_call.1} parent=11 // pred_region
          _
        $region16: #{tpu_custom_call.1} parent=11 // pred_fallthru
          _
        // Predicated region
        $region17: #{tpu_custom_call.1} parent=11 // pred_check
          %p418 = pneg %p183
        $region18: #{tpu_custom_call.1} parent=11 // pred_check_branch
          %420 = sbr.rel (%p418) target = $region20
        $region19: #{tpu_custom_call.1} parent=11 // pred_region
          _
        $region20: #{tpu_custom_call.1} parent=11 // pred_fallthru
          _
        // Predicated region
        $region21: #{tpu_custom_call.1} parent=11 // pred_check
          %p421 = pneg %p204
        $region22: #{tpu_custom_call.1} parent=11 // pred_check_branch
          %423 = sbr.rel (%p421) target = $region24
        $region23: #{tpu_custom_call.1} parent=11 // pred_region
          _
        $region24: #{tpu_custom_call.1} parent=11 // pred_fallthru
          _
        // Predicated region
        $region25: #{tpu_custom_call.1} parent=11 // pred_check
          %p424 = pneg %p225
        $region26: #{tpu_custom_call.1} parent=11 // pred_check_branch
          %426 = sbr.rel (%p424) target = $region28
        $region27: #{tpu_custom_call.1} parent=11 // pred_region
          _
        $region28: #{tpu_custom_call.1} parent=11 // pred_fallthru
          _
        // Predicated region
        $region29: #{tpu_custom_call.1} parent=11 // pred_check
          %p427 = pneg %p246
        $region30: #{tpu_custom_call.1} parent=11 // pred_check_branch
          %429 = sbr.rel (%p427) target = $region32
        $region31: #{tpu_custom_call.1} parent=11 // pred_region
          _
        $region32: #{tpu_custom_call.1} parent=11 // pred_fallthru
          _
        // Predicated region
        $region33: #{tpu_custom_call.1} parent=11 // pred_check
          %p430 = pneg %p267
        $region34: #{tpu_custom_call.1} parent=11 // pred_check_branch
          %432 = sbr.rel (%p430) target = $region36
        $region35: #{tpu_custom_call.1} parent=11 // pred_region
          _
        $region36: #{tpu_custom_call.1} parent=11 // pred_fallthru
          _
        // Predicated region
        $region37: #{tpu_custom_call.1} parent=11 // pred_check
          %p433 = pneg %p288
        $region38: #{tpu_custom_call.1} parent=11 // pred_check_branch
          %435 = sbr.rel (%p433) target = $region40
        $region39: #{tpu_custom_call.1} parent=11 // pred_region
          _
        $region40: #{tpu_custom_call.1} parent=11 // pred_fallthru
          _
        // Predicated region
        $region41: #{tpu_custom_call.1} parent=11 // pred_check
          %p436 = pneg %p309
        $region42: #{tpu_custom_call.1} parent=11 // pred_check_branch
          %438 = sbr.rel (%p436) target = $region44
        $region43: #{tpu_custom_call.1} parent=11 // pred_region
          _
        $region44: #{tpu_custom_call.1} parent=11 // pred_fallthru
          _
        // Predicated region
        $region45: #{tpu_custom_call.1} parent=11 // pred_check
          %p439 = pneg %p330
        $region46: #{tpu_custom_call.1} parent=11 // pred_check_branch
          %441 = sbr.rel (%p439) target = $region48
        $region47: #{tpu_custom_call.1} parent=11 // pred_region
          _
        $region48: #{tpu_custom_call.1} parent=11 // pred_fallthru
          _
        // Predicated region
        $region49: #{tpu_custom_call.1} parent=11 // pred_check
          %p442 = pneg %p351
        $region50: #{tpu_custom_call.1} parent=11 // pred_check_branch
          %444 = sbr.rel (%p442) target = $region52
        $region51: #{tpu_custom_call.1} parent=11 // pred_region
          _
        $region52: #{tpu_custom_call.1} parent=11 // pred_fallthru
          _
        // Predicated region
        $region53: #{tpu_custom_call.1} parent=11 // pred_check
          %p445 = pneg %p372
        $region54: #{tpu_custom_call.1} parent=11 // pred_check_branch
          %447 = sbr.rel (%p445) target = $region56
        $region55: #{tpu_custom_call.1} parent=11 // pred_region
          _
        $region56: #{tpu_custom_call.1} parent=11 // pred_fallthru
          _
      $region12: #{tpu_custom_call.1} parent=5 // pred_fallthru
        _
      %p448 = scmp.lt.s32.totalorder %s29, 2
      // Predicated region
      $region57: #{tpu_custom_call.1} parent=5 // pred_check
        %p449 = pneg %p448
      $region58: #{tpu_custom_call.1} parent=5 // pred_check_branch
        %451 = sbr.rel (%p449) target = $region60
      $region59: #{tpu_custom_call.1} parent=5 // pred_region
        // Predicated region
        $region61: #{tpu_custom_call.1} parent=59 // pred_check
          %p452 = pneg %p71
        $region62: #{tpu_custom_call.1} parent=59 // pred_check_branch
          %454 = sbr.rel (%p452) target = $region64
        $region63: #{tpu_custom_call.1} parent=59 // pred_region
          %s455 = smul.u32 %s37, 8
          %s456 = ssub.s32 %s455, 1
          %p457 = scmp.gt.s32.totalorder %s456, 0
          %s458 = scalar_select %p457, %s456, 0
          %s459 = smul.u32 2, %s458
          %p460 = scmp.lt.s32.totalorder %s36, 1
          %s461 = scalar_select %p460, %s36, 1
          %p462 = scmp.lt.s32.totalorder %s459, 15
          %s463 = scalar_select %p462, %s459, 15
          %s464 = smul.addr %s461, 16
          %s465 = sadd.s32 %s463, %s464
          %s466 = smul.addr %s465, 4
          %s467 = scalar_lea.vmem %s0, %s466
          %s468 = smul.u32 %s37, 8
          %s469 = ssub.s32 %s468, 1
          %p470 = scmp.gt.s32.totalorder %s469, 0
          %s471 = scalar_select %p470, %s469, 0
          %s472 = smul.u32 2, %s471
        $region64: #{tpu_custom_call.1} parent=59 // pred_fallthru
          _
        // Predicated region
        $region65: #{tpu_custom_call.1} parent=59 // pred_check
          %p473 = pneg %p99
        $region66: #{tpu_custom_call.1} parent=59 // pred_check_branch
          %475 = sbr.rel (%p473) target = $region68
        $region67: #{tpu_custom_call.1} parent=59 // pred_region
          %s476 = sand.u32 %s89, 1
          %s477 = scalar_lea.sflag [#allocation3], %s476
          %s478 = sand.u32 %s89, 1
          %s479 = smul.addr %s478, 64
          %s480 = scalar_lea.vmem [#allocation2], %s479
          %s481 = smul.u32 16, %s37
          %s483 = ssub.s32 1024, 1024
          %484 = vsyncadd %s477, %s483
          %s485 = smul.addr %s36, 16
          %s486 = sadd.s32 %s481, %s485
          %s487 = smul.addr %s486, 64
          %s488 = scalar_lea.hbm %s1, %s487
          %s489 = sshll.u32 %s480, 4
          %s490 = int_to_ptr.vmem [resolvable:$true] %s489
          %495 = dma.hbm_to_vmem [thread:$0]  %s488, 1024, %s490, %s477, 64, 64, 4
        $region68: #{tpu_custom_call.1} parent=59 // pred_fallthru
          _
        // Predicated region
        $region69: #{tpu_custom_call.1} parent=59 // pred_check
          %p496 = pneg %p135
        $region70: #{tpu_custom_call.1} parent=59 // pred_check_branch
          %498 = sbr.rel (%p496) target = $region72
        $region71: #{tpu_custom_call.1} parent=59 // pred_region
          %s499 = sand.u32 %s125, 1
          %s500 = scalar_lea.sflag [#allocation6], %s499
          %s501 = sand.u32 %s125, 1
          %s502 = smul.addr %s501, 8
          %s503 = scalar_lea.vmem [#allocation5], %s502
          %s504 = sadd.s32 %s37, 1
          %s505 = smul.u32 %s504, 8
          %p506 = scmp.lt.s32.totalorder %s505, 7
          %s507 = scalar_select %p506, %s505, 7
          %s508 = smul.u32 2, %s507
          %s510 = ssub.s32 128, 128
          %511 = vsyncadd %s500, %s510
          %s512 = smul.addr %s36, 16
          %s513 = sadd.s32 %s508, %s512
          %s514 = smul.addr %s513, 64
          %s515 = scalar_lea.hbm %s2, %s514
          %s516 = sshll.u32 %s503, 4
          %s517 = int_to_ptr.vmem [resolvable:$true] %s516
          %522 = dma.hbm_to_vmem [thread:$0]  %s515, 128, %s517, %s500, 64, 64, 4
        $region72: #{tpu_custom_call.1} parent=59 // pred_fallthru
          _
      $region60: #{tpu_custom_call.1} parent=5 // pred_fallthru
        _
      %p523 = scmp.le.s32.totalorder 1, %s29
      %p524 = scmp.lt.s32.totalorder %s29, 3
      %p525 = pnand %p523, %p524
      %p526 = pneg %p525
      // Predicated region
      $region73: #{tpu_custom_call.1} parent=5 // pred_check
        _
      $region74: #{tpu_custom_call.1} parent=5 // pred_check_branch
        %528 = sbr.rel (%p525) target = $region76
      $region75: #{tpu_custom_call.1} parent=5 // pred_region
        %s529 = ssub.s32 %s29, 1
        %s530 = sand.u32 %s92, 1
        %s531 = scalar_lea.sflag [#allocation3], %s530
        %s532 = sand.u32 %s92, 1
        %s533 = smul.addr %s532, 64
        %s534 = scalar_lea.vmem [#allocation2], %s533
        // Predicated region
        $region77: #{tpu_custom_call.1} parent=75 // pred_check
          %p535 = pneg %p105
        $region78: #{tpu_custom_call.1} parent=75 // pred_check_branch
          %537 = sbr.rel (%p535) target = $region80
        $region79: #{tpu_custom_call.1} parent=75 // pred_region
          %538 = dma.done %s531, 1024
        $region80: #{tpu_custom_call.1} parent=75 // pred_fallthru
          _
        %s539 = sand.u32 %s128, 1
        %s540 = scalar_lea.sflag [#allocation6], %s539
        %s541 = sand.u32 %s128, 1
        %s542 = smul.addr %s541, 8
        %s543 = scalar_lea.vmem [#allocation5], %s542
        // Predicated region
        $region81: #{tpu_custom_call.1} parent=75 // pred_check
          %p544 = pneg %p141
        $region82: #{tpu_custom_call.1} parent=75 // pred_check_branch
          %546 = sbr.rel (%p544) target = $region84
        $region83: #{tpu_custom_call.1} parent=75 // pred_region
          %547 = dma.done %s540, 128
        $region84: #{tpu_custom_call.1} parent=75 // pred_fallthru
          _
        %s548 = smul.u32 %s39, 8
        %s549 = ssub.s32 %s548, 1
        %p550 = scmp.gt.s32.totalorder %s549, 0
        %s551 = scalar_select %p550, %s549, 0
        %s552 = smul.u32 2, %s551
        %p553 = scmp.lt.s32.totalorder %s38, 1
        %s554 = scalar_select %p553, %s38, 1
        %p555 = scmp.lt.s32.totalorder %s552, 15
        %s556 = scalar_select %p555, %s552, 15
        %s557 = smul.addr %s554, 16
        %s558 = sadd.s32 %s556, %s557
        %s559 = smul.addr %s558, 4
        %s560 = scalar_lea.vmem %s0, %s559
        %p561 = pneg %p77
        %p562 = pneg %p74
        %s563 = sand.u32 %s92, 1
        %s564 = scalar_lea.sflag [#allocation3], %s563
        %s565 = sand.u32 %s92, 1
        %s566 = smul.addr %s565, 64
        %s567 = scalar_lea.vmem [#allocation2], %s566
        %p568 = pneg %p105
        %p569 = pneg %p102
        %s570 = sand.u32 %s128, 1
        %s571 = scalar_lea.sflag [#allocation6], %s570
        %s572 = sand.u32 %s128, 1
        %s573 = smul.addr %s572, 8
        %s574 = scalar_lea.vmem [#allocation5], %s573
        %p575 = pneg %p141
        %p576 = pneg %p138
        %p577 = pneg %p162
        %p578 = pneg %p159
        %p579 = pneg %p183
        %p580 = pneg %p180
        %p581 = pneg %p204
        %p582 = pneg %p201
        %p583 = pneg %p225
        %p584 = pneg %p222
        %p585 = pneg %p246
        %p586 = pneg %p243
        %p587 = pneg %p267
        %p588 = pneg %p264
        %p589 = pneg %p288
        %p590 = pneg %p285
        %p591 = pneg %p309
        %p592 = pneg %p306
        %p593 = pneg %p330
        %p594 = pneg %p327
        %p595 = pneg %p351
        %p596 = pneg %p348
        %p597 = pneg %p372
        %p598 = pneg %p369
        %p599 = pneg %p400
        %p600 = pneg %p397
        %s601 = sand.u32 %s387, 1
        %s602 = scalar_lea.sflag [#allocation4], %s601
        %s603 = sand.u32 %s387, 1
        %s604 = smul.addr %s603, 64
        %s605 = scalar_lea.vmem [#allocation7], %s604
        %s606 = smul.u32 %s39, 8
        %s607 = ssub.s32 %s606, 1
        %p608 = scmp.gt.s32.totalorder %s607, 0
        %s609 = scalar_select %p608, %s607, 0
        %s610 = smul.u32 2, %s609
        %p611 = scmp.lt.s32.totalorder %s38, 1
        %s612 = scalar_select %p611, %s38, 1
        %p613 = scmp.lt.s32.totalorder %s610, 15
        %s614 = scalar_select %p613, %s610, 15
        %s615 = smul.addr %s612, 16
        %s616 = sadd.s32 %s614, %s615
        %s617 = smul.addr %s616, 4
        %s618 = scalar_lea.vmem %s0, %s617
        %s619 = smul.u32 %s39, 8
        %s620 = ssub.s32 %s619, 1
        %p621 = scmp.gt.s32.totalorder %s620, 0
        %s622 = scalar_select %p621, %s620, 0
        %s623 = smul.u32 2, %s622
        %s624 = smul.u32 16, %s39
        %s625 = sadd.s32 %s39, 1
        %s626 = smul.u32 %s625, 8
        %p627 = scmp.lt.s32.totalorder %s626, 7
        %s628 = scalar_select %p627, %s626, 7
        %s629 = smul.u32 2, %s628
        %s630 = smul.u32 16, %s39
        %v631 = vld [vmem:[%s534] sm:$0xf]
        %v632 = vld [vmem:[%s534 + $0x4] sm:$0xf]
        %v633 = vld [vmem:[%s534 + $0x8] sm:$0xf]
        %v634 = vld [vmem:[%s534 + $0xc] sm:$0xf]
        %v635 = vld [vmem:[%s534 + $0x10] sm:$0xf]
        %v636 = vld [vmem:[%s534 + $0x14] sm:$0xf]
        %v637 = vld [vmem:[%s534 + $0x18] sm:$0xf]
        %v638 = vld [vmem:[%s534 + $0x1c] sm:$0xf]
        %v639 = vld [vmem:[%s534 + $0x20] sm:$0xf]
        %v640 = vld [vmem:[%s534 + $0x24] sm:$0xf]
        %v641 = vld [vmem:[%s534 + $0x28] sm:$0xf]
        %v642 = vld [vmem:[%s534 + $0x2c] sm:$0xf]
        %v643 = vld [vmem:[%s534 + $0x30] sm:$0xf]
        %v644 = vld [vmem:[%s534 + $0x34] sm:$0xf]
        %v645 = vld [vmem:[%s534 + $0x38] sm:$0xf]
        %v646 = vld [vmem:[%s534 + $0x3c] sm:$0xf]
        %v647 = vld [vmem:[%s618] sm:$0xf]
        %v648 = vld [vmem:[%s618 + $0x4] sm:$0xf]
        %v649 = vld [vmem:[%s543] sm:$0xf]
        %v650 = vld [vmem:[%s543 + $0x4] sm:$0xf]
        %v671 = vrot.slane %v647, 1
        %v672 = vrot.slane %v648, 1
        %v673 = vrot.slane %v631, 1
        %v674 = vrot.slane %v632, 1
        %v675 = vrot.slane %v633, 1
        %v676 = vrot.slane %v634, 1
        %v677 = vrot.slane %v635, 1
        %v678 = vrot.slane %v636, 1
        %v679 = vrot.slane %v637, 1
        %v680 = vrot.slane %v638, 1
        %v681 = vrot.slane %v639, 1
        %v682 = vrot.slane %v640, 1
        %v683 = vrot.slane %v641, 1
        %v684 = vrot.slane %v642, 1
        %v685 = vrot.slane %v643, 1
        %v686 = vrot.slane %v644, 1
        %v687 = vrot.slane %v645, 1
        %v688 = vrot.slane %v646, 1
        %v689 = vrot.slane %v649, 1
        %v690 = vrot.slane %v650, 1
        %v711 = vadd.f32 %v647, %v671
        %v712 = vadd.f32 %v648, %v672
        %v713 = vadd.f32 %v631, %v673
        %v714 = vadd.f32 %v632, %v674
        %v715 = vadd.f32 %v633, %v675
        %v716 = vadd.f32 %v634, %v676
        %v717 = vadd.f32 %v635, %v677
        %v718 = vadd.f32 %v636, %v678
        %v719 = vadd.f32 %v637, %v679
        %v720 = vadd.f32 %v638, %v680
        %v721 = vadd.f32 %v639, %v681
        %v722 = vadd.f32 %v640, %v682
        %v723 = vadd.f32 %v641, %v683
        %v724 = vadd.f32 %v642, %v684
        %v725 = vadd.f32 %v643, %v685
        %v726 = vadd.f32 %v644, %v686
        %v727 = vadd.f32 %v645, %v687
        %v728 = vadd.f32 %v646, %v688
        %v729 = vadd.f32 %v649, %v689
        %v730 = vadd.f32 %v650, %v690
        %v731 = vrot.slane %v647, 2
        %v732 = vrot.slane %v648, 2
        %v733 = vrot.slane %v631, 2
        %v734 = vrot.slane %v632, 2
        %v735 = vrot.slane %v633, 2
        %v736 = vrot.slane %v634, 2
        %v737 = vrot.slane %v635, 2
        %v738 = vrot.slane %v636, 2
        %v739 = vrot.slane %v637, 2
        %v740 = vrot.slane %v638, 2
        %v741 = vrot.slane %v639, 2
        %v742 = vrot.slane %v640, 2
        %v743 = vrot.slane %v641, 2
        %v744 = vrot.slane %v642, 2
        %v745 = vrot.slane %v643, 2
        %v746 = vrot.slane %v644, 2
        %v747 = vrot.slane %v645, 2
        %v748 = vrot.slane %v646, 2
        %v749 = vrot.slane %v649, 2
        %v750 = vrot.slane %v650, 2
        %v771 = vadd.f32 %v711, %v731
        %v772 = vadd.f32 %v712, %v732
        %v773 = vadd.f32 %v713, %v733
        %v774 = vadd.f32 %v714, %v734
        %v775 = vadd.f32 %v715, %v735
        %v776 = vadd.f32 %v716, %v736
        %v777 = vadd.f32 %v717, %v737
        %v778 = vadd.f32 %v718, %v738
        %v779 = vadd.f32 %v719, %v739
        %v780 = vadd.f32 %v720, %v740
        %v781 = vadd.f32 %v721, %v741
        %v782 = vadd.f32 %v722, %v742
        %v783 = vadd.f32 %v723, %v743
        %v784 = vadd.f32 %v724, %v744
        %v785 = vadd.f32 %v725, %v745
        %v786 = vadd.f32 %v726, %v746
        %v787 = vadd.f32 %v727, %v747
        %v788 = vadd.f32 %v728, %v748
        %v789 = vadd.f32 %v729, %v749
        %v790 = vadd.f32 %v730, %v750
        %v791 = vrot.slane %v647, 3
        %v792 = vrot.slane %v648, 3
        %v793 = vrot.slane %v631, 3
        %v794 = vrot.slane %v632, 3
        %v795 = vrot.slane %v633, 3
        %v796 = vrot.slane %v634, 3
        %v797 = vrot.slane %v635, 3
        %v798 = vrot.slane %v636, 3
        %v799 = vrot.slane %v637, 3
        %v800 = vrot.slane %v638, 3
        %v801 = vrot.slane %v639, 3
        %v802 = vrot.slane %v640, 3
        %v803 = vrot.slane %v641, 3
        %v804 = vrot.slane %v642, 3
        %v805 = vrot.slane %v643, 3
        %v806 = vrot.slane %v644, 3
        %v807 = vrot.slane %v645, 3
        %v808 = vrot.slane %v646, 3
        %v809 = vrot.slane %v649, 3
        %v810 = vrot.slane %v650, 3
        %v831 = vadd.f32 %v771, %v791
        %v832 = vadd.f32 %v772, %v792
        %v833 = vadd.f32 %v773, %v793
        %v834 = vadd.f32 %v774, %v794
        %v835 = vadd.f32 %v775, %v795
        %v836 = vadd.f32 %v776, %v796
        %v837 = vadd.f32 %v777, %v797
        %v838 = vadd.f32 %v778, %v798
        %v839 = vadd.f32 %v779, %v799
        %v840 = vadd.f32 %v780, %v800
        %v841 = vadd.f32 %v781, %v801
        %v842 = vadd.f32 %v782, %v802
        %v843 = vadd.f32 %v783, %v803
        %v844 = vadd.f32 %v784, %v804
        %v845 = vadd.f32 %v785, %v805
        %v846 = vadd.f32 %v786, %v806
        %v847 = vadd.f32 %v787, %v807
        %v848 = vadd.f32 %v788, %v808
        %v849 = vadd.f32 %v789, %v809
        %v850 = vadd.f32 %v790, %v810
        %v851 = vmul.f32 %v831, 0.25
        %v852 = vmul.f32 %v832, 0.25
        %v853 = vmul.f32 %v833, 0.25
        %v854 = vmul.f32 %v834, 0.25
        %v855 = vmul.f32 %v835, 0.25
        %v856 = vmul.f32 %v836, 0.25
        %v857 = vmul.f32 %v837, 0.25
        %v858 = vmul.f32 %v838, 0.25
        %v859 = vmul.f32 %v839, 0.25
        %v860 = vmul.f32 %v840, 0.25
        %v861 = vmul.f32 %v841, 0.25
        %v862 = vmul.f32 %v842, 0.25
        %v863 = vmul.f32 %v843, 0.25
        %v864 = vmul.f32 %v844, 0.25
        %v865 = vmul.f32 %v845, 0.25
        %v866 = vmul.f32 %v846, 0.25
        %v867 = vmul.f32 %v847, 0.25
        %v868 = vmul.f32 %v848, 0.25
        %v869 = vmul.f32 %v849, 0.25
        %v870 = vmul.f32 %v850, 0.25
        %v871 = vlaneseq
        %v872 = vshrl.u32 %v871, 7
        %v873 = vsub.s32 0, %v872
        %v874 = vrot.slane %v851, %v873
        %v875 = vlaneseq
        %v876 = vshrl.u32 %v875, 7
        %v877 = vsub.s32 0, %v876
        %v878 = vrot.slane %v852, %v877
        %v879 = vlaneseq
        %v880 = vshrl.u32 %v879, 7
        %v881 = vsub.s32 0, %v880
        %v882 = vrot.slane %v853, %v881
        %v883 = vlaneseq
        %v884 = vshrl.u32 %v883, 7
        %v885 = vsub.s32 0, %v884
        %v886 = vrot.slane %v854, %v885
        %v887 = vlaneseq
        %v888 = vshrl.u32 %v887, 7
        %v889 = vsub.s32 0, %v888
        %v890 = vrot.slane %v855, %v889
        %v891 = vlaneseq
        %v892 = vshrl.u32 %v891, 7
        %v893 = vsub.s32 0, %v892
        %v894 = vrot.slane %v856, %v893
        %v895 = vlaneseq
        %v896 = vshrl.u32 %v895, 7
        %v897 = vsub.s32 0, %v896
        %v898 = vrot.slane %v857, %v897
        %v899 = vlaneseq
        %v900 = vshrl.u32 %v899, 7
        %v901 = vsub.s32 0, %v900
        %v902 = vrot.slane %v858, %v901
        %v903 = vlaneseq
        %v904 = vshrl.u32 %v903, 7
        %v905 = vsub.s32 0, %v904
        %v906 = vrot.slane %v859, %v905
        %v907 = vlaneseq
        %v908 = vshrl.u32 %v907, 7
        %v909 = vsub.s32 0, %v908
        %v910 = vrot.slane %v860, %v909
        %v911 = vlaneseq
        %v912 = vshrl.u32 %v911, 7
        %v913 = vsub.s32 0, %v912
        %v914 = vrot.slane %v861, %v913
        %v915 = vlaneseq
        %v916 = vshrl.u32 %v915, 7
        %v917 = vsub.s32 0, %v916
        %v918 = vrot.slane %v862, %v917
        %v919 = vlaneseq
        %v920 = vshrl.u32 %v919, 7
        %v921 = vsub.s32 0, %v920
        %v922 = vrot.slane %v863, %v921
        %v923 = vlaneseq
        %v924 = vshrl.u32 %v923, 7
        %v925 = vsub.s32 0, %v924
        %v926 = vrot.slane %v864, %v925
        %v927 = vlaneseq
        %v928 = vshrl.u32 %v927, 7
        %v929 = vsub.s32 0, %v928
        %v930 = vrot.slane %v865, %v929
        %v931 = vlaneseq
        %v932 = vshrl.u32 %v931, 7
        %v933 = vsub.s32 0, %v932
        %v934 = vrot.slane %v866, %v933
        %v935 = vlaneseq
        %v936 = vshrl.u32 %v935, 7
        %v937 = vsub.s32 0, %v936
        %v938 = vrot.slane %v867, %v937
        %v939 = vlaneseq
        %v940 = vshrl.u32 %v939, 7
        %v941 = vsub.s32 0, %v940
        %v942 = vrot.slane %v868, %v941
        %v943 = vlaneseq
        %v944 = vshrl.u32 %v943, 7
        %v945 = vsub.s32 0, %v944
        %v946 = vrot.slane %v869, %v945
        %v947 = vlaneseq
        %v948 = vshrl.u32 %v947, 7
        %v949 = vsub.s32 0, %v948
        %v950 = vrot.slane %v870, %v949
        %v951 = vsub.f32 %v647, %v874
        %v952 = vsub.f32 %v648, %v878
        %v953 = vsub.f32 %v631, %v882
        %v954 = vsub.f32 %v632, %v886
        %v955 = vsub.f32 %v633, %v890
        %v956 = vsub.f32 %v634, %v894
        %v957 = vsub.f32 %v635, %v898
        %v958 = vsub.f32 %v636, %v902
        %v959 = vsub.f32 %v637, %v906
        %v960 = vsub.f32 %v638, %v910
        %v961 = vsub.f32 %v639, %v914
        %v962 = vsub.f32 %v640, %v918
        %v963 = vsub.f32 %v641, %v922
        %v964 = vsub.f32 %v642, %v926
        %v965 = vsub.f32 %v643, %v930
        %v966 = vsub.f32 %v644, %v934
        %v967 = vsub.f32 %v645, %v938
        %v968 = vsub.f32 %v646, %v942
        %v969 = vsub.f32 %v649, %v946
        %v970 = vsub.f32 %v650, %v950
        %v971 = vmul.f32 %v951, %v951
        %v972 = vmul.f32 %v952, %v952
        %v973 = vmul.f32 %v953, %v953
        %v974 = vmul.f32 %v954, %v954
        %v975 = vmul.f32 %v955, %v955
        %v976 = vmul.f32 %v956, %v956
        %v977 = vmul.f32 %v957, %v957
        %v978 = vmul.f32 %v958, %v958
        %v979 = vmul.f32 %v959, %v959
        %v980 = vmul.f32 %v960, %v960
        %v981 = vmul.f32 %v961, %v961
        %v982 = vmul.f32 %v962, %v962
        %v983 = vmul.f32 %v963, %v963
        %v984 = vmul.f32 %v964, %v964
        %v985 = vmul.f32 %v965, %v965
        %v986 = vmul.f32 %v966, %v966
        %v987 = vmul.f32 %v967, %v967
        %v988 = vmul.f32 %v968, %v968
        %v989 = vmul.f32 %v969, %v969
        %v990 = vmul.f32 %v970, %v970
        %v1011 = vrot.slane %v971, 1
        %v1012 = vrot.slane %v972, 1
        %v1013 = vrot.slane %v973, 1
        %v1014 = vrot.slane %v974, 1
        %v1015 = vrot.slane %v975, 1
        %v1016 = vrot.slane %v976, 1
        %v1017 = vrot.slane %v977, 1
        %v1018 = vrot.slane %v978, 1
        %v1019 = vrot.slane %v979, 1
        %v1020 = vrot.slane %v980, 1
        %v1021 = vrot.slane %v981, 1
        %v1022 = vrot.slane %v982, 1
        %v1023 = vrot.slane %v983, 1
        %v1024 = vrot.slane %v984, 1
        %v1025 = vrot.slane %v985, 1
        %v1026 = vrot.slane %v986, 1
        %v1027 = vrot.slane %v987, 1
        %v1028 = vrot.slane %v988, 1
        %v1029 = vrot.slane %v989, 1
        %v1030 = vrot.slane %v990, 1
        %v1051 = vadd.f32 %v971, %v1011
        %v1052 = vadd.f32 %v972, %v1012
        %v1053 = vadd.f32 %v973, %v1013
        %v1054 = vadd.f32 %v974, %v1014
        %v1055 = vadd.f32 %v975, %v1015
        %v1056 = vadd.f32 %v976, %v1016
        %v1057 = vadd.f32 %v977, %v1017
        %v1058 = vadd.f32 %v978, %v1018
        %v1059 = vadd.f32 %v979, %v1019
        %v1060 = vadd.f32 %v980, %v1020
        %v1061 = vadd.f32 %v981, %v1021
        %v1062 = vadd.f32 %v982, %v1022
        %v1063 = vadd.f32 %v983, %v1023
        %v1064 = vadd.f32 %v984, %v1024
        %v1065 = vadd.f32 %v985, %v1025
        %v1066 = vadd.f32 %v986, %v1026
        %v1067 = vadd.f32 %v987, %v1027
        %v1068 = vadd.f32 %v988, %v1028
        %v1069 = vadd.f32 %v989, %v1029
        %v1070 = vadd.f32 %v990, %v1030
        %v1071 = vrot.slane %v971, 2
        %v1072 = vrot.slane %v972, 2
        %v1073 = vrot.slane %v973, 2
        %v1074 = vrot.slane %v974, 2
        %v1075 = vrot.slane %v975, 2
        %v1076 = vrot.slane %v976, 2
        %v1077 = vrot.slane %v977, 2
        %v1078 = vrot.slane %v978, 2
        %v1079 = vrot.slane %v979, 2
        %v1080 = vrot.slane %v980, 2
        %v1081 = vrot.slane %v981, 2
        %v1082 = vrot.slane %v982, 2
        %v1083 = vrot.slane %v983, 2
        %v1084 = vrot.slane %v984, 2
        %v1085 = vrot.slane %v985, 2
        %v1086 = vrot.slane %v986, 2
        %v1087 = vrot.slane %v987, 2
        %v1088 = vrot.slane %v988, 2
        %v1089 = vrot.slane %v989, 2
        %v1090 = vrot.slane %v990, 2
        %v1111 = vadd.f32 %v1051, %v1071
        %v1112 = vadd.f32 %v1052, %v1072
        %v1113 = vadd.f32 %v1053, %v1073
        %v1114 = vadd.f32 %v1054, %v1074
        %v1115 = vadd.f32 %v1055, %v1075
        %v1116 = vadd.f32 %v1056, %v1076
        %v1117 = vadd.f32 %v1057, %v1077
        %v1118 = vadd.f32 %v1058, %v1078
        %v1119 = vadd.f32 %v1059, %v1079
        %v1120 = vadd.f32 %v1060, %v1080
        %v1121 = vadd.f32 %v1061, %v1081
        %v1122 = vadd.f32 %v1062, %v1082
        %v1123 = vadd.f32 %v1063, %v1083
        %v1124 = vadd.f32 %v1064, %v1084
        %v1125 = vadd.f32 %v1065, %v1085
        %v1126 = vadd.f32 %v1066, %v1086
        %v1127 = vadd.f32 %v1067, %v1087
        %v1128 = vadd.f32 %v1068, %v1088
        %v1129 = vadd.f32 %v1069, %v1089
        %v1130 = vadd.f32 %v1070, %v1090
        %v1131 = vrot.slane %v971, 3
        %v1132 = vrot.slane %v972, 3
        %v1133 = vrot.slane %v973, 3
        %v1134 = vrot.slane %v974, 3
        %v1135 = vrot.slane %v975, 3
        %v1136 = vrot.slane %v976, 3
        %v1137 = vrot.slane %v977, 3
        %v1138 = vrot.slane %v978, 3
        %v1139 = vrot.slane %v979, 3
        %v1140 = vrot.slane %v980, 3
        %v1141 = vrot.slane %v981, 3
        %v1142 = vrot.slane %v982, 3
        %v1143 = vrot.slane %v983, 3
        %v1144 = vrot.slane %v984, 3
        %v1145 = vrot.slane %v985, 3
        %v1146 = vrot.slane %v986, 3
        %v1147 = vrot.slane %v987, 3
        %v1148 = vrot.slane %v988, 3
        %v1149 = vrot.slane %v989, 3
        %v1150 = vrot.slane %v990, 3
        %v1171 = vadd.f32 %v1111, %v1131
        %v1172 = vadd.f32 %v1112, %v1132
        %v1173 = vadd.f32 %v1113, %v1133
        %v1174 = vadd.f32 %v1114, %v1134
        %v1175 = vadd.f32 %v1115, %v1135
        %v1176 = vadd.f32 %v1116, %v1136
        %v1177 = vadd.f32 %v1117, %v1137
        %v1178 = vadd.f32 %v1118, %v1138
        %v1179 = vadd.f32 %v1119, %v1139
        %v1180 = vadd.f32 %v1120, %v1140
        %v1181 = vadd.f32 %v1121, %v1141
        %v1182 = vadd.f32 %v1122, %v1142
        %v1183 = vadd.f32 %v1123, %v1143
        %v1184 = vadd.f32 %v1124, %v1144
        %v1185 = vadd.f32 %v1125, %v1145
        %v1186 = vadd.f32 %v1126, %v1146
        %v1187 = vadd.f32 %v1127, %v1147
        %v1188 = vadd.f32 %v1128, %v1148
        %v1189 = vadd.f32 %v1129, %v1149
        %v1190 = vadd.f32 %v1130, %v1150
        %v1191 = vmul.f32 %v1171, 0.25
        %v1192 = vmul.f32 %v1172, 0.25
        %v1193 = vmul.f32 %v1173, 0.25
        %v1194 = vmul.f32 %v1174, 0.25
        %v1195 = vmul.f32 %v1175, 0.25
        %v1196 = vmul.f32 %v1176, 0.25
        %v1197 = vmul.f32 %v1177, 0.25
        %v1198 = vmul.f32 %v1178, 0.25
        %v1199 = vmul.f32 %v1179, 0.25
        %v1200 = vmul.f32 %v1180, 0.25
        %v1201 = vmul.f32 %v1181, 0.25
        %v1202 = vmul.f32 %v1182, 0.25
        %v1203 = vmul.f32 %v1183, 0.25
        %v1204 = vmul.f32 %v1184, 0.25
        %v1205 = vmul.f32 %v1185, 0.25
        %v1206 = vmul.f32 %v1186, 0.25
        %v1207 = vmul.f32 %v1187, 0.25
        %v1208 = vmul.f32 %v1188, 0.25
        %v1209 = vmul.f32 %v1189, 0.25
        %v1210 = vmul.f32 %v1190, 0.25
        %v1211 = vadd.f32 %v1191, 1e-06
        %v1212 = vadd.f32 %v1192, 1e-06
        %v1213 = vadd.f32 %v1193, 1e-06
        %v1214 = vadd.f32 %v1194, 1e-06
        %v1215 = vadd.f32 %v1195, 1e-06
        %v1216 = vadd.f32 %v1196, 1e-06
        %v1217 = vadd.f32 %v1197, 1e-06
        %v1218 = vadd.f32 %v1198, 1e-06
        %v1219 = vadd.f32 %v1199, 1e-06
        %v1220 = vadd.f32 %v1200, 1e-06
        %v1221 = vadd.f32 %v1201, 1e-06
        %v1222 = vadd.f32 %v1202, 1e-06
        %v1223 = vadd.f32 %v1203, 1e-06
        %v1224 = vadd.f32 %v1204, 1e-06
        %v1225 = vadd.f32 %v1205, 1e-06
        %v1226 = vadd.f32 %v1206, 1e-06
        %v1227 = vadd.f32 %v1207, 1e-06
        %v1228 = vadd.f32 %v1208, 1e-06
        %v1229 = vadd.f32 %v1209, 1e-06
        %v1230 = vadd.f32 %v1210, 1e-06
        %v1231 = vrsqrt.pop %v1211
        %v1232 = vrsqrt.pop %v1212
        %v1233 = vrsqrt.pop %v1213
        %v1234 = vrsqrt.pop %v1214
        %v1235 = vrsqrt.pop %v1215
        %v1236 = vrsqrt.pop %v1216
        %v1237 = vrsqrt.pop %v1217
        %v1238 = vrsqrt.pop %v1218
        %v1239 = vrsqrt.pop %v1219
        %v1240 = vrsqrt.pop %v1220
        %v1241 = vrsqrt.pop %v1221
        %v1242 = vrsqrt.pop %v1222
        %v1243 = vrsqrt.pop %v1223
        %v1244 = vrsqrt.pop %v1224
        %v1245 = vrsqrt.pop %v1225
        %v1246 = vrsqrt.pop %v1226
        %v1247 = vrsqrt.pop %v1227
        %v1248 = vrsqrt.pop %v1228
        %v1249 = vrsqrt.pop %v1229
        %v1250 = vrsqrt.pop %v1230
        %v1251 = vlaneseq
        %v1252 = vshrl.u32 %v1251, 7
        %v1253 = vsub.s32 0, %v1252
        %v1254 = vrot.slane %v1231, %v1253
        %v1255 = vlaneseq
        %v1256 = vshrl.u32 %v1255, 7
        %v1257 = vsub.s32 0, %v1256
        %v1258 = vrot.slane %v1232, %v1257
        %v1259 = vlaneseq
        %v1260 = vshrl.u32 %v1259, 7
        %v1261 = vsub.s32 0, %v1260
        %v1262 = vrot.slane %v1233, %v1261
        %v1263 = vlaneseq
        %v1264 = vshrl.u32 %v1263, 7
        %v1265 = vsub.s32 0, %v1264
        %v1266 = vrot.slane %v1234, %v1265
        %v1267 = vlaneseq
        %v1268 = vshrl.u32 %v1267, 7
        %v1269 = vsub.s32 0, %v1268
        %v1270 = vrot.slane %v1235, %v1269
        %v1271 = vlaneseq
        %v1272 = vshrl.u32 %v1271, 7
        %v1273 = vsub.s32 0, %v1272
        %v1274 = vrot.slane %v1236, %v1273
        %v1275 = vlaneseq
        %v1276 = vshrl.u32 %v1275, 7
        %v1277 = vsub.s32 0, %v1276
        %v1278 = vrot.slane %v1237, %v1277
        %v1279 = vlaneseq
        %v1280 = vshrl.u32 %v1279, 7
        %v1281 = vsub.s32 0, %v1280
        %v1282 = vrot.slane %v1238, %v1281
        %v1283 = vlaneseq
        %v1284 = vshrl.u32 %v1283, 7
        %v1285 = vsub.s32 0, %v1284
        %v1286 = vrot.slane %v1239, %v1285
        %v1287 = vlaneseq
        %v1288 = vshrl.u32 %v1287, 7
        %v1289 = vsub.s32 0, %v1288
        %v1290 = vrot.slane %v1240, %v1289
        %v1291 = vlaneseq
        %v1292 = vshrl.u32 %v1291, 7
        %v1293 = vsub.s32 0, %v1292
        %v1294 = vrot.slane %v1241, %v1293
        %v1295 = vlaneseq
        %v1296 = vshrl.u32 %v1295, 7
        %v1297 = vsub.s32 0, %v1296
        %v1298 = vrot.slane %v1242, %v1297
        %v1299 = vlaneseq
        %v1300 = vshrl.u32 %v1299, 7
        %v1301 = vsub.s32 0, %v1300
        %v1302 = vrot.slane %v1243, %v1301
        %v1303 = vlaneseq
        %v1304 = vshrl.u32 %v1303, 7
        %v1305 = vsub.s32 0, %v1304
        %v1306 = vrot.slane %v1244, %v1305
        %v1307 = vlaneseq
        %v1308 = vshrl.u32 %v1307, 7
        %v1309 = vsub.s32 0, %v1308
        %v1310 = vrot.slane %v1245, %v1309
        %v1311 = vlaneseq
        %v1312 = vshrl.u32 %v1311, 7
        %v1313 = vsub.s32 0, %v1312
        %v1314 = vrot.slane %v1246, %v1313
        %v1315 = vlaneseq
        %v1316 = vshrl.u32 %v1315, 7
        %v1317 = vsub.s32 0, %v1316
        %v1318 = vrot.slane %v1247, %v1317
        %v1319 = vlaneseq
        %v1320 = vshrl.u32 %v1319, 7
        %v1321 = vsub.s32 0, %v1320
        %v1322 = vrot.slane %v1248, %v1321
        %v1323 = vlaneseq
        %v1324 = vshrl.u32 %v1323, 7
        %v1325 = vsub.s32 0, %v1324
        %v1326 = vrot.slane %v1249, %v1325
        %v1327 = vlaneseq
        %v1328 = vshrl.u32 %v1327, 7
        %v1329 = vsub.s32 0, %v1328
        %v1330 = vrot.slane %v1250, %v1329
        %v1331 = vmul.f32 %v951, %v1254
        %v1332 = vmul.f32 %v952, %v1258
        %v1333 = vmul.f32 %v953, %v1262
        %v1334 = vmul.f32 %v954, %v1266
        %v1335 = vmul.f32 %v955, %v1270
        %v1336 = vmul.f32 %v956, %v1274
        %v1337 = vmul.f32 %v957, %v1278
        %v1338 = vmul.f32 %v958, %v1282
        %v1339 = vmul.f32 %v959, %v1286
        %v1340 = vmul.f32 %v960, %v1290
        %v1341 = vmul.f32 %v961, %v1294
        %v1342 = vmul.f32 %v962, %v1298
        %v1343 = vmul.f32 %v963, %v1302
        %v1344 = vmul.f32 %v964, %v1306
        %v1345 = vmul.f32 %v965, %v1310
        %v1346 = vmul.f32 %v966, %v1314
        %v1347 = vmul.f32 %v967, %v1318
        %v1348 = vmul.f32 %v968, %v1322
        %v1349 = vmul.f32 %v969, %v1326
        %v1350 = vmul.f32 %v970, %v1330
        %v1351 = vld [vmem:[%s3] sm:$0xf]
        %1353 = vset.pattern.permute.xlu0 0
        %1354 = vperm.xlu0 %1353, %v1351
        %v1355 = vpop.permute.xlu0 %1354
        %v1357 = vmul.f32 %v1331, %v1355
        %v1358 = vmul.f32 %v1332, %v1355
        %v1359 = vmul.f32 %v1333, %v1355
        %v1360 = vmul.f32 %v1334, %v1355
        %v1361 = vmul.f32 %v1335, %v1355
        %v1362 = vmul.f32 %v1336, %v1355
        %v1363 = vmul.f32 %v1337, %v1355
        %v1364 = vmul.f32 %v1338, %v1355
        %v1365 = vmul.f32 %v1339, %v1355
        %v1366 = vmul.f32 %v1340, %v1355
        %v1367 = vmul.f32 %v1341, %v1355
        %v1368 = vmul.f32 %v1342, %v1355
        %v1369 = vmul.f32 %v1343, %v1355
        %v1370 = vmul.f32 %v1344, %v1355
        %v1371 = vmul.f32 %v1345, %v1355
        %v1372 = vmul.f32 %v1346, %v1355
        %v1373 = vmul.f32 %v1347, %v1355
        %v1374 = vmul.f32 %v1348, %v1355
        %v1375 = vmul.f32 %v1349, %v1355
        %v1376 = vmul.f32 %v1350, %v1355
        %v1377 = vld [vmem:[%s4] sm:$0xf]
        %1379 = vset.pattern.permute.xlu0 0
        %1380 = vperm.xlu0 %1379, %v1377
        %v1381 = vpop.permute.xlu0 %1380
        %v1383 = vadd.f32 %v1357, %v1381
        %v1384 = vadd.f32 %v1358, %v1381
        %v1385 = vadd.f32 %v1359, %v1381
        %v1386 = vadd.f32 %v1360, %v1381
        %v1387 = vadd.f32 %v1361, %v1381
        %v1388 = vadd.f32 %v1362, %v1381
        %v1389 = vadd.f32 %v1363, %v1381
        %v1390 = vadd.f32 %v1364, %v1381
        %v1391 = vadd.f32 %v1365, %v1381
        %v1392 = vadd.f32 %v1366, %v1381
        %v1393 = vadd.f32 %v1367, %v1381
        %v1394 = vadd.f32 %v1368, %v1381
        %v1395 = vadd.f32 %v1369, %v1381
        %v1396 = vadd.f32 %v1370, %v1381
        %v1397 = vadd.f32 %v1371, %v1381
        %v1398 = vadd.f32 %v1372, %v1381
        %v1399 = vadd.f32 %v1373, %v1381
        %v1400 = vadd.f32 %v1374, %v1381
        %v1401 = vadd.f32 %v1375, %v1381
        %v1402 = vadd.f32 %v1376, %v1381
        %v1403 = vld [vmem:[%s6] sm:$0xff]
        %1405 = vset.pattern.permute.xlu0 0
        %1406 = vperm.xlu0 %1405, %v1403
        %v1407 = vpop.permute.xlu0 %1406
        %v1409 = vadd.f32 %v1407, 0.0
        %v1410 = vld [vmem:[%s5] sm:$0xff]
        %1412 = vset.pattern.permute.xlu0 0
        %1413 = vperm.xlu0 %1412, %v1410
        %v1414 = vpop.permute.xlu0 %1413
        %v1416 = vlaneseq
        %v1417 = vshrl.u32 %v1416, 7
        %v1418 = vsub.s32 0, %v1417
        %v1419 = vrot.slane %v1383, %v1418
        %v1420 = vlaneseq
        %v1421 = vshrl.u32 %v1420, 7
        %v1422 = vsub.s32 0, %v1421
        %v1423 = vrot.slane %v1384, %v1422
        %v1424 = vlaneseq
        %v1425 = vshrl.u32 %v1424, 7
        %v1426 = vsub.s32 0, %v1425
        %v1427 = vrot.slane %v1385, %v1426
        %v1428 = vlaneseq
        %v1429 = vshrl.u32 %v1428, 7
        %v1430 = vsub.s32 0, %v1429
        %v1431 = vrot.slane %v1386, %v1430
        %v1432 = vlaneseq
        %v1433 = vshrl.u32 %v1432, 7
        %v1434 = vsub.s32 0, %v1433
        %v1435 = vrot.slane %v1387, %v1434
        %v1436 = vlaneseq
        %v1437 = vshrl.u32 %v1436, 7
        %v1438 = vsub.s32 0, %v1437
        %v1439 = vrot.slane %v1388, %v1438
        %v1440 = vlaneseq
        %v1441 = vshrl.u32 %v1440, 7
        %v1442 = vsub.s32 0, %v1441
        %v1443 = vrot.slane %v1389, %v1442
        %v1444 = vlaneseq
        %v1445 = vshrl.u32 %v1444, 7
        %v1446 = vsub.s32 0, %v1445
        %v1447 = vrot.slane %v1390, %v1446
        %v1448 = vlaneseq
        %v1449 = vshrl.u32 %v1448, 7
        %v1450 = vsub.s32 0, %v1449
        %v1451 = vrot.slane %v1391, %v1450
        %v1452 = vlaneseq
        %v1453 = vshrl.u32 %v1452, 7
        %v1454 = vsub.s32 0, %v1453
        %v1455 = vrot.slane %v1392, %v1454
        %v1456 = vlaneseq
        %v1457 = vshrl.u32 %v1456, 7
        %v1458 = vsub.s32 0, %v1457
        %v1459 = vrot.slane %v1393, %v1458
        %v1460 = vlaneseq
        %v1461 = vshrl.u32 %v1460, 7
        %v1462 = vsub.s32 0, %v1461
        %v1463 = vrot.slane %v1394, %v1462
        %v1464 = vlaneseq
        %v1465 = vshrl.u32 %v1464, 7
        %v1466 = vsub.s32 0, %v1465
        %v1467 = vrot.slane %v1395, %v1466
        %v1468 = vlaneseq
        %v1469 = vshrl.u32 %v1468, 7
        %v1470 = vsub.s32 0, %v1469
        %v1471 = vrot.slane %v1396, %v1470
        %v1472 = vlaneseq
        %v1473 = vshrl.u32 %v1472, 7
        %v1474 = vsub.s32 0, %v1473
        %v1475 = vrot.slane %v1397, %v1474
        %v1476 = vlaneseq
        %v1477 = vshrl.u32 %v1476, 7
        %v1478 = vsub.s32 0, %v1477
        %v1479 = vrot.slane %v1398, %v1478
        %v1480 = vlaneseq
        %v1481 = vshrl.u32 %v1480, 7
        %v1482 = vsub.s32 0, %v1481
        %v1483 = vrot.slane %v1399, %v1482
        %v1484 = vlaneseq
        %v1485 = vshrl.u32 %v1484, 7
        %v1486 = vsub.s32 0, %v1485
        %v1487 = vrot.slane %v1400, %v1486
        %v1488 = vlaneseq
        %v1489 = vshrl.u32 %v1488, 7
        %v1490 = vsub.s32 0, %v1489
        %v1491 = vrot.slane %v1401, %v1490
        %v1492 = vlaneseq
        %v1493 = vshrl.u32 %v1492, 7
        %v1494 = vsub.s32 0, %v1493
        %v1495 = vrot.slane %v1402, %v1494
        %v1496 = vmul.f32 %v1414, %v1419
        %v1497 = vmul.f32 %v1414, %v1423
        %v1498 = vmul.f32 %v1414, %v1427
        %v1499 = vmul.f32 %v1414, %v1431
        %v1500 = vmul.f32 %v1414, %v1435
        %v1501 = vmul.f32 %v1414, %v1439
        %v1502 = vmul.f32 %v1414, %v1443
        %v1503 = vmul.f32 %v1414, %v1447
        %v1504 = vmul.f32 %v1414, %v1451
        %v1505 = vmul.f32 %v1414, %v1455
        %v1506 = vmul.f32 %v1414, %v1459
        %v1507 = vmul.f32 %v1414, %v1463
        %v1508 = vmul.f32 %v1414, %v1467
        %v1509 = vmul.f32 %v1414, %v1471
        %v1510 = vmul.f32 %v1414, %v1475
        %v1511 = vmul.f32 %v1414, %v1479
        %v1512 = vmul.f32 %v1414, %v1483
        %v1513 = vmul.f32 %v1414, %v1487
        %v1514 = vmul.f32 %v1414, %v1491
        %v1515 = vmul.f32 %v1414, %v1495
        %v1516 = vadd.f32 %v1409, %v1496
        %v1517 = vadd.f32 %v1409, %v1497
        %v1518 = vadd.f32 %v1409, %v1498
        %v1519 = vadd.f32 %v1409, %v1499
        %v1520 = vadd.f32 %v1409, %v1500
        %v1521 = vadd.f32 %v1409, %v1501
        %v1522 = vadd.f32 %v1409, %v1502
        %v1523 = vadd.f32 %v1409, %v1503
        %v1524 = vadd.f32 %v1409, %v1504
        %v1525 = vadd.f32 %v1409, %v1505
        %v1526 = vadd.f32 %v1409, %v1506
        %v1527 = vadd.f32 %v1409, %v1507
        %v1528 = vadd.f32 %v1409, %v1508
        %v1529 = vadd.f32 %v1409, %v1509
        %v1530 = vadd.f32 %v1409, %v1510
        %v1531 = vadd.f32 %v1409, %v1511
        %v1532 = vadd.f32 %v1409, %v1512
        %v1533 = vadd.f32 %v1409, %v1513
        %v1534 = vadd.f32 %v1409, %v1514
        %v1535 = vadd.f32 %v1409, %v1515
        %s1536 = scalar_lea.vmem %s5, 8
        %v1537 = vld [vmem:[%s1536] sm:$0xff]
        %1539 = vset.pattern.permute.xlu0 0
        %1540 = vperm.xlu0 %1539, %v1537
        %v1541 = vpop.permute.xlu0 %1540
        %v1543 = vlaneseq
        %v1544 = vshrl.u32 %v1543, 7
        %v1545 = vsub.s32 1, %v1544
        %v1546 = vrot.slane %v1383, %v1545
        %v1547 = vlaneseq
        %v1548 = vshrl.u32 %v1547, 7
        %v1549 = vsub.s32 1, %v1548
        %v1550 = vrot.slane %v1384, %v1549
        %v1551 = vlaneseq
        %v1552 = vshrl.u32 %v1551, 7
        %v1553 = vsub.s32 1, %v1552
        %v1554 = vrot.slane %v1385, %v1553
        %v1555 = vlaneseq
        %v1556 = vshrl.u32 %v1555, 7
        %v1557 = vsub.s32 1, %v1556
        %v1558 = vrot.slane %v1386, %v1557
        %v1559 = vlaneseq
        %v1560 = vshrl.u32 %v1559, 7
        %v1561 = vsub.s32 1, %v1560
        %v1562 = vrot.slane %v1387, %v1561
        %v1563 = vlaneseq
        %v1564 = vshrl.u32 %v1563, 7
        %v1565 = vsub.s32 1, %v1564
        %v1566 = vrot.slane %v1388, %v1565
        %v1567 = vlaneseq
        %v1568 = vshrl.u32 %v1567, 7
        %v1569 = vsub.s32 1, %v1568
        %v1570 = vrot.slane %v1389, %v1569
        %v1571 = vlaneseq
        %v1572 = vshrl.u32 %v1571, 7
        %v1573 = vsub.s32 1, %v1572
        %v1574 = vrot.slane %v1390, %v1573
        %v1575 = vlaneseq
        %v1576 = vshrl.u32 %v1575, 7
        %v1577 = vsub.s32 1, %v1576
        %v1578 = vrot.slane %v1391, %v1577
        %v1579 = vlaneseq
        %v1580 = vshrl.u32 %v1579, 7
        %v1581 = vsub.s32 1, %v1580
        %v1582 = vrot.slane %v1392, %v1581
        %v1583 = vlaneseq
        %v1584 = vshrl.u32 %v1583, 7
        %v1585 = vsub.s32 1, %v1584
        %v1586 = vrot.slane %v1393, %v1585
        %v1587 = vlaneseq
        %v1588 = vshrl.u32 %v1587, 7
        %v1589 = vsub.s32 1, %v1588
        %v1590 = vrot.slane %v1394, %v1589
        %v1591 = vlaneseq
        %v1592 = vshrl.u32 %v1591, 7
        %v1593 = vsub.s32 1, %v1592
        %v1594 = vrot.slane %v1395, %v1593
        %v1595 = vlaneseq
        %v1596 = vshrl.u32 %v1595, 7
        %v1597 = vsub.s32 1, %v1596
        %v1598 = vrot.slane %v1396, %v1597
        %v1599 = vlaneseq
        %v1600 = vshrl.u32 %v1599, 7
        %v1601 = vsub.s32 1, %v1600
        %v1602 = vrot.slane %v1397, %v1601
        %v1603 = vlaneseq
        %v1604 = vshrl.u32 %v1603, 7
        %v1605 = vsub.s32 1, %v1604
        %v1606 = vrot.slane %v1398, %v1605
        %v1607 = vlaneseq
        %v1608 = vshrl.u32 %v1607, 7
        %v1609 = vsub.s32 1, %v1608
        %v1610 = vrot.slane %v1399, %v1609
        %v1611 = vlaneseq
        %v1612 = vshrl.u32 %v1611, 7
        %v1613 = vsub.s32 1, %v1612
        %v1614 = vrot.slane %v1400, %v1613
        %v1615 = vlaneseq
        %v1616 = vshrl.u32 %v1615, 7
        %v1617 = vsub.s32 1, %v1616
        %v1618 = vrot.slane %v1401, %v1617
        %v1619 = vlaneseq
        %v1620 = vshrl.u32 %v1619, 7
        %v1621 = vsub.s32 1, %v1620
        %v1622 = vrot.slane %v1402, %v1621
        %v1623 = vmul.f32 %v1541, %v1546
        %v1624 = vmul.f32 %v1541, %v1550
        %v1625 = vmul.f32 %v1541, %v1554
        %v1626 = vmul.f32 %v1541, %v1558
        %v1627 = vmul.f32 %v1541, %v1562
        %v1628 = vmul.f32 %v1541, %v1566
        %v1629 = vmul.f32 %v1541, %v1570
        %v1630 = vmul.f32 %v1541, %v1574
        %v1631 = vmul.f32 %v1541, %v1578
        %v1632 = vmul.f32 %v1541, %v1582
        %v1633 = vmul.f32 %v1541, %v1586
        %v1634 = vmul.f32 %v1541, %v1590
        %v1635 = vmul.f32 %v1541, %v1594
        %v1636 = vmul.f32 %v1541, %v1598
        %v1637 = vmul.f32 %v1541, %v1602
        %v1638 = vmul.f32 %v1541, %v1606
        %v1639 = vmul.f32 %v1541, %v1610
        %v1640 = vmul.f32 %v1541, %v1614
        %v1641 = vmul.f32 %v1541, %v1618
        %v1642 = vmul.f32 %v1541, %v1622
        %v1643 = vadd.f32 %v1516, %v1623
        %v1644 = vadd.f32 %v1517, %v1624
        %v1645 = vadd.f32 %v1518, %v1625
        %v1646 = vadd.f32 %v1519, %v1626
        %v1647 = vadd.f32 %v1520, %v1627
        %v1648 = vadd.f32 %v1521, %v1628
        %v1649 = vadd.f32 %v1522, %v1629
        %v1650 = vadd.f32 %v1523, %v1630
        %v1651 = vadd.f32 %v1524, %v1631
        %v1652 = vadd.f32 %v1525, %v1632
        %v1653 = vadd.f32 %v1526, %v1633
        %v1654 = vadd.f32 %v1527, %v1634
        %v1655 = vadd.f32 %v1528, %v1635
        %v1656 = vadd.f32 %v1529, %v1636
        %v1657 = vadd.f32 %v1530, %v1637
        %v1658 = vadd.f32 %v1531, %v1638
        %v1659 = vadd.f32 %v1532, %v1639
        %v1660 = vadd.f32 %v1533, %v1640
        %v1661 = vadd.f32 %v1534, %v1641
        %v1662 = vadd.f32 %v1535, %v1642
        %s1663 = scalar_lea.vmem %s5, 16
        %v1664 = vld [vmem:[%s1663] sm:$0xff]
        %1666 = vset.pattern.permute.xlu0 0
        %1667 = vperm.xlu0 %1666, %v1664
        %v1668 = vpop.permute.xlu0 %1667
        %v1670 = vlaneseq
        %v1671 = vshrl.u32 %v1670, 7
        %v1672 = vsub.s32 2, %v1671
        %v1673 = vrot.slane %v1383, %v1672
        %v1674 = vlaneseq
        %v1675 = vshrl.u32 %v1674, 7
        %v1676 = vsub.s32 2, %v1675
        %v1677 = vrot.slane %v1384, %v1676
        %v1678 = vlaneseq
        %v1679 = vshrl.u32 %v1678, 7
        %v1680 = vsub.s32 2, %v1679
        %v1681 = vrot.slane %v1385, %v1680
        %v1682 = vlaneseq
        %v1683 = vshrl.u32 %v1682, 7
        %v1684 = vsub.s32 2, %v1683
        %v1685 = vrot.slane %v1386, %v1684
        %v1686 = vlaneseq
        %v1687 = vshrl.u32 %v1686, 7
        %v1688 = vsub.s32 2, %v1687
        %v1689 = vrot.slane %v1387, %v1688
        %v1690 = vlaneseq
        %v1691 = vshrl.u32 %v1690, 7
        %v1692 = vsub.s32 2, %v1691
        %v1693 = vrot.slane %v1388, %v1692
        %v1694 = vlaneseq
        %v1695 = vshrl.u32 %v1694, 7
        %v1696 = vsub.s32 2, %v1695
        %v1697 = vrot.slane %v1389, %v1696
        %v1698 = vlaneseq
        %v1699 = vshrl.u32 %v1698, 7
        %v1700 = vsub.s32 2, %v1699
        %v1701 = vrot.slane %v1390, %v1700
        %v1702 = vlaneseq
        %v1703 = vshrl.u32 %v1702, 7
        %v1704 = vsub.s32 2, %v1703
        %v1705 = vrot.slane %v1391, %v1704
        %v1706 = vlaneseq
        %v1707 = vshrl.u32 %v1706, 7
        %v1708 = vsub.s32 2, %v1707
        %v1709 = vrot.slane %v1392, %v1708
        %v1710 = vlaneseq
        %v1711 = vshrl.u32 %v1710, 7
        %v1712 = vsub.s32 2, %v1711
        %v1713 = vrot.slane %v1393, %v1712
        %v1714 = vlaneseq
        %v1715 = vshrl.u32 %v1714, 7
        %v1716 = vsub.s32 2, %v1715
        %v1717 = vrot.slane %v1394, %v1716
        %v1718 = vlaneseq
        %v1719 = vshrl.u32 %v1718, 7
        %v1720 = vsub.s32 2, %v1719
        %v1721 = vrot.slane %v1395, %v1720
        %v1722 = vlaneseq
        %v1723 = vshrl.u32 %v1722, 7
        %v1724 = vsub.s32 2, %v1723
        %v1725 = vrot.slane %v1396, %v1724
        %v1726 = vlaneseq
        %v1727 = vshrl.u32 %v1726, 7
        %v1728 = vsub.s32 2, %v1727
        %v1729 = vrot.slane %v1397, %v1728
        %v1730 = vlaneseq
        %v1731 = vshrl.u32 %v1730, 7
        %v1732 = vsub.s32 2, %v1731
        %v1733 = vrot.slane %v1398, %v1732
        %v1734 = vlaneseq
        %v1735 = vshrl.u32 %v1734, 7
        %v1736 = vsub.s32 2, %v1735
        %v1737 = vrot.slane %v1399, %v1736
        %v1738 = vlaneseq
        %v1739 = vshrl.u32 %v1738, 7
        %v1740 = vsub.s32 2, %v1739
        %v1741 = vrot.slane %v1400, %v1740
        %v1742 = vlaneseq
        %v1743 = vshrl.u32 %v1742, 7
        %v1744 = vsub.s32 2, %v1743
        %v1745 = vrot.slane %v1401, %v1744
        %v1746 = vlaneseq
        %v1747 = vshrl.u32 %v1746, 7
        %v1748 = vsub.s32 2, %v1747
        %v1749 = vrot.slane %v1402, %v1748
        %v1750 = vmul.f32 %v1668, %v1673
        %v1751 = vmul.f32 %v1668, %v1677
        %v1752 = vmul.f32 %v1668, %v1681
        %v1753 = vmul.f32 %v1668, %v1685
        %v1754 = vmul.f32 %v1668, %v1689
        %v1755 = vmul.f32 %v1668, %v1693
        %v1756 = vmul.f32 %v1668, %v1697
        %v1757 = vmul.f32 %v1668, %v1701
        %v1758 = vmul.f32 %v1668, %v1705
        %v1759 = vmul.f32 %v1668, %v1709
        %v1760 = vmul.f32 %v1668, %v1713
        %v1761 = vmul.f32 %v1668, %v1717
        %v1762 = vmul.f32 %v1668, %v1721
        %v1763 = vmul.f32 %v1668, %v1725
        %v1764 = vmul.f32 %v1668, %v1729
        %v1765 = vmul.f32 %v1668, %v1733
        %v1766 = vmul.f32 %v1668, %v1737
        %v1767 = vmul.f32 %v1668, %v1741
        %v1768 = vmul.f32 %v1668, %v1745
        %v1769 = vmul.f32 %v1668, %v1749
        %v1770 = vadd.f32 %v1643, %v1750
        %v1771 = vadd.f32 %v1644, %v1751
        %v1772 = vadd.f32 %v1645, %v1752
        %v1773 = vadd.f32 %v1646, %v1753
        %v1774 = vadd.f32 %v1647, %v1754
        %v1775 = vadd.f32 %v1648, %v1755
        %v1776 = vadd.f32 %v1649, %v1756
        %v1777 = vadd.f32 %v1650, %v1757
        %v1778 = vadd.f32 %v1651, %v1758
        %v1779 = vadd.f32 %v1652, %v1759
        %v1780 = vadd.f32 %v1653, %v1760
        %v1781 = vadd.f32 %v1654, %v1761
        %v1782 = vadd.f32 %v1655, %v1762
        %v1783 = vadd.f32 %v1656, %v1763
        %v1784 = vadd.f32 %v1657, %v1764
        %v1785 = vadd.f32 %v1658, %v1765
        %v1786 = vadd.f32 %v1659, %v1766
        %v1787 = vadd.f32 %v1660, %v1767
        %v1788 = vadd.f32 %v1661, %v1768
        %v1789 = vadd.f32 %v1662, %v1769
        %s1790 = scalar_lea.vmem %s5, 24
        %v1791 = vld [vmem:[%s1790] sm:$0xff]
        %1793 = vset.pattern.permute.xlu0 0
        %1794 = vperm.xlu0 %1793, %v1791
        %v1795 = vpop.permute.xlu0 %1794
        %v1797 = vlaneseq
        %v1798 = vshrl.u32 %v1797, 7
        %v1799 = vsub.s32 3, %v1798
        %v1800 = vrot.slane %v1383, %v1799
        %v1801 = vlaneseq
        %v1802 = vshrl.u32 %v1801, 7
        %v1803 = vsub.s32 3, %v1802
        %v1804 = vrot.slane %v1384, %v1803
        %v1805 = vlaneseq
        %v1806 = vshrl.u32 %v1805, 7
        %v1807 = vsub.s32 3, %v1806
        %v1808 = vrot.slane %v1385, %v1807
        %v1809 = vlaneseq
        %v1810 = vshrl.u32 %v1809, 7
        %v1811 = vsub.s32 3, %v1810
        %v1812 = vrot.slane %v1386, %v1811
        %v1813 = vlaneseq
        %v1814 = vshrl.u32 %v1813, 7
        %v1815 = vsub.s32 3, %v1814
        %v1816 = vrot.slane %v1387, %v1815
        %v1817 = vlaneseq
        %v1818 = vshrl.u32 %v1817, 7
        %v1819 = vsub.s32 3, %v1818
        %v1820 = vrot.slane %v1388, %v1819
        %v1821 = vlaneseq
        %v1822 = vshrl.u32 %v1821, 7
        %v1823 = vsub.s32 3, %v1822
        %v1824 = vrot.slane %v1389, %v1823
        %v1825 = vlaneseq
        %v1826 = vshrl.u32 %v1825, 7
        %v1827 = vsub.s32 3, %v1826
        %v1828 = vrot.slane %v1390, %v1827
        %v1829 = vlaneseq
        %v1830 = vshrl.u32 %v1829, 7
        %v1831 = vsub.s32 3, %v1830
        %v1832 = vrot.slane %v1391, %v1831
        %v1833 = vlaneseq
        %v1834 = vshrl.u32 %v1833, 7
        %v1835 = vsub.s32 3, %v1834
        %v1836 = vrot.slane %v1392, %v1835
        %v1837 = vlaneseq
        %v1838 = vshrl.u32 %v1837, 7
        %v1839 = vsub.s32 3, %v1838
        %v1840 = vrot.slane %v1393, %v1839
        %v1841 = vlaneseq
        %v1842 = vshrl.u32 %v1841, 7
        %v1843 = vsub.s32 3, %v1842
        %v1844 = vrot.slane %v1394, %v1843
        %v1845 = vlaneseq
        %v1846 = vshrl.u32 %v1845, 7
        %v1847 = vsub.s32 3, %v1846
        %v1848 = vrot.slane %v1395, %v1847
        %v1849 = vlaneseq
        %v1850 = vshrl.u32 %v1849, 7
        %v1851 = vsub.s32 3, %v1850
        %v1852 = vrot.slane %v1396, %v1851
        %v1853 = vlaneseq
        %v1854 = vshrl.u32 %v1853, 7
        %v1855 = vsub.s32 3, %v1854
        %v1856 = vrot.slane %v1397, %v1855
        %v1857 = vlaneseq
        %v1858 = vshrl.u32 %v1857, 7
        %v1859 = vsub.s32 3, %v1858
        %v1860 = vrot.slane %v1398, %v1859
        %v1861 = vlaneseq
        %v1862 = vshrl.u32 %v1861, 7
        %v1863 = vsub.s32 3, %v1862
        %v1864 = vrot.slane %v1399, %v1863
        %v1865 = vlaneseq
        %v1866 = vshrl.u32 %v1865, 7
        %v1867 = vsub.s32 3, %v1866
        %v1868 = vrot.slane %v1400, %v1867
        %v1869 = vlaneseq
        %v1870 = vshrl.u32 %v1869, 7
        %v1871 = vsub.s32 3, %v1870
        %v1872 = vrot.slane %v1401, %v1871
        %v1873 = vlaneseq
        %v1874 = vshrl.u32 %v1873, 7
        %v1875 = vsub.s32 3, %v1874
        %v1876 = vrot.slane %v1402, %v1875
        %v1877 = vmul.f32 %v1795, %v1800
        %v1878 = vmul.f32 %v1795, %v1804
        %v1879 = vmul.f32 %v1795, %v1808
        %v1880 = vmul.f32 %v1795, %v1812
        %v1881 = vmul.f32 %v1795, %v1816
        %v1882 = vmul.f32 %v1795, %v1820
        %v1883 = vmul.f32 %v1795, %v1824
        %v1884 = vmul.f32 %v1795, %v1828
        %v1885 = vmul.f32 %v1795, %v1832
        %v1886 = vmul.f32 %v1795, %v1836
        %v1887 = vmul.f32 %v1795, %v1840
        %v1888 = vmul.f32 %v1795, %v1844
        %v1889 = vmul.f32 %v1795, %v1848
        %v1890 = vmul.f32 %v1795, %v1852
        %v1891 = vmul.f32 %v1795, %v1856
        %v1892 = vmul.f32 %v1795, %v1860
        %v1893 = vmul.f32 %v1795, %v1864
        %v1894 = vmul.f32 %v1795, %v1868
        %v1895 = vmul.f32 %v1795, %v1872
        %v1896 = vmul.f32 %v1795, %v1876
        %v1897 = vadd.f32 %v1770, %v1877
        %v1898 = vadd.f32 %v1771, %v1878
        %v1899 = vadd.f32 %v1772, %v1879
        %v1900 = vadd.f32 %v1773, %v1880
        %v1901 = vadd.f32 %v1774, %v1881
        %v1902 = vadd.f32 %v1775, %v1882
        %v1903 = vadd.f32 %v1776, %v1883
        %v1904 = vadd.f32 %v1777, %v1884
        %v1905 = vadd.f32 %v1778, %v1885
        %v1906 = vadd.f32 %v1779, %v1886
        %v1907 = vadd.f32 %v1780, %v1887
        %v1908 = vadd.f32 %v1781, %v1888
        %v1909 = vadd.f32 %v1782, %v1889
        %v1910 = vadd.f32 %v1783, %v1890
        %v1911 = vadd.f32 %v1784, %v1891
        %v1912 = vadd.f32 %v1785, %v1892
        %v1913 = vadd.f32 %v1786, %v1893
        %v1914 = vadd.f32 %v1787, %v1894
        %v1915 = vadd.f32 %v1788, %v1895
        %v1916 = vadd.f32 %v1789, %v1896
        %s1917 = smul.u32 %s39, 16
        %s1918 = ssub.s32 %s1917, 2
        %v1919 = vstv %s1918
        %v1920 = vadd.s32 %v1919, 1
        %v1921 = vadd.s32 %v1919, 2
        %v1922 = vadd.s32 %v1919, 3
        %v1923 = vadd.s32 %v1919, 4
        %v1924 = vadd.s32 %v1919, 5
        %v1925 = vadd.s32 %v1919, 6
        %v1926 = vadd.s32 %v1919, 7
        %v1927 = vadd.s32 %v1919, 8
        %v1928 = vadd.s32 %v1919, 9
        %v1929 = vadd.s32 %v1919, 10
        %v1930 = vadd.s32 %v1919, 11
        %v1931 = vadd.s32 %v1919, 12
        %v1932 = vadd.s32 %v1919, 13
        %v1933 = vadd.s32 %v1919, 14
        %v1934 = vadd.s32 %v1919, 15
        %v1935 = vadd.s32 %v1919, 16
        %v1936 = vadd.s32 %v1919, 17
        %v1937 = vadd.s32 %v1919, 18
        %v1938 = vadd.s32 %v1919, 19
        %vm1939 = vcmp.ge.s32.totalorder %v1919, 0
        %vm1940 = vcmp.ge.s32.totalorder %v1920, 0
        %vm1941 = vcmp.ge.s32.totalorder %v1921, 0
        %vm1942 = vcmp.ge.s32.totalorder %v1922, 0
        %vm1943 = vcmp.ge.s32.totalorder %v1923, 0
        %vm1944 = vcmp.ge.s32.totalorder %v1924, 0
        %vm1945 = vcmp.ge.s32.totalorder %v1925, 0
        %vm1946 = vcmp.ge.s32.totalorder %v1926, 0
        %vm1947 = vcmp.ge.s32.totalorder %v1927, 0
        %vm1948 = vcmp.ge.s32.totalorder %v1928, 0
        %vm1949 = vcmp.ge.s32.totalorder %v1929, 0
        %vm1950 = vcmp.ge.s32.totalorder %v1930, 0
        %vm1951 = vcmp.ge.s32.totalorder %v1931, 0
        %vm1952 = vcmp.ge.s32.totalorder %v1932, 0
        %vm1953 = vcmp.ge.s32.totalorder %v1933, 0
        %vm1954 = vcmp.ge.s32.totalorder %v1934, 0
        %vm1955 = vcmp.ge.s32.totalorder %v1935, 0
        %vm1956 = vcmp.ge.s32.totalorder %v1936, 0
        %vm1957 = vcmp.ge.s32.totalorder %v1937, 0
        %vm1958 = vcmp.ge.s32.totalorder %v1938, 0
        %vm1959 = vcmp.lt.s32.totalorder %v1919, 16
        %vm1960 = vcmp.lt.s32.totalorder %v1920, 16
        %vm1961 = vcmp.lt.s32.totalorder %v1921, 16
        %vm1962 = vcmp.lt.s32.totalorder %v1922, 16
        %vm1963 = vcmp.lt.s32.totalorder %v1923, 16
        %vm1964 = vcmp.lt.s32.totalorder %v1924, 16
        %vm1965 = vcmp.lt.s32.totalorder %v1925, 16
        %vm1966 = vcmp.lt.s32.totalorder %v1926, 16
        %vm1967 = vcmp.lt.s32.totalorder %v1927, 16
        %vm1968 = vcmp.lt.s32.totalorder %v1928, 16
        %vm1969 = vcmp.lt.s32.totalorder %v1929, 16
        %vm1970 = vcmp.lt.s32.totalorder %v1930, 16
        %vm1971 = vcmp.lt.s32.totalorder %v1931, 16
        %vm1972 = vcmp.lt.s32.totalorder %v1932, 16
        %vm1973 = vcmp.lt.s32.totalorder %v1933, 16
        %vm1974 = vcmp.lt.s32.totalorder %v1934, 16
        %vm1975 = vcmp.lt.s32.totalorder %v1935, 16
        %vm1976 = vcmp.lt.s32.totalorder %v1936, 16
        %vm1977 = vcmp.lt.s32.totalorder %v1937, 16
        %vm1978 = vcmp.lt.s32.totalorder %v1938, 16
        %vm1979 = vmand %vm1939, %vm1959
        %vm1980 = vmand %vm1940, %vm1960
        %vm1981 = vmand %vm1941, %vm1961
        %vm1982 = vmand %vm1942, %vm1962
        %vm1983 = vmand %vm1943, %vm1963
        %vm1984 = vmand %vm1944, %vm1964
        %vm1985 = vmand %vm1945, %vm1965
        %vm1986 = vmand %vm1946, %vm1966
        %vm1987 = vmand %vm1947, %vm1967
        %vm1988 = vmand %vm1948, %vm1968
        %vm1989 = vmand %vm1949, %vm1969
        %vm1990 = vmand %vm1950, %vm1970
        %vm1991 = vmand %vm1951, %vm1971
        %vm1992 = vmand %vm1952, %vm1972
        %vm1993 = vmand %vm1953, %vm1973
        %vm1994 = vmand %vm1954, %vm1974
        %vm1995 = vmand %vm1955, %vm1975
        %vm1996 = vmand %vm1956, %vm1976
        %vm1997 = vmand %vm1957, %vm1977
        %vm1998 = vmand %vm1958, %vm1978
        %v1999 = vsel %vm1979, 1, 0
        %v2000 = vsel %vm1980, 1, 0
        %v2001 = vsel %vm1981, 1, 0
        %v2002 = vsel %vm1982, 1, 0
        %v2003 = vsel %vm1983, 1, 0
        %v2004 = vsel %vm1984, 1, 0
        %v2005 = vsel %vm1985, 1, 0
        %v2006 = vsel %vm1986, 1, 0
        %v2007 = vsel %vm1987, 1, 0
        %v2008 = vsel %vm1988, 1, 0
        %v2009 = vsel %vm1989, 1, 0
        %v2010 = vsel %vm1990, 1, 0
        %v2011 = vsel %vm1991, 1, 0
        %v2012 = vsel %vm1992, 1, 0
        %v2013 = vsel %vm1993, 1, 0
        %v2014 = vsel %vm1994, 1, 0
        %v2015 = vsel %vm1995, 1, 0
        %v2016 = vsel %vm1996, 1, 0
        %v2017 = vsel %vm1997, 1, 0
        %v2018 = vsel %vm1998, 1, 0
        %vm2019 = vcmp.eq.s32.totalorder %v1999, 1
        %vm2020 = vcmp.eq.s32.totalorder %v2000, 1
        %vm2021 = vcmp.eq.s32.totalorder %v2001, 1
        %vm2022 = vcmp.eq.s32.totalorder %v2002, 1
        %vm2023 = vcmp.eq.s32.totalorder %v2003, 1
        %vm2024 = vcmp.eq.s32.totalorder %v2004, 1
        %vm2025 = vcmp.eq.s32.totalorder %v2005, 1
        %vm2026 = vcmp.eq.s32.totalorder %v2006, 1
        %vm2027 = vcmp.eq.s32.totalorder %v2007, 1
        %vm2028 = vcmp.eq.s32.totalorder %v2008, 1
        %vm2029 = vcmp.eq.s32.totalorder %v2009, 1
        %vm2030 = vcmp.eq.s32.totalorder %v2010, 1
        %vm2031 = vcmp.eq.s32.totalorder %v2011, 1
        %vm2032 = vcmp.eq.s32.totalorder %v2012, 1
        %vm2033 = vcmp.eq.s32.totalorder %v2013, 1
        %vm2034 = vcmp.eq.s32.totalorder %v2014, 1
        %vm2035 = vcmp.eq.s32.totalorder %v2015, 1
        %vm2036 = vcmp.eq.s32.totalorder %v2016, 1
        %vm2037 = vcmp.eq.s32.totalorder %v2017, 1
        %vm2038 = vcmp.eq.s32.totalorder %v2018, 1
        %v2039 = vsel %vm2019, %v1897, 0.0
        %v2040 = vsel %vm2020, %v1898, 0.0
        %v2041 = vsel %vm2021, %v1899, 0.0
        %v2042 = vsel %vm2022, %v1900, 0.0
        %v2043 = vsel %vm2023, %v1901, 0.0
        %v2044 = vsel %vm2024, %v1902, 0.0
        %v2045 = vsel %vm2025, %v1903, 0.0
        %v2046 = vsel %vm2026, %v1904, 0.0
        %v2047 = vsel %vm2027, %v1905, 0.0
        %v2048 = vsel %vm2028, %v1906, 0.0
        %v2049 = vsel %vm2029, %v1907, 0.0
        %v2050 = vsel %vm2030, %v1908, 0.0
        %v2051 = vsel %vm2031, %v1909, 0.0
        %v2052 = vsel %vm2032, %v1910, 0.0
        %v2053 = vsel %vm2033, %v1911, 0.0
        %v2054 = vsel %vm2034, %v1912, 0.0
        %v2055 = vsel %vm2035, %v1913, 0.0
        %v2056 = vsel %vm2036, %v1914, 0.0
        %v2057 = vsel %vm2037, %v1915, 0.0
        %v2058 = vsel %vm2038, %v1916, 0.0
        %2079 = vrot.lane.b32.xlu0 %v2039, 1
        %v2080 = vpop.permute.xlu0 %2079
        %2081 = vrot.lane.b32.xlu0 %v2040, 1
        %v2082 = vpop.permute.xlu0 %2081
        %2083 = vrot.lane.b32.xlu0 %v2041, 1
        %v2084 = vpop.permute.xlu0 %2083
        %2085 = vrot.lane.b32.xlu0 %v2042, 1
        %v2086 = vpop.permute.xlu0 %2085
        %2087 = vrot.lane.b32.xlu0 %v2043, 1
        %v2088 = vpop.permute.xlu0 %2087
        %2089 = vrot.lane.b32.xlu0 %v2044, 1
        %v2090 = vpop.permute.xlu0 %2089
        %2091 = vrot.lane.b32.xlu0 %v2045, 1
        %v2092 = vpop.permute.xlu0 %2091
        %2093 = vrot.lane.b32.xlu0 %v2046, 1
        %v2094 = vpop.permute.xlu0 %2093
        %2095 = vrot.lane.b32.xlu0 %v2047, 1
        %v2096 = vpop.permute.xlu0 %2095
        %2097 = vrot.lane.b32.xlu0 %v2048, 1
        %v2098 = vpop.permute.xlu0 %2097
        %2099 = vrot.lane.b32.xlu0 %v2049, 1
        %v2100 = vpop.permute.xlu0 %2099
        %2101 = vrot.lane.b32.xlu0 %v2050, 1
        %v2102 = vpop.permute.xlu0 %2101
        %2103 = vrot.lane.b32.xlu0 %v2051, 1
        %v2104 = vpop.permute.xlu0 %2103
        %2105 = vrot.lane.b32.xlu0 %v2052, 1
        %v2106 = vpop.permute.xlu0 %2105
        %2107 = vrot.lane.b32.xlu0 %v2053, 1
        %v2108 = vpop.permute.xlu0 %2107
        %2109 = vrot.lane.b32.xlu0 %v2054, 1
        %v2110 = vpop.permute.xlu0 %2109
        %2111 = vrot.lane.b32.xlu0 %v2055, 1
        %v2112 = vpop.permute.xlu0 %2111
        %2113 = vrot.lane.b32.xlu0 %v2056, 1
        %v2114 = vpop.permute.xlu0 %2113
        %2115 = vrot.lane.b32.xlu0 %v2057, 1
        %v2116 = vpop.permute.xlu0 %2115
        %2117 = vrot.lane.b32.xlu0 %v2058, 1
        %v2118 = vpop.permute.xlu0 %2117
        %vm2139 = vcmask 7168
        %v2140 = vsel %vm2139, 0.0, %v2080
        %v2141 = vsel %vm2139, 0.0, %v2082
        %v2142 = vsel %vm2139, 0.0, %v2084
        %v2143 = vsel %vm2139, 0.0, %v2086
        %v2144 = vsel %vm2139, 0.0, %v2088
        %v2145 = vsel %vm2139, 0.0, %v2090
        %v2146 = vsel %vm2139, 0.0, %v2092
        %v2147 = vsel %vm2139, 0.0, %v2094
        %v2148 = vsel %vm2139, 0.0, %v2096
        %v2149 = vsel %vm2139, 0.0, %v2098
        %v2150 = vsel %vm2139, 0.0, %v2100
        %v2151 = vsel %vm2139, 0.0, %v2102
        %v2152 = vsel %vm2139, 0.0, %v2104
        %v2153 = vsel %vm2139, 0.0, %v2106
        %v2154 = vsel %vm2139, 0.0, %v2108
        %v2155 = vsel %vm2139, 0.0, %v2110
        %v2156 = vsel %vm2139, 0.0, %v2112
        %v2157 = vsel %vm2139, 0.0, %v2114
        %v2158 = vsel %vm2139, 0.0, %v2116
        %v2159 = vsel %vm2139, 0.0, %v2118
        %v2160 = vld [vmem:[%s7] sm:$0xff]
        %2162 = vset.pattern.permute.xlu0 0
        %2163 = vperm.xlu0 %2162, %v2160
        %v2164 = vpop.permute.xlu0 %2163
        %v2166 = vmul.f32 %v2164, %v2140
        %v2167 = vmul.f32 %v2164, %v2141
        %v2168 = vmul.f32 %v2164, %v2142
        %v2169 = vmul.f32 %v2164, %v2143
        %v2170 = vmul.f32 %v2164, %v2144
        %v2171 = vmul.f32 %v2164, %v2145
        %v2172 = vmul.f32 %v2164, %v2146
        %v2173 = vmul.f32 %v2164, %v2147
        %v2174 = vmul.f32 %v2164, %v2148
        %v2175 = vmul.f32 %v2164, %v2149
        %v2176 = vmul.f32 %v2164, %v2150
        %v2177 = vmul.f32 %v2164, %v2151
        %v2178 = vmul.f32 %v2164, %v2152
        %v2179 = vmul.f32 %v2164, %v2153
        %v2180 = vmul.f32 %v2164, %v2154
        %v2181 = vmul.f32 %v2164, %v2155
        %v2182 = vmul.f32 %v2164, %v2156
        %v2183 = vmul.f32 %v2164, %v2157
        %v2184 = vadd.f32 %v2166, 0.0
        %v2185 = vadd.f32 %v2167, 0.0
        %v2186 = vadd.f32 %v2168, 0.0
        %v2187 = vadd.f32 %v2169, 0.0
        %v2188 = vadd.f32 %v2170, 0.0
        %v2189 = vadd.f32 %v2171, 0.0
        %v2190 = vadd.f32 %v2172, 0.0
        %v2191 = vadd.f32 %v2173, 0.0
        %v2192 = vadd.f32 %v2174, 0.0
        %v2193 = vadd.f32 %v2175, 0.0
        %v2194 = vadd.f32 %v2176, 0.0
        %v2195 = vadd.f32 %v2177, 0.0
        %v2196 = vadd.f32 %v2178, 0.0
        %v2197 = vadd.f32 %v2179, 0.0
        %v2198 = vadd.f32 %v2180, 0.0
        %v2199 = vadd.f32 %v2181, 0.0
        %v2200 = vadd.f32 %v2182, 0.0
        %v2201 = vadd.f32 %v2183, 0.0
        %s2202 = scalar_lea.vmem %s7, 24
        %v2203 = vld [vmem:[%s2202] sm:$0xff]
        %2205 = vset.pattern.permute.xlu0 0
        %2206 = vperm.xlu0 %2205, %v2203
        %v2207 = vpop.permute.xlu0 %2206
        %v2209 = vmul.f32 %v2207, %v2141
        %v2210 = vmul.f32 %v2207, %v2142
        %v2211 = vmul.f32 %v2207, %v2143
        %v2212 = vmul.f32 %v2207, %v2144
        %v2213 = vmul.f32 %v2207, %v2145
        %v2214 = vmul.f32 %v2207, %v2146
        %v2215 = vmul.f32 %v2207, %v2147
        %v2216 = vmul.f32 %v2207, %v2148
        %v2217 = vmul.f32 %v2207, %v2149
        %v2218 = vmul.f32 %v2207, %v2150
        %v2219 = vmul.f32 %v2207, %v2151
        %v2220 = vmul.f32 %v2207, %v2152
        %v2221 = vmul.f32 %v2207, %v2153
        %v2222 = vmul.f32 %v2207, %v2154
        %v2223 = vmul.f32 %v2207, %v2155
        %v2224 = vmul.f32 %v2207, %v2156
        %v2225 = vmul.f32 %v2207, %v2157
        %v2226 = vmul.f32 %v2207, %v2158
        %v2227 = vadd.f32 %v2184, %v2209
        %v2228 = vadd.f32 %v2185, %v2210
        %v2229 = vadd.f32 %v2186, %v2211
        %v2230 = vadd.f32 %v2187, %v2212
        %v2231 = vadd.f32 %v2188, %v2213
        %v2232 = vadd.f32 %v2189, %v2214
        %v2233 = vadd.f32 %v2190, %v2215
        %v2234 = vadd.f32 %v2191, %v2216
        %v2235 = vadd.f32 %v2192, %v2217
        %v2236 = vadd.f32 %v2193, %v2218
        %v2237 = vadd.f32 %v2194, %v2219
        %v2238 = vadd.f32 %v2195, %v2220
        %v2239 = vadd.f32 %v2196, %v2221
        %v2240 = vadd.f32 %v2197, %v2222
        %v2241 = vadd.f32 %v2198, %v2223
        %v2242 = vadd.f32 %v2199, %v2224
        %v2243 = vadd.f32 %v2200, %v2225
        %v2244 = vadd.f32 %v2201, %v2226
        %s2245 = scalar_lea.vmem %s7, 48
        %v2246 = vld [vmem:[%s2245] sm:$0xff]
        %2248 = vset.pattern.permute.xlu0 0
        %2249 = vperm.xlu0 %2248, %v2246
        %v2250 = vpop.permute.xlu0 %2249
        %v2252 = vmul.f32 %v2250, %v2142
        %v2253 = vmul.f32 %v2250, %v2143
        %v2254 = vmul.f32 %v2250, %v2144
        %v2255 = vmul.f32 %v2250, %v2145
        %v2256 = vmul.f32 %v2250, %v2146
        %v2257 = vmul.f32 %v2250, %v2147
        %v2258 = vmul.f32 %v2250, %v2148
        %v2259 = vmul.f32 %v2250, %v2149
        %v2260 = vmul.f32 %v2250, %v2150
        %v2261 = vmul.f32 %v2250, %v2151
        %v2262 = vmul.f32 %v2250, %v2152
        %v2263 = vmul.f32 %v2250, %v2153
        %v2264 = vmul.f32 %v2250, %v2154
        %v2265 = vmul.f32 %v2250, %v2155
        %v2266 = vmul.f32 %v2250, %v2156
        %v2267 = vmul.f32 %v2250, %v2157
        %v2268 = vmul.f32 %v2250, %v2158
        %v2269 = vmul.f32 %v2250, %v2159
        %v2270 = vadd.f32 %v2227, %v2252
        %v2271 = vadd.f32 %v2228, %v2253
        %v2272 = vadd.f32 %v2229, %v2254
        %v2273 = vadd.f32 %v2230, %v2255
        %v2274 = vadd.f32 %v2231, %v2256
        %v2275 = vadd.f32 %v2232, %v2257
        %v2276 = vadd.f32 %v2233, %v2258
        %v2277 = vadd.f32 %v2234, %v2259
        %v2278 = vadd.f32 %v2235, %v2260
        %v2279 = vadd.f32 %v2236, %v2261
        %v2280 = vadd.f32 %v2237, %v2262
        %v2281 = vadd.f32 %v2238, %v2263
        %v2282 = vadd.f32 %v2239, %v2264
        %v2283 = vadd.f32 %v2240, %v2265
        %v2284 = vadd.f32 %v2241, %v2266
        %v2285 = vadd.f32 %v2242, %v2267
        %v2286 = vadd.f32 %v2243, %v2268
        %v2287 = vadd.f32 %v2244, %v2269
        %s2288 = scalar_lea.vmem %s7, 8
        %v2289 = vld [vmem:[%s2288] sm:$0xff]
        %2291 = vset.pattern.permute.xlu0 0
        %2292 = vperm.xlu0 %2291, %v2289
        %v2293 = vpop.permute.xlu0 %2292
        %v2295 = vmul.f32 %v2293, %v2039
        %v2296 = vmul.f32 %v2293, %v2040
        %v2297 = vmul.f32 %v2293, %v2041
        %v2298 = vmul.f32 %v2293, %v2042
        %v2299 = vmul.f32 %v2293, %v2043
        %v2300 = vmul.f32 %v2293, %v2044
        %v2301 = vmul.f32 %v2293, %v2045
        %v2302 = vmul.f32 %v2293, %v2046
        %v2303 = vmul.f32 %v2293, %v2047
        %v2304 = vmul.f32 %v2293, %v2048
        %v2305 = vmul.f32 %v2293, %v2049
        %v2306 = vmul.f32 %v2293, %v2050
        %v2307 = vmul.f32 %v2293, %v2051
        %v2308 = vmul.f32 %v2293, %v2052
        %v2309 = vmul.f32 %v2293, %v2053
        %v2310 = vmul.f32 %v2293, %v2054
        %v2311 = vmul.f32 %v2293, %v2055
        %v2312 = vmul.f32 %v2293, %v2056
        %v2313 = vadd.f32 %v2270, %v2295
        %v2314 = vadd.f32 %v2271, %v2296
        %v2315 = vadd.f32 %v2272, %v2297
        %v2316 = vadd.f32 %v2273, %v2298
        %v2317 = vadd.f32 %v2274, %v2299
        %v2318 = vadd.f32 %v2275, %v2300
        %v2319 = vadd.f32 %v2276, %v2301
        %v2320 = vadd.f32 %v2277, %v2302
        %v2321 = vadd.f32 %v2278, %v2303
        %v2322 = vadd.f32 %v2279, %v2304
        %v2323 = vadd.f32 %v2280, %v2305
        %v2324 = vadd.f32 %v2281, %v2306
        %v2325 = vadd.f32 %v2282, %v2307
        %v2326 = vadd.f32 %v2283, %v2308
        %v2327 = vadd.f32 %v2284, %v2309
        %v2328 = vadd.f32 %v2285, %v2310
        %v2329 = vadd.f32 %v2286, %v2311
        %v2330 = vadd.f32 %v2287, %v2312
        %s2331 = scalar_lea.vmem %s7, 32
        %v2332 = vld [vmem:[%s2331] sm:$0xff]
        %2334 = vset.pattern.permute.xlu0 0
        %2335 = vperm.xlu0 %2334, %v2332
        %v2336 = vpop.permute.xlu0 %2335
        %v2338 = vmul.f32 %v2336, %v2040
        %v2339 = vmul.f32 %v2336, %v2041
        %v2340 = vmul.f32 %v2336, %v2042
        %v2341 = vmul.f32 %v2336, %v2043
        %v2342 = vmul.f32 %v2336, %v2044
        %v2343 = vmul.f32 %v2336, %v2045
        %v2344 = vmul.f32 %v2336, %v2046
        %v2345 = vmul.f32 %v2336, %v2047
        %v2346 = vmul.f32 %v2336, %v2048
        %v2347 = vmul.f32 %v2336, %v2049
        %v2348 = vmul.f32 %v2336, %v2050
        %v2349 = vmul.f32 %v2336, %v2051
        %v2350 = vmul.f32 %v2336, %v2052
        %v2351 = vmul.f32 %v2336, %v2053
        %v2352 = vmul.f32 %v2336, %v2054
        %v2353 = vmul.f32 %v2336, %v2055
        %v2354 = vmul.f32 %v2336, %v2056
        %v2355 = vmul.f32 %v2336, %v2057
        %v2356 = vadd.f32 %v2313, %v2338
        %v2357 = vadd.f32 %v2314, %v2339
        %v2358 = vadd.f32 %v2315, %v2340
        %v2359 = vadd.f32 %v2316, %v2341
        %v2360 = vadd.f32 %v2317, %v2342
        %v2361 = vadd.f32 %v2318, %v2343
        %v2362 = vadd.f32 %v2319, %v2344
        %v2363 = vadd.f32 %v2320, %v2345
        %v2364 = vadd.f32 %v2321, %v2346
        %v2365 = vadd.f32 %v2322, %v2347
        %v2366 = vadd.f32 %v2323, %v2348
        %v2367 = vadd.f32 %v2324, %v2349
        %v2368 = vadd.f32 %v2325, %v2350
        %v2369 = vadd.f32 %v2326, %v2351
        %v2370 = vadd.f32 %v2327, %v2352
        %v2371 = vadd.f32 %v2328, %v2353
        %v2372 = vadd.f32 %v2329, %v2354
        %v2373 = vadd.f32 %v2330, %v2355
        %s2374 = scalar_lea.vmem %s7, 56
        %v2375 = vld [vmem:[%s2374] sm:$0xff]
        %2377 = vset.pattern.permute.xlu0 0
        %2378 = vperm.xlu0 %2377, %v2375
        %v2379 = vpop.permute.xlu0 %2378
        %v2381 = vmul.f32 %v2379, %v2041
        %v2382 = vmul.f32 %v2379, %v2042
        %v2383 = vmul.f32 %v2379, %v2043
        %v2384 = vmul.f32 %v2379, %v2044
        %v2385 = vmul.f32 %v2379, %v2045
        %v2386 = vmul.f32 %v2379, %v2046
        %v2387 = vmul.f32 %v2379, %v2047
        %v2388 = vmul.f32 %v2379, %v2048
        %v2389 = vmul.f32 %v2379, %v2049
        %v2390 = vmul.f32 %v2379, %v2050
        %v2391 = vmul.f32 %v2379, %v2051
        %v2392 = vmul.f32 %v2379, %v2052
        %v2393 = vmul.f32 %v2379, %v2053
        %v2394 = vmul.f32 %v2379, %v2054
        %v2395 = vmul.f32 %v2379, %v2055
        %v2396 = vmul.f32 %v2379, %v2056
        %v2397 = vmul.f32 %v2379, %v2057
        %v2398 = vmul.f32 %v2379, %v2058
        %v2399 = vadd.f32 %v2356, %v2381
        %v2400 = vadd.f32 %v2357, %v2382
        %v2401 = vadd.f32 %v2358, %v2383
        %v2402 = vadd.f32 %v2359, %v2384
        %v2403 = vadd.f32 %v2360, %v2385
        %v2404 = vadd.f32 %v2361, %v2386
        %v2405 = vadd.f32 %v2362, %v2387
        %v2406 = vadd.f32 %v2363, %v2388
        %v2407 = vadd.f32 %v2364, %v2389
        %v2408 = vadd.f32 %v2365, %v2390
        %v2409 = vadd.f32 %v2366, %v2391
        %v2410 = vadd.f32 %v2367, %v2392
        %v2411 = vadd.f32 %v2368, %v2393
        %v2412 = vadd.f32 %v2369, %v2394
        %v2413 = vadd.f32 %v2370, %v2395
        %v2414 = vadd.f32 %v2371, %v2396
        %v2415 = vadd.f32 %v2372, %v2397
        %v2416 = vadd.f32 %v2373, %v2398
        %2417 = vrot.lane.b32.xlu0 %v2039, 127
        %v2418 = vpop.permute.xlu0 %2417
        %2419 = vrot.lane.b32.xlu0 %v2040, 127
        %v2420 = vpop.permute.xlu0 %2419
        %2421 = vrot.lane.b32.xlu0 %v2041, 127
        %v2422 = vpop.permute.xlu0 %2421
        %2423 = vrot.lane.b32.xlu0 %v2042, 127
        %v2424 = vpop.permute.xlu0 %2423
        %2425 = vrot.lane.b32.xlu0 %v2043, 127
        %v2426 = vpop.permute.xlu0 %2425
        %2427 = vrot.lane.b32.xlu0 %v2044, 127
        %v2428 = vpop.permute.xlu0 %2427
        %2429 = vrot.lane.b32.xlu0 %v2045, 127
        %v2430 = vpop.permute.xlu0 %2429
        %2431 = vrot.lane.b32.xlu0 %v2046, 127
        %v2432 = vpop.permute.xlu0 %2431
        %2433 = vrot.lane.b32.xlu0 %v2047, 127
        %v2434 = vpop.permute.xlu0 %2433
        %2435 = vrot.lane.b32.xlu0 %v2048, 127
        %v2436 = vpop.permute.xlu0 %2435
        %2437 = vrot.lane.b32.xlu0 %v2049, 127
        %v2438 = vpop.permute.xlu0 %2437
        %2439 = vrot.lane.b32.xlu0 %v2050, 127
        %v2440 = vpop.permute.xlu0 %2439
        %2441 = vrot.lane.b32.xlu0 %v2051, 127
        %v2442 = vpop.permute.xlu0 %2441
        %2443 = vrot.lane.b32.xlu0 %v2052, 127
        %v2444 = vpop.permute.xlu0 %2443
        %2445 = vrot.lane.b32.xlu0 %v2053, 127
        %v2446 = vpop.permute.xlu0 %2445
        %2447 = vrot.lane.b32.xlu0 %v2054, 127
        %v2448 = vpop.permute.xlu0 %2447
        %2449 = vrot.lane.b32.xlu0 %v2055, 127
        %v2450 = vpop.permute.xlu0 %2449
        %2451 = vrot.lane.b32.xlu0 %v2056, 127
        %v2452 = vpop.permute.xlu0 %2451
        %2453 = vrot.lane.b32.xlu0 %v2057, 127
        %v2454 = vpop.permute.xlu0 %2453
        %2455 = vrot.lane.b32.xlu0 %v2058, 127
        %v2456 = vpop.permute.xlu0 %2455
        %vm2477 = vcmask 121856
        %v2478 = vsel %vm2477, %v2418, 0.0
        %v2479 = vsel %vm2477, %v2420, 0.0
        %v2480 = vsel %vm2477, %v2422, 0.0
        %v2481 = vsel %vm2477, %v2424, 0.0
        %v2482 = vsel %vm2477, %v2426, 0.0
        %v2483 = vsel %vm2477, %v2428, 0.0
        %v2484 = vsel %vm2477, %v2430, 0.0
        %v2485 = vsel %vm2477, %v2432, 0.0
        %v2486 = vsel %vm2477, %v2434, 0.0
        %v2487 = vsel %vm2477, %v2436, 0.0
        %v2488 = vsel %vm2477, %v2438, 0.0
        %v2489 = vsel %vm2477, %v2440, 0.0
        %v2490 = vsel %vm2477, %v2442, 0.0
        %v2491 = vsel %vm2477, %v2444, 0.0
        %v2492 = vsel %vm2477, %v2446, 0.0
        %v2493 = vsel %vm2477, %v2448, 0.0
        %v2494 = vsel %vm2477, %v2450, 0.0
        %v2495 = vsel %vm2477, %v2452, 0.0
        %v2496 = vsel %vm2477, %v2454, 0.0
        %v2497 = vsel %vm2477, %v2456, 0.0
        %s2498 = scalar_lea.vmem %s7, 16
        %v2499 = vld [vmem:[%s2498] sm:$0xff]
        %2501 = vset.pattern.permute.xlu0 0
        %2502 = vperm.xlu0 %2501, %v2499
        %v2503 = vpop.permute.xlu0 %2502
        %v2505 = vmul.f32 %v2503, %v2478
        %v2506 = vmul.f32 %v2503, %v2479
        %v2507 = vmul.f32 %v2503, %v2480
        %v2508 = vmul.f32 %v2503, %v2481
        %v2509 = vmul.f32 %v2503, %v2482
        %v2510 = vmul.f32 %v2503, %v2483
        %v2511 = vmul.f32 %v2503, %v2484
        %v2512 = vmul.f32 %v2503, %v2485
        %v2513 = vmul.f32 %v2503, %v2486
        %v2514 = vmul.f32 %v2503, %v2487
        %v2515 = vmul.f32 %v2503, %v2488
        %v2516 = vmul.f32 %v2503, %v2489
        %v2517 = vmul.f32 %v2503, %v2490
        %v2518 = vmul.f32 %v2503, %v2491
        %v2519 = vmul.f32 %v2503, %v2492
        %v2520 = vmul.f32 %v2503, %v2493
        %v2521 = vmul.f32 %v2503, %v2494
        %v2522 = vmul.f32 %v2503, %v2495
        %v2523 = vadd.f32 %v2399, %v2505
        %v2524 = vadd.f32 %v2400, %v2506
        %v2525 = vadd.f32 %v2401, %v2507
        %v2526 = vadd.f32 %v2402, %v2508
        %v2527 = vadd.f32 %v2403, %v2509
        %v2528 = vadd.f32 %v2404, %v2510
        %v2529 = vadd.f32 %v2405, %v2511
        %v2530 = vadd.f32 %v2406, %v2512
        %v2531 = vadd.f32 %v2407, %v2513
        %v2532 = vadd.f32 %v2408, %v2514
        %v2533 = vadd.f32 %v2409, %v2515
        %v2534 = vadd.f32 %v2410, %v2516
        %v2535 = vadd.f32 %v2411, %v2517
        %v2536 = vadd.f32 %v2412, %v2518
        %v2537 = vadd.f32 %v2413, %v2519
        %v2538 = vadd.f32 %v2414, %v2520
        %v2539 = vadd.f32 %v2415, %v2521
        %v2540 = vadd.f32 %v2416, %v2522
        %s2541 = scalar_lea.vmem %s7, 40
        %v2542 = vld [vmem:[%s2541] sm:$0xff]
        %2544 = vset.pattern.permute.xlu0 0
        %2545 = vperm.xlu0 %2544, %v2542
        %v2546 = vpop.permute.xlu0 %2545
        %v2548 = vmul.f32 %v2546, %v2479
        %v2549 = vmul.f32 %v2546, %v2480
        %v2550 = vmul.f32 %v2546, %v2481
        %v2551 = vmul.f32 %v2546, %v2482
        %v2552 = vmul.f32 %v2546, %v2483
        %v2553 = vmul.f32 %v2546, %v2484
        %v2554 = vmul.f32 %v2546, %v2485
        %v2555 = vmul.f32 %v2546, %v2486
        %v2556 = vmul.f32 %v2546, %v2487
        %v2557 = vmul.f32 %v2546, %v2488
        %v2558 = vmul.f32 %v2546, %v2489
        %v2559 = vmul.f32 %v2546, %v2490
        %v2560 = vmul.f32 %v2546, %v2491
        %v2561 = vmul.f32 %v2546, %v2492
        %v2562 = vmul.f32 %v2546, %v2493
        %v2563 = vmul.f32 %v2546, %v2494
        %v2564 = vmul.f32 %v2546, %v2495
        %v2565 = vmul.f32 %v2546, %v2496
        %v2566 = vadd.f32 %v2523, %v2548
        %v2567 = vadd.f32 %v2524, %v2549
        %v2568 = vadd.f32 %v2525, %v2550
        %v2569 = vadd.f32 %v2526, %v2551
        %v2570 = vadd.f32 %v2527, %v2552
        %v2571 = vadd.f32 %v2528, %v2553
        %v2572 = vadd.f32 %v2529, %v2554
        %v2573 = vadd.f32 %v2530, %v2555
        %v2574 = vadd.f32 %v2531, %v2556
        %v2575 = vadd.f32 %v2532, %v2557
        %v2576 = vadd.f32 %v2533, %v2558
        %v2577 = vadd.f32 %v2534, %v2559
        %v2578 = vadd.f32 %v2535, %v2560
        %v2579 = vadd.f32 %v2536, %v2561
        %v2580 = vadd.f32 %v2537, %v2562
        %v2581 = vadd.f32 %v2538, %v2563
        %v2582 = vadd.f32 %v2539, %v2564
        %v2583 = vadd.f32 %v2540, %v2565
        %s2584 = scalar_lea.vmem %s7, 64
        %v2585 = vld [vmem:[%s2584] sm:$0xff]
        %2587 = vset.pattern.permute.xlu0 0
        %2588 = vperm.xlu0 %2587, %v2585
        %v2589 = vpop.permute.xlu0 %2588
        %v2591 = vmul.f32 %v2589, %v2480
        %v2592 = vmul.f32 %v2589, %v2481
        %v2593 = vmul.f32 %v2589, %v2482
        %v2594 = vmul.f32 %v2589, %v2483
        %v2595 = vmul.f32 %v2589, %v2484
        %v2596 = vmul.f32 %v2589, %v2485
        %v2597 = vmul.f32 %v2589, %v2486
        %v2598 = vmul.f32 %v2589, %v2487
        %v2599 = vmul.f32 %v2589, %v2488
        %v2600 = vmul.f32 %v2589, %v2489
        %v2601 = vmul.f32 %v2589, %v2490
        %v2602 = vmul.f32 %v2589, %v2491
        %v2603 = vmul.f32 %v2589, %v2492
        %v2604 = vmul.f32 %v2589, %v2493
        %v2605 = vmul.f32 %v2589, %v2494
        %v2606 = vmul.f32 %v2589, %v2495
        %v2607 = vmul.f32 %v2589, %v2496
        %v2608 = vmul.f32 %v2589, %v2497
        %v2609 = vadd.f32 %v2566, %v2591
        %v2610 = vadd.f32 %v2567, %v2592
        %v2611 = vadd.f32 %v2568, %v2593
        %v2612 = vadd.f32 %v2569, %v2594
        %v2613 = vadd.f32 %v2570, %v2595
        %v2614 = vadd.f32 %v2571, %v2596
        %v2615 = vadd.f32 %v2572, %v2597
        %v2616 = vadd.f32 %v2573, %v2598
        %v2617 = vadd.f32 %v2574, %v2599
        %v2618 = vadd.f32 %v2575, %v2600
        %v2619 = vadd.f32 %v2576, %v2601
        %v2620 = vadd.f32 %v2577, %v2602
        %v2621 = vadd.f32 %v2578, %v2603
        %v2622 = vadd.f32 %v2579, %v2604
        %v2623 = vadd.f32 %v2580, %v2605
        %v2624 = vadd.f32 %v2581, %v2606
        %v2625 = vadd.f32 %v2582, %v2607
        %v2626 = vadd.f32 %v2583, %v2608
        %v2627 = vld [vmem:[%s8] sm:$0xff]
        %2629 = vset.pattern.permute.xlu0 0
        %2630 = vperm.xlu0 %2629, %v2627
        %v2631 = vpop.permute.xlu0 %2630
        %v2633 = vadd.f32 %v2609, %v2631
        %v2634 = vadd.f32 %v2610, %v2631
        %v2635 = vadd.f32 %v2611, %v2631
        %v2636 = vadd.f32 %v2612, %v2631
        %v2637 = vadd.f32 %v2613, %v2631
        %v2638 = vadd.f32 %v2614, %v2631
        %v2639 = vadd.f32 %v2615, %v2631
        %v2640 = vadd.f32 %v2616, %v2631
        %v2641 = vadd.f32 %v2617, %v2631
        %v2642 = vadd.f32 %v2618, %v2631
        %v2643 = vadd.f32 %v2619, %v2631
        %v2644 = vadd.f32 %v2620, %v2631
        %v2645 = vadd.f32 %v2621, %v2631
        %v2646 = vadd.f32 %v2622, %v2631
        %v2647 = vadd.f32 %v2623, %v2631
        %v2648 = vadd.f32 %v2624, %v2631
        %v2649 = vadd.f32 %v2625, %v2631
        %v2650 = vadd.f32 %v2626, %v2631
        %v2669 = vrot.slane %v2633, 4
        %v2670 = vrot.slane %v2634, 4
        %v2671 = vrot.slane %v2635, 4
        %v2672 = vrot.slane %v2636, 4
        %v2673 = vrot.slane %v2637, 4
        %v2674 = vrot.slane %v2638, 4
        %v2675 = vrot.slane %v2639, 4
        %v2676 = vrot.slane %v2640, 4
        %v2677 = vrot.slane %v2641, 4
        %v2678 = vrot.slane %v2642, 4
        %v2679 = vrot.slane %v2643, 4
        %v2680 = vrot.slane %v2644, 4
        %v2681 = vrot.slane %v2645, 4
        %v2682 = vrot.slane %v2646, 4
        %v2683 = vrot.slane %v2647, 4
        %v2684 = vrot.slane %v2648, 4
        %v2685 = vrot.slane %v2649, 4
        %v2686 = vrot.slane %v2650, 4
        %v2705 = vmul.f32 %v2633, %v2669
        %v2706 = vmul.f32 %v2634, %v2670
        %v2707 = vmul.f32 %v2635, %v2671
        %v2708 = vmul.f32 %v2636, %v2672
        %v2709 = vmul.f32 %v2637, %v2673
        %v2710 = vmul.f32 %v2638, %v2674
        %v2711 = vmul.f32 %v2639, %v2675
        %v2712 = vmul.f32 %v2640, %v2676
        %v2713 = vmul.f32 %v2641, %v2677
        %v2714 = vmul.f32 %v2642, %v2678
        %v2715 = vmul.f32 %v2643, %v2679
        %v2716 = vmul.f32 %v2644, %v2680
        %v2717 = vmul.f32 %v2645, %v2681
        %v2718 = vmul.f32 %v2646, %v2682
        %v2719 = vmul.f32 %v2647, %v2683
        %v2720 = vmul.f32 %v2648, %v2684
        %v2721 = vmul.f32 %v2649, %v2685
        %v2722 = vmul.f32 %v2650, %v2686
        %v2723 = vsel %vm2020, %v2705, 0.0
        %v2724 = vsel %vm2021, %v2706, 0.0
        %v2725 = vsel %vm2022, %v2707, 0.0
        %v2726 = vsel %vm2023, %v2708, 0.0
        %v2727 = vsel %vm2024, %v2709, 0.0
        %v2728 = vsel %vm2025, %v2710, 0.0
        %v2729 = vsel %vm2026, %v2711, 0.0
        %v2730 = vsel %vm2027, %v2712, 0.0
        %v2731 = vsel %vm2028, %v2713, 0.0
        %v2732 = vsel %vm2029, %v2714, 0.0
        %v2733 = vsel %vm2030, %v2715, 0.0
        %v2734 = vsel %vm2031, %v2716, 0.0
        %v2735 = vsel %vm2032, %v2717, 0.0
        %v2736 = vsel %vm2033, %v2718, 0.0
        %v2737 = vsel %vm2034, %v2719, 0.0
        %v2738 = vsel %vm2035, %v2720, 0.0
        %v2739 = vsel %vm2036, %v2721, 0.0
        %v2740 = vsel %vm2037, %v2722, 0.0
        %2759 = vrot.lane.b32.xlu0 %v2723, 1
        %v2760 = vpop.permute.xlu0 %2759
        %2761 = vrot.lane.b32.xlu0 %v2724, 1
        %v2762 = vpop.permute.xlu0 %2761
        %2763 = vrot.lane.b32.xlu0 %v2725, 1
        %v2764 = vpop.permute.xlu0 %2763
        %2765 = vrot.lane.b32.xlu0 %v2726, 1
        %v2766 = vpop.permute.xlu0 %2765
        %2767 = vrot.lane.b32.xlu0 %v2727, 1
        %v2768 = vpop.permute.xlu0 %2767
        %2769 = vrot.lane.b32.xlu0 %v2728, 1
        %v2770 = vpop.permute.xlu0 %2769
        %2771 = vrot.lane.b32.xlu0 %v2729, 1
        %v2772 = vpop.permute.xlu0 %2771
        %2773 = vrot.lane.b32.xlu0 %v2730, 1
        %v2774 = vpop.permute.xlu0 %2773
        %2775 = vrot.lane.b32.xlu0 %v2731, 1
        %v2776 = vpop.permute.xlu0 %2775
        %2777 = vrot.lane.b32.xlu0 %v2732, 1
        %v2778 = vpop.permute.xlu0 %2777
        %2779 = vrot.lane.b32.xlu0 %v2733, 1
        %v2780 = vpop.permute.xlu0 %2779
        %2781 = vrot.lane.b32.xlu0 %v2734, 1
        %v2782 = vpop.permute.xlu0 %2781
        %2783 = vrot.lane.b32.xlu0 %v2735, 1
        %v2784 = vpop.permute.xlu0 %2783
        %2785 = vrot.lane.b32.xlu0 %v2736, 1
        %v2786 = vpop.permute.xlu0 %2785
        %2787 = vrot.lane.b32.xlu0 %v2737, 1
        %v2788 = vpop.permute.xlu0 %2787
        %2789 = vrot.lane.b32.xlu0 %v2738, 1
        %v2790 = vpop.permute.xlu0 %2789
        %2791 = vrot.lane.b32.xlu0 %v2739, 1
        %v2792 = vpop.permute.xlu0 %2791
        %2793 = vrot.lane.b32.xlu0 %v2740, 1
        %v2794 = vpop.permute.xlu0 %2793
        %v2813 = vsel %vm2139, 0.0, %v2760
        %v2814 = vsel %vm2139, 0.0, %v2762
        %v2815 = vsel %vm2139, 0.0, %v2764
        %v2816 = vsel %vm2139, 0.0, %v2766
        %v2817 = vsel %vm2139, 0.0, %v2768
        %v2818 = vsel %vm2139, 0.0, %v2770
        %v2819 = vsel %vm2139, 0.0, %v2772
        %v2820 = vsel %vm2139, 0.0, %v2774
        %v2821 = vsel %vm2139, 0.0, %v2776
        %v2822 = vsel %vm2139, 0.0, %v2778
        %v2823 = vsel %vm2139, 0.0, %v2780
        %v2824 = vsel %vm2139, 0.0, %v2782
        %v2825 = vsel %vm2139, 0.0, %v2784
        %v2826 = vsel %vm2139, 0.0, %v2786
        %v2827 = vsel %vm2139, 0.0, %v2788
        %v2828 = vsel %vm2139, 0.0, %v2790
        %v2829 = vsel %vm2139, 0.0, %v2792
        %v2830 = vsel %vm2139, 0.0, %v2794
        %v2831 = vld [vmem:[%s9] sm:$0x1]
        %2833 = vset.pattern.permute.xlu0 0
        %2834 = vperm.xlu0 %2833, %v2831
        %v2835 = vpop.permute.xlu0 %2834
        %v2837 = vlaneseq
        %v2838 = vshrl.u32 %v2837, 7
        %v2839 = vsub.s32 0, %v2838
        %v2840 = vrot.slane %v2835, %v2839
        %v2841 = vmul.f32 %v2840, %v2813
        %v2842 = vmul.f32 %v2840, %v2814
        %v2843 = vmul.f32 %v2840, %v2815
        %v2844 = vmul.f32 %v2840, %v2816
        %v2845 = vmul.f32 %v2840, %v2817
        %v2846 = vmul.f32 %v2840, %v2818
        %v2847 = vmul.f32 %v2840, %v2819
        %v2848 = vmul.f32 %v2840, %v2820
        %v2849 = vmul.f32 %v2840, %v2821
        %v2850 = vmul.f32 %v2840, %v2822
        %v2851 = vmul.f32 %v2840, %v2823
        %v2852 = vmul.f32 %v2840, %v2824
        %v2853 = vmul.f32 %v2840, %v2825
        %v2854 = vmul.f32 %v2840, %v2826
        %v2855 = vmul.f32 %v2840, %v2827
        %v2856 = vmul.f32 %v2840, %v2828
        %v2857 = vadd.f32 %v2841, 0.0
        %v2858 = vadd.f32 %v2842, 0.0
        %v2859 = vadd.f32 %v2843, 0.0
        %v2860 = vadd.f32 %v2844, 0.0
        %v2861 = vadd.f32 %v2845, 0.0
        %v2862 = vadd.f32 %v2846, 0.0
        %v2863 = vadd.f32 %v2847, 0.0
        %v2864 = vadd.f32 %v2848, 0.0
        %v2865 = vadd.f32 %v2849, 0.0
        %v2866 = vadd.f32 %v2850, 0.0
        %v2867 = vadd.f32 %v2851, 0.0
        %v2868 = vadd.f32 %v2852, 0.0
        %v2869 = vadd.f32 %v2853, 0.0
        %v2870 = vadd.f32 %v2854, 0.0
        %v2871 = vadd.f32 %v2855, 0.0
        %v2872 = vadd.f32 %v2856, 0.0
        %s2873 = scalar_lea.vmem %s9, 9
        %v2874 = vld [vmem:[%s2873] sm:$0x1]
        %2876 = vset.pattern.permute.xlu0 0
        %2877 = vperm.xlu0 %2876, %v2874
        %v2878 = vpop.permute.xlu0 %2877
        %v2880 = vlaneseq
        %v2881 = vshrl.u32 %v2880, 7
        %v2882 = vsub.s32 0, %v2881
        %v2883 = vrot.slane %v2878, %v2882
        %v2884 = vmul.f32 %v2883, %v2813
        %v2885 = vmul.f32 %v2883, %v2814
        %v2886 = vmul.f32 %v2883, %v2815
        %v2887 = vmul.f32 %v2883, %v2816
        %v2888 = vmul.f32 %v2883, %v2817
        %v2889 = vmul.f32 %v2883, %v2818
        %v2890 = vmul.f32 %v2883, %v2819
        %v2891 = vmul.f32 %v2883, %v2820
        %v2892 = vmul.f32 %v2883, %v2821
        %v2893 = vmul.f32 %v2883, %v2822
        %v2894 = vmul.f32 %v2883, %v2823
        %v2895 = vmul.f32 %v2883, %v2824
        %v2896 = vmul.f32 %v2883, %v2825
        %v2897 = vmul.f32 %v2883, %v2826
        %v2898 = vmul.f32 %v2883, %v2827
        %v2899 = vmul.f32 %v2883, %v2828
        %v2900 = vadd.f32 %v2884, 0.0
        %v2901 = vadd.f32 %v2885, 0.0
        %v2902 = vadd.f32 %v2886, 0.0
        %v2903 = vadd.f32 %v2887, 0.0
        %v2904 = vadd.f32 %v2888, 0.0
        %v2905 = vadd.f32 %v2889, 0.0
        %v2906 = vadd.f32 %v2890, 0.0
        %v2907 = vadd.f32 %v2891, 0.0
        %v2908 = vadd.f32 %v2892, 0.0
        %v2909 = vadd.f32 %v2893, 0.0
        %v2910 = vadd.f32 %v2894, 0.0
        %v2911 = vadd.f32 %v2895, 0.0
        %v2912 = vadd.f32 %v2896, 0.0
        %v2913 = vadd.f32 %v2897, 0.0
        %v2914 = vadd.f32 %v2898, 0.0
        %v2915 = vadd.f32 %v2899, 0.0
        %s2916 = scalar_lea.vmem %s9, 18
        %v2917 = vld [vmem:[%s2916] sm:$0x1]
        %2919 = vset.pattern.permute.xlu0 0
        %2920 = vperm.xlu0 %2919, %v2917
        %v2921 = vpop.permute.xlu0 %2920
        %v2923 = vlaneseq
        %v2924 = vshrl.u32 %v2923, 7
        %v2925 = vsub.s32 0, %v2924
        %v2926 = vrot.slane %v2921, %v2925
        %v2927 = vmul.f32 %v2926, %v2813
        %v2928 = vmul.f32 %v2926, %v2814
        %v2929 = vmul.f32 %v2926, %v2815
        %v2930 = vmul.f32 %v2926, %v2816
        %v2931 = vmul.f32 %v2926, %v2817
        %v2932 = vmul.f32 %v2926, %v2818
        %v2933 = vmul.f32 %v2926, %v2819
        %v2934 = vmul.f32 %v2926, %v2820
        %v2935 = vmul.f32 %v2926, %v2821
        %v2936 = vmul.f32 %v2926, %v2822
        %v2937 = vmul.f32 %v2926, %v2823
        %v2938 = vmul.f32 %v2926, %v2824
        %v2939 = vmul.f32 %v2926, %v2825
        %v2940 = vmul.f32 %v2926, %v2826
        %v2941 = vmul.f32 %v2926, %v2827
        %v2942 = vmul.f32 %v2926, %v2828
        %v2943 = vadd.f32 %v2927, 0.0
        %v2944 = vadd.f32 %v2928, 0.0
        %v2945 = vadd.f32 %v2929, 0.0
        %v2946 = vadd.f32 %v2930, 0.0
        %v2947 = vadd.f32 %v2931, 0.0
        %v2948 = vadd.f32 %v2932, 0.0
        %v2949 = vadd.f32 %v2933, 0.0
        %v2950 = vadd.f32 %v2934, 0.0
        %v2951 = vadd.f32 %v2935, 0.0
        %v2952 = vadd.f32 %v2936, 0.0
        %v2953 = vadd.f32 %v2937, 0.0
        %v2954 = vadd.f32 %v2938, 0.0
        %v2955 = vadd.f32 %v2939, 0.0
        %v2956 = vadd.f32 %v2940, 0.0
        %v2957 = vadd.f32 %v2941, 0.0
        %v2958 = vadd.f32 %v2942, 0.0
        %s2959 = scalar_lea.vmem %s9, 27
        %v2960 = vld [vmem:[%s2959] sm:$0x1]
        %2962 = vset.pattern.permute.xlu0 0
        %2963 = vperm.xlu0 %2962, %v2960
        %v2964 = vpop.permute.xlu0 %2963
        %v2966 = vlaneseq
        %v2967 = vshrl.u32 %v2966, 7
        %v2968 = vsub.s32 0, %v2967
        %v2969 = vrot.slane %v2964, %v2968
        %v2970 = vmul.f32 %v2969, %v2813
        %v2971 = vmul.f32 %v2969, %v2814
        %v2972 = vmul.f32 %v2969, %v2815
        %v2973 = vmul.f32 %v2969, %v2816
        %v2974 = vmul.f32 %v2969, %v2817
        %v2975 = vmul.f32 %v2969, %v2818
        %v2976 = vmul.f32 %v2969, %v2819
        %v2977 = vmul.f32 %v2969, %v2820
        %v2978 = vmul.f32 %v2969, %v2821
        %v2979 = vmul.f32 %v2969, %v2822
        %v2980 = vmul.f32 %v2969, %v2823
        %v2981 = vmul.f32 %v2969, %v2824
        %v2982 = vmul.f32 %v2969, %v2825
        %v2983 = vmul.f32 %v2969, %v2826
        %v2984 = vmul.f32 %v2969, %v2827
        %v2985 = vmul.f32 %v2969, %v2828
        %v2986 = vadd.f32 %v2970, 0.0
        %v2987 = vadd.f32 %v2971, 0.0
        %v2988 = vadd.f32 %v2972, 0.0
        %v2989 = vadd.f32 %v2973, 0.0
        %v2990 = vadd.f32 %v2974, 0.0
        %v2991 = vadd.f32 %v2975, 0.0
        %v2992 = vadd.f32 %v2976, 0.0
        %v2993 = vadd.f32 %v2977, 0.0
        %v2994 = vadd.f32 %v2978, 0.0
        %v2995 = vadd.f32 %v2979, 0.0
        %v2996 = vadd.f32 %v2980, 0.0
        %v2997 = vadd.f32 %v2981, 0.0
        %v2998 = vadd.f32 %v2982, 0.0
        %v2999 = vadd.f32 %v2983, 0.0
        %v3000 = vadd.f32 %v2984, 0.0
        %v3001 = vadd.f32 %v2985, 0.0
        %s3002 = scalar_lea.vmem %s9, 3
        %v3003 = vld [vmem:[%s3002] sm:$0x1]
        %3005 = vset.pattern.permute.xlu0 0
        %3006 = vperm.xlu0 %3005, %v3003
        %v3007 = vpop.permute.xlu0 %3006
        %v3009 = vlaneseq
        %v3010 = vshrl.u32 %v3009, 7
        %v3011 = vsub.s32 0, %v3010
        %v3012 = vrot.slane %v3007, %v3011
        %v3013 = vmul.f32 %v3012, %v2814
        %v3014 = vmul.f32 %v3012, %v2815
        %v3015 = vmul.f32 %v3012, %v2816
        %v3016 = vmul.f32 %v3012, %v2817
        %v3017 = vmul.f32 %v3012, %v2818
        %v3018 = vmul.f32 %v3012, %v2819
        %v3019 = vmul.f32 %v3012, %v2820
        %v3020 = vmul.f32 %v3012, %v2821
        %v3021 = vmul.f32 %v3012, %v2822
        %v3022 = vmul.f32 %v3012, %v2823
        %v3023 = vmul.f32 %v3012, %v2824
        %v3024 = vmul.f32 %v3012, %v2825
        %v3025 = vmul.f32 %v3012, %v2826
        %v3026 = vmul.f32 %v3012, %v2827
        %v3027 = vmul.f32 %v3012, %v2828
        %v3028 = vmul.f32 %v3012, %v2829
        %v3029 = vadd.f32 %v2857, %v3013
        %v3030 = vadd.f32 %v2858, %v3014
        %v3031 = vadd.f32 %v2859, %v3015
        %v3032 = vadd.f32 %v2860, %v3016
        %v3033 = vadd.f32 %v2861, %v3017
        %v3034 = vadd.f32 %v2862, %v3018
        %v3035 = vadd.f32 %v2863, %v3019
        %v3036 = vadd.f32 %v2864, %v3020
        %v3037 = vadd.f32 %v2865, %v3021
        %v3038 = vadd.f32 %v2866, %v3022
        %v3039 = vadd.f32 %v2867, %v3023
        %v3040 = vadd.f32 %v2868, %v3024
        %v3041 = vadd.f32 %v2869, %v3025
        %v3042 = vadd.f32 %v2870, %v3026
        %v3043 = vadd.f32 %v2871, %v3027
        %v3044 = vadd.f32 %v2872, %v3028
        %s3045 = scalar_lea.vmem %s9, 12
        %v3046 = vld [vmem:[%s3045] sm:$0x1]
        %3048 = vset.pattern.permute.xlu0 0
        %3049 = vperm.xlu0 %3048, %v3046
        %v3050 = vpop.permute.xlu0 %3049
        %v3052 = vlaneseq
        %v3053 = vshrl.u32 %v3052, 7
        %v3054 = vsub.s32 0, %v3053
        %v3055 = vrot.slane %v3050, %v3054
        %v3056 = vmul.f32 %v3055, %v2814
        %v3057 = vmul.f32 %v3055, %v2815
        %v3058 = vmul.f32 %v3055, %v2816
        %v3059 = vmul.f32 %v3055, %v2817
        %v3060 = vmul.f32 %v3055, %v2818
        %v3061 = vmul.f32 %v3055, %v2819
        %v3062 = vmul.f32 %v3055, %v2820
        %v3063 = vmul.f32 %v3055, %v2821
        %v3064 = vmul.f32 %v3055, %v2822
        %v3065 = vmul.f32 %v3055, %v2823
        %v3066 = vmul.f32 %v3055, %v2824
        %v3067 = vmul.f32 %v3055, %v2825
        %v3068 = vmul.f32 %v3055, %v2826
        %v3069 = vmul.f32 %v3055, %v2827
        %v3070 = vmul.f32 %v3055, %v2828
        %v3071 = vmul.f32 %v3055, %v2829
        %v3072 = vadd.f32 %v2900, %v3056
        %v3073 = vadd.f32 %v2901, %v3057
        %v3074 = vadd.f32 %v2902, %v3058
        %v3075 = vadd.f32 %v2903, %v3059
        %v3076 = vadd.f32 %v2904, %v3060
        %v3077 = vadd.f32 %v2905, %v3061
        %v3078 = vadd.f32 %v2906, %v3062
        %v3079 = vadd.f32 %v2907, %v3063
        %v3080 = vadd.f32 %v2908, %v3064
        %v3081 = vadd.f32 %v2909, %v3065
        %v3082 = vadd.f32 %v2910, %v3066
        %v3083 = vadd.f32 %v2911, %v3067
        %v3084 = vadd.f32 %v2912, %v3068
        %v3085 = vadd.f32 %v2913, %v3069
        %v3086 = vadd.f32 %v2914, %v3070
        %v3087 = vadd.f32 %v2915, %v3071
        %s3088 = scalar_lea.vmem %s9, 21
        %v3089 = vld [vmem:[%s3088] sm:$0x1]
        %3091 = vset.pattern.permute.xlu0 0
        %3092 = vperm.xlu0 %3091, %v3089
        %v3093 = vpop.permute.xlu0 %3092
        %v3095 = vlaneseq
        %v3096 = vshrl.u32 %v3095, 7
        %v3097 = vsub.s32 0, %v3096
        %v3098 = vrot.slane %v3093, %v3097
        %v3099 = vmul.f32 %v3098, %v2814
        %v3100 = vmul.f32 %v3098, %v2815
        %v3101 = vmul.f32 %v3098, %v2816
        %v3102 = vmul.f32 %v3098, %v2817
        %v3103 = vmul.f32 %v3098, %v2818
        %v3104 = vmul.f32 %v3098, %v2819
        %v3105 = vmul.f32 %v3098, %v2820
        %v3106 = vmul.f32 %v3098, %v2821
        %v3107 = vmul.f32 %v3098, %v2822
        %v3108 = vmul.f32 %v3098, %v2823
        %v3109 = vmul.f32 %v3098, %v2824
        %v3110 = vmul.f32 %v3098, %v2825
        %v3111 = vmul.f32 %v3098, %v2826
        %v3112 = vmul.f32 %v3098, %v2827
        %v3113 = vmul.f32 %v3098, %v2828
        %v3114 = vmul.f32 %v3098, %v2829
        %v3115 = vadd.f32 %v2943, %v3099
        %v3116 = vadd.f32 %v2944, %v3100
        %v3117 = vadd.f32 %v2945, %v3101
        %v3118 = vadd.f32 %v2946, %v3102
        %v3119 = vadd.f32 %v2947, %v3103
        %v3120 = vadd.f32 %v2948, %v3104
        %v3121 = vadd.f32 %v2949, %v3105
        %v3122 = vadd.f32 %v2950, %v3106
        %v3123 = vadd.f32 %v2951, %v3107
        %v3124 = vadd.f32 %v2952, %v3108
        %v3125 = vadd.f32 %v2953, %v3109
        %v3126 = vadd.f32 %v2954, %v3110
        %v3127 = vadd.f32 %v2955, %v3111
        %v3128 = vadd.f32 %v2956, %v3112
        %v3129 = vadd.f32 %v2957, %v3113
        %v3130 = vadd.f32 %v2958, %v3114
        %s3131 = scalar_lea.vmem %s9, 30
        %v3132 = vld [vmem:[%s3131] sm:$0x1]
        %3134 = vset.pattern.permute.xlu0 0
        %3135 = vperm.xlu0 %3134, %v3132
        %v3136 = vpop.permute.xlu0 %3135
        %v3138 = vlaneseq
        %v3139 = vshrl.u32 %v3138, 7
        %v3140 = vsub.s32 0, %v3139
        %v3141 = vrot.slane %v3136, %v3140
        %v3142 = vmul.f32 %v3141, %v2814
        %v3143 = vmul.f32 %v3141, %v2815
        %v3144 = vmul.f32 %v3141, %v2816
        %v3145 = vmul.f32 %v3141, %v2817
        %v3146 = vmul.f32 %v3141, %v2818
        %v3147 = vmul.f32 %v3141, %v2819
        %v3148 = vmul.f32 %v3141, %v2820
        %v3149 = vmul.f32 %v3141, %v2821
        %v3150 = vmul.f32 %v3141, %v2822
        %v3151 = vmul.f32 %v3141, %v2823
        %v3152 = vmul.f32 %v3141, %v2824
        %v3153 = vmul.f32 %v3141, %v2825
        %v3154 = vmul.f32 %v3141, %v2826
        %v3155 = vmul.f32 %v3141, %v2827
        %v3156 = vmul.f32 %v3141, %v2828
        %v3157 = vmul.f32 %v3141, %v2829
        %v3158 = vadd.f32 %v2986, %v3142
        %v3159 = vadd.f32 %v2987, %v3143
        %v3160 = vadd.f32 %v2988, %v3144
        %v3161 = vadd.f32 %v2989, %v3145
        %v3162 = vadd.f32 %v2990, %v3146
        %v3163 = vadd.f32 %v2991, %v3147
        %v3164 = vadd.f32 %v2992, %v3148
        %v3165 = vadd.f32 %v2993, %v3149
        %v3166 = vadd.f32 %v2994, %v3150
        %v3167 = vadd.f32 %v2995, %v3151
        %v3168 = vadd.f32 %v2996, %v3152
        %v3169 = vadd.f32 %v2997, %v3153
        %v3170 = vadd.f32 %v2998, %v3154
        %v3171 = vadd.f32 %v2999, %v3155
        %v3172 = vadd.f32 %v3000, %v3156
        %v3173 = vadd.f32 %v3001, %v3157
        %s3174 = scalar_lea.vmem %s9, 6
        %v3175 = vld [vmem:[%s3174] sm:$0x1]
        %3177 = vset.pattern.permute.xlu0 0
        %3178 = vperm.xlu0 %3177, %v3175
        %v3179 = vpop.permute.xlu0 %3178
        %v3181 = vlaneseq
        %v3182 = vshrl.u32 %v3181, 7
        %v3183 = vsub.s32 0, %v3182
        %v3184 = vrot.slane %v3179, %v3183
        %v3185 = vmul.f32 %v3184, %v2815
        %v3186 = vmul.f32 %v3184, %v2816
        %v3187 = vmul.f32 %v3184, %v2817
        %v3188 = vmul.f32 %v3184, %v2818
        %v3189 = vmul.f32 %v3184, %v2819
        %v3190 = vmul.f32 %v3184, %v2820
        %v3191 = vmul.f32 %v3184, %v2821
        %v3192 = vmul.f32 %v3184, %v2822
        %v3193 = vmul.f32 %v3184, %v2823
        %v3194 = vmul.f32 %v3184, %v2824
        %v3195 = vmul.f32 %v3184, %v2825
        %v3196 = vmul.f32 %v3184, %v2826
        %v3197 = vmul.f32 %v3184, %v2827
        %v3198 = vmul.f32 %v3184, %v2828
        %v3199 = vmul.f32 %v3184, %v2829
        %v3200 = vmul.f32 %v3184, %v2830
        %v3201 = vadd.f32 %v3029, %v3185
        %v3202 = vadd.f32 %v3030, %v3186
        %v3203 = vadd.f32 %v3031, %v3187
        %v3204 = vadd.f32 %v3032, %v3188
        %v3205 = vadd.f32 %v3033, %v3189
        %v3206 = vadd.f32 %v3034, %v3190
        %v3207 = vadd.f32 %v3035, %v3191
        %v3208 = vadd.f32 %v3036, %v3192
        %v3209 = vadd.f32 %v3037, %v3193
        %v3210 = vadd.f32 %v3038, %v3194
        %v3211 = vadd.f32 %v3039, %v3195
        %v3212 = vadd.f32 %v3040, %v3196
        %v3213 = vadd.f32 %v3041, %v3197
        %v3214 = vadd.f32 %v3042, %v3198
        %v3215 = vadd.f32 %v3043, %v3199
        %v3216 = vadd.f32 %v3044, %v3200
        %s3217 = scalar_lea.vmem %s9, 15
        %v3218 = vld [vmem:[%s3217] sm:$0x1]
        %3220 = vset.pattern.permute.xlu0 0
        %3221 = vperm.xlu0 %3220, %v3218
        %v3222 = vpop.permute.xlu0 %3221
        %v3224 = vlaneseq
        %v3225 = vshrl.u32 %v3224, 7
        %v3226 = vsub.s32 0, %v3225
        %v3227 = vrot.slane %v3222, %v3226
        %v3228 = vmul.f32 %v3227, %v2815
        %v3229 = vmul.f32 %v3227, %v2816
        %v3230 = vmul.f32 %v3227, %v2817
        %v3231 = vmul.f32 %v3227, %v2818
        %v3232 = vmul.f32 %v3227, %v2819
        %v3233 = vmul.f32 %v3227, %v2820
        %v3234 = vmul.f32 %v3227, %v2821
        %v3235 = vmul.f32 %v3227, %v2822
        %v3236 = vmul.f32 %v3227, %v2823
        %v3237 = vmul.f32 %v3227, %v2824
        %v3238 = vmul.f32 %v3227, %v2825
        %v3239 = vmul.f32 %v3227, %v2826
        %v3240 = vmul.f32 %v3227, %v2827
        %v3241 = vmul.f32 %v3227, %v2828
        %v3242 = vmul.f32 %v3227, %v2829
        %v3243 = vmul.f32 %v3227, %v2830
        %v3244 = vadd.f32 %v3072, %v3228
        %v3245 = vadd.f32 %v3073, %v3229
        %v3246 = vadd.f32 %v3074, %v3230
        %v3247 = vadd.f32 %v3075, %v3231
        %v3248 = vadd.f32 %v3076, %v3232
        %v3249 = vadd.f32 %v3077, %v3233
        %v3250 = vadd.f32 %v3078, %v3234
        %v3251 = vadd.f32 %v3079, %v3235
        %v3252 = vadd.f32 %v3080, %v3236
        %v3253 = vadd.f32 %v3081, %v3237
        %v3254 = vadd.f32 %v3082, %v3238
        %v3255 = vadd.f32 %v3083, %v3239
        %v3256 = vadd.f32 %v3084, %v3240
        %v3257 = vadd.f32 %v3085, %v3241
        %v3258 = vadd.f32 %v3086, %v3242
        %v3259 = vadd.f32 %v3087, %v3243
        %s3260 = scalar_lea.vmem %s9, 24
        %v3261 = vld [vmem:[%s3260] sm:$0x1]
        %3263 = vset.pattern.permute.xlu0 0
        %3264 = vperm.xlu0 %3263, %v3261
        %v3265 = vpop.permute.xlu0 %3264
        %v3267 = vlaneseq
        %v3268 = vshrl.u32 %v3267, 7
        %v3269 = vsub.s32 0, %v3268
        %v3270 = vrot.slane %v3265, %v3269
        %v3271 = vmul.f32 %v3270, %v2815
        %v3272 = vmul.f32 %v3270, %v2816
        %v3273 = vmul.f32 %v3270, %v2817
        %v3274 = vmul.f32 %v3270, %v2818
        %v3275 = vmul.f32 %v3270, %v2819
        %v3276 = vmul.f32 %v3270, %v2820
        %v3277 = vmul.f32 %v3270, %v2821
        %v3278 = vmul.f32 %v3270, %v2822
        %v3279 = vmul.f32 %v3270, %v2823
        %v3280 = vmul.f32 %v3270, %v2824
        %v3281 = vmul.f32 %v3270, %v2825
        %v3282 = vmul.f32 %v3270, %v2826
        %v3283 = vmul.f32 %v3270, %v2827
        %v3284 = vmul.f32 %v3270, %v2828
        %v3285 = vmul.f32 %v3270, %v2829
        %v3286 = vmul.f32 %v3270, %v2830
        %v3287 = vadd.f32 %v3115, %v3271
        %v3288 = vadd.f32 %v3116, %v3272
        %v3289 = vadd.f32 %v3117, %v3273
        %v3290 = vadd.f32 %v3118, %v3274
        %v3291 = vadd.f32 %v3119, %v3275
        %v3292 = vadd.f32 %v3120, %v3276
        %v3293 = vadd.f32 %v3121, %v3277
        %v3294 = vadd.f32 %v3122, %v3278
        %v3295 = vadd.f32 %v3123, %v3279
        %v3296 = vadd.f32 %v3124, %v3280
        %v3297 = vadd.f32 %v3125, %v3281
        %v3298 = vadd.f32 %v3126, %v3282
        %v3299 = vadd.f32 %v3127, %v3283
        %v3300 = vadd.f32 %v3128, %v3284
        %v3301 = vadd.f32 %v3129, %v3285
        %v3302 = vadd.f32 %v3130, %v3286
        %s3303 = scalar_lea.vmem %s9, 33
        %v3304 = vld [vmem:[%s3303] sm:$0x1]
        %3306 = vset.pattern.permute.xlu0 0
        %3307 = vperm.xlu0 %3306, %v3304
        %v3308 = vpop.permute.xlu0 %3307
        %v3310 = vlaneseq
        %v3311 = vshrl.u32 %v3310, 7
        %v3312 = vsub.s32 0, %v3311
        %v3313 = vrot.slane %v3308, %v3312
        %v3314 = vmul.f32 %v3313, %v2815
        %v3315 = vmul.f32 %v3313, %v2816
        %v3316 = vmul.f32 %v3313, %v2817
        %v3317 = vmul.f32 %v3313, %v2818
        %v3318 = vmul.f32 %v3313, %v2819
        %v3319 = vmul.f32 %v3313, %v2820
        %v3320 = vmul.f32 %v3313, %v2821
        %v3321 = vmul.f32 %v3313, %v2822
        %v3322 = vmul.f32 %v3313, %v2823
        %v3323 = vmul.f32 %v3313, %v2824
        %v3324 = vmul.f32 %v3313, %v2825
        %v3325 = vmul.f32 %v3313, %v2826
        %v3326 = vmul.f32 %v3313, %v2827
        %v3327 = vmul.f32 %v3313, %v2828
        %v3328 = vmul.f32 %v3313, %v2829
        %v3329 = vmul.f32 %v3313, %v2830
        %v3330 = vadd.f32 %v3158, %v3314
        %v3331 = vadd.f32 %v3159, %v3315
        %v3332 = vadd.f32 %v3160, %v3316
        %v3333 = vadd.f32 %v3161, %v3317
        %v3334 = vadd.f32 %v3162, %v3318
        %v3335 = vadd.f32 %v3163, %v3319
        %v3336 = vadd.f32 %v3164, %v3320
        %v3337 = vadd.f32 %v3165, %v3321
        %v3338 = vadd.f32 %v3166, %v3322
        %v3339 = vadd.f32 %v3167, %v3323
        %v3340 = vadd.f32 %v3168, %v3324
        %v3341 = vadd.f32 %v3169, %v3325
        %v3342 = vadd.f32 %v3170, %v3326
        %v3343 = vadd.f32 %v3171, %v3327
        %v3344 = vadd.f32 %v3172, %v3328
        %v3345 = vadd.f32 %v3173, %v3329
        %s3346 = scalar_lea.vmem %s9, 1
        %v3347 = vld [vmem:[%s3346] sm:$0x1]
        %3349 = vset.pattern.permute.xlu0 0
        %3350 = vperm.xlu0 %3349, %v3347
        %v3351 = vpop.permute.xlu0 %3350
        %v3353 = vlaneseq
        %v3354 = vshrl.u32 %v3353, 7
        %v3355 = vsub.s32 0, %v3354
        %v3356 = vrot.slane %v3351, %v3355
        %v3357 = vmul.f32 %v3356, %v2723
        %v3358 = vmul.f32 %v3356, %v2724
        %v3359 = vmul.f32 %v3356, %v2725
        %v3360 = vmul.f32 %v3356, %v2726
        %v3361 = vmul.f32 %v3356, %v2727
        %v3362 = vmul.f32 %v3356, %v2728
        %v3363 = vmul.f32 %v3356, %v2729
        %v3364 = vmul.f32 %v3356, %v2730
        %v3365 = vmul.f32 %v3356, %v2731
        %v3366 = vmul.f32 %v3356, %v2732
        %v3367 = vmul.f32 %v3356, %v2733
        %v3368 = vmul.f32 %v3356, %v2734
        %v3369 = vmul.f32 %v3356, %v2735
        %v3370 = vmul.f32 %v3356, %v2736
        %v3371 = vmul.f32 %v3356, %v2737
        %v3372 = vmul.f32 %v3356, %v2738
        %v3373 = vadd.f32 %v3201, %v3357
        %v3374 = vadd.f32 %v3202, %v3358
        %v3375 = vadd.f32 %v3203, %v3359
        %v3376 = vadd.f32 %v3204, %v3360
        %v3377 = vadd.f32 %v3205, %v3361
        %v3378 = vadd.f32 %v3206, %v3362
        %v3379 = vadd.f32 %v3207, %v3363
        %v3380 = vadd.f32 %v3208, %v3364
        %v3381 = vadd.f32 %v3209, %v3365
        %v3382 = vadd.f32 %v3210, %v3366
        %v3383 = vadd.f32 %v3211, %v3367
        %v3384 = vadd.f32 %v3212, %v3368
        %v3385 = vadd.f32 %v3213, %v3369
        %v3386 = vadd.f32 %v3214, %v3370
        %v3387 = vadd.f32 %v3215, %v3371
        %v3388 = vadd.f32 %v3216, %v3372
        %s3389 = scalar_lea.vmem %s9, 10
        %v3390 = vld [vmem:[%s3389] sm:$0x1]
        %3392 = vset.pattern.permute.xlu0 0
        %3393 = vperm.xlu0 %3392, %v3390
        %v3394 = vpop.permute.xlu0 %3393
        %v3396 = vlaneseq
        %v3397 = vshrl.u32 %v3396, 7
        %v3398 = vsub.s32 0, %v3397
        %v3399 = vrot.slane %v3394, %v3398
        %v3400 = vmul.f32 %v3399, %v2723
        %v3401 = vmul.f32 %v3399, %v2724
        %v3402 = vmul.f32 %v3399, %v2725
        %v3403 = vmul.f32 %v3399, %v2726
        %v3404 = vmul.f32 %v3399, %v2727
        %v3405 = vmul.f32 %v3399, %v2728
        %v3406 = vmul.f32 %v3399, %v2729
        %v3407 = vmul.f32 %v3399, %v2730
        %v3408 = vmul.f32 %v3399, %v2731
        %v3409 = vmul.f32 %v3399, %v2732
        %v3410 = vmul.f32 %v3399, %v2733
        %v3411 = vmul.f32 %v3399, %v2734
        %v3412 = vmul.f32 %v3399, %v2735
        %v3413 = vmul.f32 %v3399, %v2736
        %v3414 = vmul.f32 %v3399, %v2737
        %v3415 = vmul.f32 %v3399, %v2738
        %v3416 = vadd.f32 %v3244, %v3400
        %v3417 = vadd.f32 %v3245, %v3401
        %v3418 = vadd.f32 %v3246, %v3402
        %v3419 = vadd.f32 %v3247, %v3403
        %v3420 = vadd.f32 %v3248, %v3404
        %v3421 = vadd.f32 %v3249, %v3405
        %v3422 = vadd.f32 %v3250, %v3406
        %v3423 = vadd.f32 %v3251, %v3407
        %v3424 = vadd.f32 %v3252, %v3408
        %v3425 = vadd.f32 %v3253, %v3409
        %v3426 = vadd.f32 %v3254, %v3410
        %v3427 = vadd.f32 %v3255, %v3411
        %v3428 = vadd.f32 %v3256, %v3412
        %v3429 = vadd.f32 %v3257, %v3413
        %v3430 = vadd.f32 %v3258, %v3414
        %v3431 = vadd.f32 %v3259, %v3415
        %s3432 = scalar_lea.vmem %s9, 19
        %v3433 = vld [vmem:[%s3432] sm:$0x1]
        %3435 = vset.pattern.permute.xlu0 0
        %3436 = vperm.xlu0 %3435, %v3433
        %v3437 = vpop.permute.xlu0 %3436
        %v3439 = vlaneseq
        %v3440 = vshrl.u32 %v3439, 7
        %v3441 = vsub.s32 0, %v3440
        %v3442 = vrot.slane %v3437, %v3441
        %v3443 = vmul.f32 %v3442, %v2723
        %v3444 = vmul.f32 %v3442, %v2724
        %v3445 = vmul.f32 %v3442, %v2725
        %v3446 = vmul.f32 %v3442, %v2726
        %v3447 = vmul.f32 %v3442, %v2727
        %v3448 = vmul.f32 %v3442, %v2728
        %v3449 = vmul.f32 %v3442, %v2729
        %v3450 = vmul.f32 %v3442, %v2730
        %v3451 = vmul.f32 %v3442, %v2731
        %v3452 = vmul.f32 %v3442, %v2732
        %v3453 = vmul.f32 %v3442, %v2733
        %v3454 = vmul.f32 %v3442, %v2734
        %v3455 = vmul.f32 %v3442, %v2735
        %v3456 = vmul.f32 %v3442, %v2736
        %v3457 = vmul.f32 %v3442, %v2737
        %v3458 = vmul.f32 %v3442, %v2738
        %v3459 = vadd.f32 %v3287, %v3443
        %v3460 = vadd.f32 %v3288, %v3444
        %v3461 = vadd.f32 %v3289, %v3445
        %v3462 = vadd.f32 %v3290, %v3446
        %v3463 = vadd.f32 %v3291, %v3447
        %v3464 = vadd.f32 %v3292, %v3448
        %v3465 = vadd.f32 %v3293, %v3449
        %v3466 = vadd.f32 %v3294, %v3450
        %v3467 = vadd.f32 %v3295, %v3451
        %v3468 = vadd.f32 %v3296, %v3452
        %v3469 = vadd.f32 %v3297, %v3453
        %v3470 = vadd.f32 %v3298, %v3454
        %v3471 = vadd.f32 %v3299, %v3455
        %v3472 = vadd.f32 %v3300, %v3456
        %v3473 = vadd.f32 %v3301, %v3457
        %v3474 = vadd.f32 %v3302, %v3458
        %s3475 = scalar_lea.vmem %s9, 28
        %v3476 = vld [vmem:[%s3475] sm:$0x1]
        %3478 = vset.pattern.permute.xlu0 0
        %3479 = vperm.xlu0 %3478, %v3476
        %v3480 = vpop.permute.xlu0 %3479
        %v3482 = vlaneseq
        %v3483 = vshrl.u32 %v3482, 7
        %v3484 = vsub.s32 0, %v3483
        %v3485 = vrot.slane %v3480, %v3484
        %v3486 = vmul.f32 %v3485, %v2723
        %v3487 = vmul.f32 %v3485, %v2724
        %v3488 = vmul.f32 %v3485, %v2725
        %v3489 = vmul.f32 %v3485, %v2726
        %v3490 = vmul.f32 %v3485, %v2727
        %v3491 = vmul.f32 %v3485, %v2728
        %v3492 = vmul.f32 %v3485, %v2729
        %v3493 = vmul.f32 %v3485, %v2730
        %v3494 = vmul.f32 %v3485, %v2731
        %v3495 = vmul.f32 %v3485, %v2732
        %v3496 = vmul.f32 %v3485, %v2733
        %v3497 = vmul.f32 %v3485, %v2734
        %v3498 = vmul.f32 %v3485, %v2735
        %v3499 = vmul.f32 %v3485, %v2736
        %v3500 = vmul.f32 %v3485, %v2737
        %v3501 = vmul.f32 %v3485, %v2738
        %v3502 = vadd.f32 %v3330, %v3486
        %v3503 = vadd.f32 %v3331, %v3487
        %v3504 = vadd.f32 %v3332, %v3488
        %v3505 = vadd.f32 %v3333, %v3489
        %v3506 = vadd.f32 %v3334, %v3490
        %v3507 = vadd.f32 %v3335, %v3491
        %v3508 = vadd.f32 %v3336, %v3492
        %v3509 = vadd.f32 %v3337, %v3493
        %v3510 = vadd.f32 %v3338, %v3494
        %v3511 = vadd.f32 %v3339, %v3495
        %v3512 = vadd.f32 %v3340, %v3496
        %v3513 = vadd.f32 %v3341, %v3497
        %v3514 = vadd.f32 %v3342, %v3498
        %v3515 = vadd.f32 %v3343, %v3499
        %v3516 = vadd.f32 %v3344, %v3500
        %v3517 = vadd.f32 %v3345, %v3501
        %s3518 = scalar_lea.vmem %s9, 4
        %v3519 = vld [vmem:[%s3518] sm:$0x1]
        %3521 = vset.pattern.permute.xlu0 0
        %3522 = vperm.xlu0 %3521, %v3519
        %v3523 = vpop.permute.xlu0 %3522
        %v3525 = vlaneseq
        %v3526 = vshrl.u32 %v3525, 7
        %v3527 = vsub.s32 0, %v3526
        %v3528 = vrot.slane %v3523, %v3527
        %v3529 = vmul.f32 %v3528, %v2724
        %v3530 = vmul.f32 %v3528, %v2725
        %v3531 = vmul.f32 %v3528, %v2726
        %v3532 = vmul.f32 %v3528, %v2727
        %v3533 = vmul.f32 %v3528, %v2728
        %v3534 = vmul.f32 %v3528, %v2729
        %v3535 = vmul.f32 %v3528, %v2730
        %v3536 = vmul.f32 %v3528, %v2731
        %v3537 = vmul.f32 %v3528, %v2732
        %v3538 = vmul.f32 %v3528, %v2733
        %v3539 = vmul.f32 %v3528, %v2734
        %v3540 = vmul.f32 %v3528, %v2735
        %v3541 = vmul.f32 %v3528, %v2736
        %v3542 = vmul.f32 %v3528, %v2737
        %v3543 = vmul.f32 %v3528, %v2738
        %v3544 = vmul.f32 %v3528, %v2739
        %v3545 = vadd.f32 %v3373, %v3529
        %v3546 = vadd.f32 %v3374, %v3530
        %v3547 = vadd.f32 %v3375, %v3531
        %v3548 = vadd.f32 %v3376, %v3532
        %v3549 = vadd.f32 %v3377, %v3533
        %v3550 = vadd.f32 %v3378, %v3534
        %v3551 = vadd.f32 %v3379, %v3535
        %v3552 = vadd.f32 %v3380, %v3536
        %v3553 = vadd.f32 %v3381, %v3537
        %v3554 = vadd.f32 %v3382, %v3538
        %v3555 = vadd.f32 %v3383, %v3539
        %v3556 = vadd.f32 %v3384, %v3540
        %v3557 = vadd.f32 %v3385, %v3541
        %v3558 = vadd.f32 %v3386, %v3542
        %v3559 = vadd.f32 %v3387, %v3543
        %v3560 = vadd.f32 %v3388, %v3544
        %s3561 = scalar_lea.vmem %s9, 13
        %v3562 = vld [vmem:[%s3561] sm:$0x1]
        %3564 = vset.pattern.permute.xlu0 0
        %3565 = vperm.xlu0 %3564, %v3562
        %v3566 = vpop.permute.xlu0 %3565
        %v3568 = vlaneseq
        %v3569 = vshrl.u32 %v3568, 7
        %v3570 = vsub.s32 0, %v3569
        %v3571 = vrot.slane %v3566, %v3570
        %v3572 = vmul.f32 %v3571, %v2724
        %v3573 = vmul.f32 %v3571, %v2725
        %v3574 = vmul.f32 %v3571, %v2726
        %v3575 = vmul.f32 %v3571, %v2727
        %v3576 = vmul.f32 %v3571, %v2728
        %v3577 = vmul.f32 %v3571, %v2729
        %v3578 = vmul.f32 %v3571, %v2730
        %v3579 = vmul.f32 %v3571, %v2731
        %v3580 = vmul.f32 %v3571, %v2732
        %v3581 = vmul.f32 %v3571, %v2733
        %v3582 = vmul.f32 %v3571, %v2734
        %v3583 = vmul.f32 %v3571, %v2735
        %v3584 = vmul.f32 %v3571, %v2736
        %v3585 = vmul.f32 %v3571, %v2737
        %v3586 = vmul.f32 %v3571, %v2738
        %v3587 = vmul.f32 %v3571, %v2739
        %v3588 = vadd.f32 %v3416, %v3572
        %v3589 = vadd.f32 %v3417, %v3573
        %v3590 = vadd.f32 %v3418, %v3574
        %v3591 = vadd.f32 %v3419, %v3575
        %v3592 = vadd.f32 %v3420, %v3576
        %v3593 = vadd.f32 %v3421, %v3577
        %v3594 = vadd.f32 %v3422, %v3578
        %v3595 = vadd.f32 %v3423, %v3579
        %v3596 = vadd.f32 %v3424, %v3580
        %v3597 = vadd.f32 %v3425, %v3581
        %v3598 = vadd.f32 %v3426, %v3582
        %v3599 = vadd.f32 %v3427, %v3583
        %v3600 = vadd.f32 %v3428, %v3584
        %v3601 = vadd.f32 %v3429, %v3585
        %v3602 = vadd.f32 %v3430, %v3586
        %v3603 = vadd.f32 %v3431, %v3587
        %s3604 = scalar_lea.vmem %s9, 22
        %v3605 = vld [vmem:[%s3604] sm:$0x1]
        %3607 = vset.pattern.permute.xlu0 0
        %3608 = vperm.xlu0 %3607, %v3605
        %v3609 = vpop.permute.xlu0 %3608
        %v3611 = vlaneseq
        %v3612 = vshrl.u32 %v3611, 7
        %v3613 = vsub.s32 0, %v3612
        %v3614 = vrot.slane %v3609, %v3613
        %v3615 = vmul.f32 %v3614, %v2724
        %v3616 = vmul.f32 %v3614, %v2725
        %v3617 = vmul.f32 %v3614, %v2726
        %v3618 = vmul.f32 %v3614, %v2727
        %v3619 = vmul.f32 %v3614, %v2728
        %v3620 = vmul.f32 %v3614, %v2729
        %v3621 = vmul.f32 %v3614, %v2730
        %v3622 = vmul.f32 %v3614, %v2731
        %v3623 = vmul.f32 %v3614, %v2732
        %v3624 = vmul.f32 %v3614, %v2733
        %v3625 = vmul.f32 %v3614, %v2734
        %v3626 = vmul.f32 %v3614, %v2735
        %v3627 = vmul.f32 %v3614, %v2736
        %v3628 = vmul.f32 %v3614, %v2737
        %v3629 = vmul.f32 %v3614, %v2738
        %v3630 = vmul.f32 %v3614, %v2739
        %v3631 = vadd.f32 %v3459, %v3615
        %v3632 = vadd.f32 %v3460, %v3616
        %v3633 = vadd.f32 %v3461, %v3617
        %v3634 = vadd.f32 %v3462, %v3618
        %v3635 = vadd.f32 %v3463, %v3619
        %v3636 = vadd.f32 %v3464, %v3620
        %v3637 = vadd.f32 %v3465, %v3621
        %v3638 = vadd.f32 %v3466, %v3622
        %v3639 = vadd.f32 %v3467, %v3623
        %v3640 = vadd.f32 %v3468, %v3624
        %v3641 = vadd.f32 %v3469, %v3625
        %v3642 = vadd.f32 %v3470, %v3626
        %v3643 = vadd.f32 %v3471, %v3627
        %v3644 = vadd.f32 %v3472, %v3628
        %v3645 = vadd.f32 %v3473, %v3629
        %v3646 = vadd.f32 %v3474, %v3630
        %s3647 = scalar_lea.vmem %s9, 31
        %v3648 = vld [vmem:[%s3647] sm:$0x1]
        %3650 = vset.pattern.permute.xlu0 0
        %3651 = vperm.xlu0 %3650, %v3648
        %v3652 = vpop.permute.xlu0 %3651
        %v3654 = vlaneseq
        %v3655 = vshrl.u32 %v3654, 7
        %v3656 = vsub.s32 0, %v3655
        %v3657 = vrot.slane %v3652, %v3656
        %v3658 = vmul.f32 %v3657, %v2724
        %v3659 = vmul.f32 %v3657, %v2725
        %v3660 = vmul.f32 %v3657, %v2726
        %v3661 = vmul.f32 %v3657, %v2727
        %v3662 = vmul.f32 %v3657, %v2728
        %v3663 = vmul.f32 %v3657, %v2729
        %v3664 = vmul.f32 %v3657, %v2730
        %v3665 = vmul.f32 %v3657, %v2731
        %v3666 = vmul.f32 %v3657, %v2732
        %v3667 = vmul.f32 %v3657, %v2733
        %v3668 = vmul.f32 %v3657, %v2734
        %v3669 = vmul.f32 %v3657, %v2735
        %v3670 = vmul.f32 %v3657, %v2736
        %v3671 = vmul.f32 %v3657, %v2737
        %v3672 = vmul.f32 %v3657, %v2738
        %v3673 = vmul.f32 %v3657, %v2739
        %v3674 = vadd.f32 %v3502, %v3658
        %v3675 = vadd.f32 %v3503, %v3659
        %v3676 = vadd.f32 %v3504, %v3660
        %v3677 = vadd.f32 %v3505, %v3661
        %v3678 = vadd.f32 %v3506, %v3662
        %v3679 = vadd.f32 %v3507, %v3663
        %v3680 = vadd.f32 %v3508, %v3664
        %v3681 = vadd.f32 %v3509, %v3665
        %v3682 = vadd.f32 %v3510, %v3666
        %v3683 = vadd.f32 %v3511, %v3667
        %v3684 = vadd.f32 %v3512, %v3668
        %v3685 = vadd.f32 %v3513, %v3669
        %v3686 = vadd.f32 %v3514, %v3670
        %v3687 = vadd.f32 %v3515, %v3671
        %v3688 = vadd.f32 %v3516, %v3672
        %v3689 = vadd.f32 %v3517, %v3673
        %s3690 = scalar_lea.vmem %s9, 7
        %v3691 = vld [vmem:[%s3690] sm:$0x1]
        %3693 = vset.pattern.permute.xlu0 0
        %3694 = vperm.xlu0 %3693, %v3691
        %v3695 = vpop.permute.xlu0 %3694
        %v3697 = vlaneseq
        %v3698 = vshrl.u32 %v3697, 7
        %v3699 = vsub.s32 0, %v3698
        %v3700 = vrot.slane %v3695, %v3699
        %v3701 = vmul.f32 %v3700, %v2725
        %v3702 = vmul.f32 %v3700, %v2726
        %v3703 = vmul.f32 %v3700, %v2727
        %v3704 = vmul.f32 %v3700, %v2728
        %v3705 = vmul.f32 %v3700, %v2729
        %v3706 = vmul.f32 %v3700, %v2730
        %v3707 = vmul.f32 %v3700, %v2731
        %v3708 = vmul.f32 %v3700, %v2732
        %v3709 = vmul.f32 %v3700, %v2733
        %v3710 = vmul.f32 %v3700, %v2734
        %v3711 = vmul.f32 %v3700, %v2735
        %v3712 = vmul.f32 %v3700, %v2736
        %v3713 = vmul.f32 %v3700, %v2737
        %v3714 = vmul.f32 %v3700, %v2738
        %v3715 = vmul.f32 %v3700, %v2739
        %v3716 = vmul.f32 %v3700, %v2740
        %v3717 = vadd.f32 %v3545, %v3701
        %v3718 = vadd.f32 %v3546, %v3702
        %v3719 = vadd.f32 %v3547, %v3703
        %v3720 = vadd.f32 %v3548, %v3704
        %v3721 = vadd.f32 %v3549, %v3705
        %v3722 = vadd.f32 %v3550, %v3706
        %v3723 = vadd.f32 %v3551, %v3707
        %v3724 = vadd.f32 %v3552, %v3708
        %v3725 = vadd.f32 %v3553, %v3709
        %v3726 = vadd.f32 %v3554, %v3710
        %v3727 = vadd.f32 %v3555, %v3711
        %v3728 = vadd.f32 %v3556, %v3712
        %v3729 = vadd.f32 %v3557, %v3713
        %v3730 = vadd.f32 %v3558, %v3714
        %v3731 = vadd.f32 %v3559, %v3715
        %v3732 = vadd.f32 %v3560, %v3716
        %s3733 = scalar_lea.vmem %s9, 16
        %v3734 = vld [vmem:[%s3733] sm:$0x1]
        %3736 = vset.pattern.permute.xlu0 0
        %3737 = vperm.xlu0 %3736, %v3734
        %v3738 = vpop.permute.xlu0 %3737
        %v3740 = vlaneseq
        %v3741 = vshrl.u32 %v3740, 7
        %v3742 = vsub.s32 0, %v3741
        %v3743 = vrot.slane %v3738, %v3742
        %v3744 = vmul.f32 %v3743, %v2725
        %v3745 = vmul.f32 %v3743, %v2726
        %v3746 = vmul.f32 %v3743, %v2727
        %v3747 = vmul.f32 %v3743, %v2728
        %v3748 = vmul.f32 %v3743, %v2729
        %v3749 = vmul.f32 %v3743, %v2730
        %v3750 = vmul.f32 %v3743, %v2731
        %v3751 = vmul.f32 %v3743, %v2732
        %v3752 = vmul.f32 %v3743, %v2733
        %v3753 = vmul.f32 %v3743, %v2734
        %v3754 = vmul.f32 %v3743, %v2735
        %v3755 = vmul.f32 %v3743, %v2736
        %v3756 = vmul.f32 %v3743, %v2737
        %v3757 = vmul.f32 %v3743, %v2738
        %v3758 = vmul.f32 %v3743, %v2739
        %v3759 = vmul.f32 %v3743, %v2740
        %v3760 = vadd.f32 %v3588, %v3744
        %v3761 = vadd.f32 %v3589, %v3745
        %v3762 = vadd.f32 %v3590, %v3746
        %v3763 = vadd.f32 %v3591, %v3747
        %v3764 = vadd.f32 %v3592, %v3748
        %v3765 = vadd.f32 %v3593, %v3749
        %v3766 = vadd.f32 %v3594, %v3750
        %v3767 = vadd.f32 %v3595, %v3751
        %v3768 = vadd.f32 %v3596, %v3752
        %v3769 = vadd.f32 %v3597, %v3753
        %v3770 = vadd.f32 %v3598, %v3754
        %v3771 = vadd.f32 %v3599, %v3755
        %v3772 = vadd.f32 %v3600, %v3756
        %v3773 = vadd.f32 %v3601, %v3757
        %v3774 = vadd.f32 %v3602, %v3758
        %v3775 = vadd.f32 %v3603, %v3759
        %s3776 = scalar_lea.vmem %s9, 25
        %v3777 = vld [vmem:[%s3776] sm:$0x1]
        %3779 = vset.pattern.permute.xlu0 0
        %3780 = vperm.xlu0 %3779, %v3777
        %v3781 = vpop.permute.xlu0 %3780
        %v3783 = vlaneseq
        %v3784 = vshrl.u32 %v3783, 7
        %v3785 = vsub.s32 0, %v3784
        %v3786 = vrot.slane %v3781, %v3785
        %v3787 = vmul.f32 %v3786, %v2725
        %v3788 = vmul.f32 %v3786, %v2726
        %v3789 = vmul.f32 %v3786, %v2727
        %v3790 = vmul.f32 %v3786, %v2728
        %v3791 = vmul.f32 %v3786, %v2729
        %v3792 = vmul.f32 %v3786, %v2730
        %v3793 = vmul.f32 %v3786, %v2731
        %v3794 = vmul.f32 %v3786, %v2732
        %v3795 = vmul.f32 %v3786, %v2733
        %v3796 = vmul.f32 %v3786, %v2734
        %v3797 = vmul.f32 %v3786, %v2735
        %v3798 = vmul.f32 %v3786, %v2736
        %v3799 = vmul.f32 %v3786, %v2737
        %v3800 = vmul.f32 %v3786, %v2738
        %v3801 = vmul.f32 %v3786, %v2739
        %v3802 = vmul.f32 %v3786, %v2740
        %v3803 = vadd.f32 %v3631, %v3787
        %v3804 = vadd.f32 %v3632, %v3788
        %v3805 = vadd.f32 %v3633, %v3789
        %v3806 = vadd.f32 %v3634, %v3790
        %v3807 = vadd.f32 %v3635, %v3791
        %v3808 = vadd.f32 %v3636, %v3792
        %v3809 = vadd.f32 %v3637, %v3793
        %v3810 = vadd.f32 %v3638, %v3794
        %v3811 = vadd.f32 %v3639, %v3795
        %v3812 = vadd.f32 %v3640, %v3796
        %v3813 = vadd.f32 %v3641, %v3797
        %v3814 = vadd.f32 %v3642, %v3798
        %v3815 = vadd.f32 %v3643, %v3799
        %v3816 = vadd.f32 %v3644, %v3800
        %v3817 = vadd.f32 %v3645, %v3801
        %v3818 = vadd.f32 %v3646, %v3802
        %s3819 = scalar_lea.vmem %s9, 34
        %v3820 = vld [vmem:[%s3819] sm:$0x1]
        %3822 = vset.pattern.permute.xlu0 0
        %3823 = vperm.xlu0 %3822, %v3820
        %v3824 = vpop.permute.xlu0 %3823
        %v3826 = vlaneseq
        %v3827 = vshrl.u32 %v3826, 7
        %v3828 = vsub.s32 0, %v3827
        %v3829 = vrot.slane %v3824, %v3828
        %v3830 = vmul.f32 %v3829, %v2725
        %v3831 = vmul.f32 %v3829, %v2726
        %v3832 = vmul.f32 %v3829, %v2727
        %v3833 = vmul.f32 %v3829, %v2728
        %v3834 = vmul.f32 %v3829, %v2729
        %v3835 = vmul.f32 %v3829, %v2730
        %v3836 = vmul.f32 %v3829, %v2731
        %v3837 = vmul.f32 %v3829, %v2732
        %v3838 = vmul.f32 %v3829, %v2733
        %v3839 = vmul.f32 %v3829, %v2734
        %v3840 = vmul.f32 %v3829, %v2735
        %v3841 = vmul.f32 %v3829, %v2736
        %v3842 = vmul.f32 %v3829, %v2737
        %v3843 = vmul.f32 %v3829, %v2738
        %v3844 = vmul.f32 %v3829, %v2739
        %v3845 = vmul.f32 %v3829, %v2740
        %v3846 = vadd.f32 %v3674, %v3830
        %v3847 = vadd.f32 %v3675, %v3831
        %v3848 = vadd.f32 %v3676, %v3832
        %v3849 = vadd.f32 %v3677, %v3833
        %v3850 = vadd.f32 %v3678, %v3834
        %v3851 = vadd.f32 %v3679, %v3835
        %v3852 = vadd.f32 %v3680, %v3836
        %v3853 = vadd.f32 %v3681, %v3837
        %v3854 = vadd.f32 %v3682, %v3838
        %v3855 = vadd.f32 %v3683, %v3839
        %v3856 = vadd.f32 %v3684, %v3840
        %v3857 = vadd.f32 %v3685, %v3841
        %v3858 = vadd.f32 %v3686, %v3842
        %v3859 = vadd.f32 %v3687, %v3843
        %v3860 = vadd.f32 %v3688, %v3844
        %v3861 = vadd.f32 %v3689, %v3845
        %3862 = vrot.lane.b32.xlu0 %v2723, 127
        %v3863 = vpop.permute.xlu0 %3862
        %3864 = vrot.lane.b32.xlu0 %v2724, 127
        %v3865 = vpop.permute.xlu0 %3864
        %3866 = vrot.lane.b32.xlu0 %v2725, 127
        %v3867 = vpop.permute.xlu0 %3866
        %3868 = vrot.lane.b32.xlu0 %v2726, 127
        %v3869 = vpop.permute.xlu0 %3868
        %3870 = vrot.lane.b32.xlu0 %v2727, 127
        %v3871 = vpop.permute.xlu0 %3870
        %3872 = vrot.lane.b32.xlu0 %v2728, 127
        %v3873 = vpop.permute.xlu0 %3872
        %3874 = vrot.lane.b32.xlu0 %v2729, 127
        %v3875 = vpop.permute.xlu0 %3874
        %3876 = vrot.lane.b32.xlu0 %v2730, 127
        %v3877 = vpop.permute.xlu0 %3876
        %3878 = vrot.lane.b32.xlu0 %v2731, 127
        %v3879 = vpop.permute.xlu0 %3878
        %3880 = vrot.lane.b32.xlu0 %v2732, 127
        %v3881 = vpop.permute.xlu0 %3880
        %3882 = vrot.lane.b32.xlu0 %v2733, 127
        %v3883 = vpop.permute.xlu0 %3882
        %3884 = vrot.lane.b32.xlu0 %v2734, 127
        %v3885 = vpop.permute.xlu0 %3884
        %3886 = vrot.lane.b32.xlu0 %v2735, 127
        %v3887 = vpop.permute.xlu0 %3886
        %3888 = vrot.lane.b32.xlu0 %v2736, 127
        %v3889 = vpop.permute.xlu0 %3888
        %3890 = vrot.lane.b32.xlu0 %v2737, 127
        %v3891 = vpop.permute.xlu0 %3890
        %3892 = vrot.lane.b32.xlu0 %v2738, 127
        %v3893 = vpop.permute.xlu0 %3892
        %3894 = vrot.lane.b32.xlu0 %v2739, 127
        %v3895 = vpop.permute.xlu0 %3894
        %3896 = vrot.lane.b32.xlu0 %v2740, 127
        %v3897 = vpop.permute.xlu0 %3896
        %v3916 = vsel %vm2477, %v3863, 0.0
        %v3917 = vsel %vm2477, %v3865, 0.0
        %v3918 = vsel %vm2477, %v3867, 0.0
        %v3919 = vsel %vm2477, %v3869, 0.0
        %v3920 = vsel %vm2477, %v3871, 0.0
        %v3921 = vsel %vm2477, %v3873, 0.0
        %v3922 = vsel %vm2477, %v3875, 0.0
        %v3923 = vsel %vm2477, %v3877, 0.0
        %v3924 = vsel %vm2477, %v3879, 0.0
        %v3925 = vsel %vm2477, %v3881, 0.0
        %v3926 = vsel %vm2477, %v3883, 0.0
        %v3927 = vsel %vm2477, %v3885, 0.0
        %v3928 = vsel %vm2477, %v3887, 0.0
        %v3929 = vsel %vm2477, %v3889, 0.0
        %v3930 = vsel %vm2477, %v3891, 0.0
        %v3931 = vsel %vm2477, %v3893, 0.0
        %v3932 = vsel %vm2477, %v3895, 0.0
        %v3933 = vsel %vm2477, %v3897, 0.0
        %s3934 = scalar_lea.vmem %s9, 2
        %v3935 = vld [vmem:[%s3934] sm:$0x1]
        %3937 = vset.pattern.permute.xlu0 0
        %3938 = vperm.xlu0 %3937, %v3935
        %v3939 = vpop.permute.xlu0 %3938
        %v3941 = vlaneseq
        %v3942 = vshrl.u32 %v3941, 7
        %v3943 = vsub.s32 0, %v3942
        %v3944 = vrot.slane %v3939, %v3943
        %v3945 = vmul.f32 %v3944, %v3916
        %v3946 = vmul.f32 %v3944, %v3917
        %v3947 = vmul.f32 %v3944, %v3918
        %v3948 = vmul.f32 %v3944, %v3919
        %v3949 = vmul.f32 %v3944, %v3920
        %v3950 = vmul.f32 %v3944, %v3921
        %v3951 = vmul.f32 %v3944, %v3922
        %v3952 = vmul.f32 %v3944, %v3923
        %v3953 = vmul.f32 %v3944, %v3924
        %v3954 = vmul.f32 %v3944, %v3925
        %v3955 = vmul.f32 %v3944, %v3926
        %v3956 = vmul.f32 %v3944, %v3927
        %v3957 = vmul.f32 %v3944, %v3928
        %v3958 = vmul.f32 %v3944, %v3929
        %v3959 = vmul.f32 %v3944, %v3930
        %v3960 = vmul.f32 %v3944, %v3931
        %v3961 = vadd.f32 %v3717, %v3945
        %v3962 = vadd.f32 %v3718, %v3946
        %v3963 = vadd.f32 %v3719, %v3947
        %v3964 = vadd.f32 %v3720, %v3948
        %v3965 = vadd.f32 %v3721, %v3949
        %v3966 = vadd.f32 %v3722, %v3950
        %v3967 = vadd.f32 %v3723, %v3951
        %v3968 = vadd.f32 %v3724, %v3952
        %v3969 = vadd.f32 %v3725, %v3953
        %v3970 = vadd.f32 %v3726, %v3954
        %v3971 = vadd.f32 %v3727, %v3955
        %v3972 = vadd.f32 %v3728, %v3956
        %v3973 = vadd.f32 %v3729, %v3957
        %v3974 = vadd.f32 %v3730, %v3958
        %v3975 = vadd.f32 %v3731, %v3959
        %v3976 = vadd.f32 %v3732, %v3960
        %s3977 = scalar_lea.vmem %s9, 11
        %v3978 = vld [vmem:[%s3977] sm:$0x1]
        %3980 = vset.pattern.permute.xlu0 0
        %3981 = vperm.xlu0 %3980, %v3978
        %v3982 = vpop.permute.xlu0 %3981
        %v3984 = vlaneseq
        %v3985 = vshrl.u32 %v3984, 7
        %v3986 = vsub.s32 0, %v3985
        %v3987 = vrot.slane %v3982, %v3986
        %v3988 = vmul.f32 %v3987, %v3916
        %v3989 = vmul.f32 %v3987, %v3917
        %v3990 = vmul.f32 %v3987, %v3918
        %v3991 = vmul.f32 %v3987, %v3919
        %v3992 = vmul.f32 %v3987, %v3920
        %v3993 = vmul.f32 %v3987, %v3921
        %v3994 = vmul.f32 %v3987, %v3922
        %v3995 = vmul.f32 %v3987, %v3923
        %v3996 = vmul.f32 %v3987, %v3924
        %v3997 = vmul.f32 %v3987, %v3925
        %v3998 = vmul.f32 %v3987, %v3926
        %v3999 = vmul.f32 %v3987, %v3927
        %v4000 = vmul.f32 %v3987, %v3928
        %v4001 = vmul.f32 %v3987, %v3929
        %v4002 = vmul.f32 %v3987, %v3930
        %v4003 = vmul.f32 %v3987, %v3931
        %v4004 = vadd.f32 %v3760, %v3988
        %v4005 = vadd.f32 %v3761, %v3989
        %v4006 = vadd.f32 %v3762, %v3990
        %v4007 = vadd.f32 %v3763, %v3991
        %v4008 = vadd.f32 %v3764, %v3992
        %v4009 = vadd.f32 %v3765, %v3993
        %v4010 = vadd.f32 %v3766, %v3994
        %v4011 = vadd.f32 %v3767, %v3995
        %v4012 = vadd.f32 %v3768, %v3996
        %v4013 = vadd.f32 %v3769, %v3997
        %v4014 = vadd.f32 %v3770, %v3998
        %v4015 = vadd.f32 %v3771, %v3999
        %v4016 = vadd.f32 %v3772, %v4000
        %v4017 = vadd.f32 %v3773, %v4001
        %v4018 = vadd.f32 %v3774, %v4002
        %v4019 = vadd.f32 %v3775, %v4003
        %s4020 = scalar_lea.vmem %s9, 20
        %v4021 = vld [vmem:[%s4020] sm:$0x1]
        %4023 = vset.pattern.permute.xlu0 0
        %4024 = vperm.xlu0 %4023, %v4021
        %v4025 = vpop.permute.xlu0 %4024
        %v4027 = vlaneseq
        %v4028 = vshrl.u32 %v4027, 7
        %v4029 = vsub.s32 0, %v4028
        %v4030 = vrot.slane %v4025, %v4029
        %v4031 = vmul.f32 %v4030, %v3916
        %v4032 = vmul.f32 %v4030, %v3917
        %v4033 = vmul.f32 %v4030, %v3918
        %v4034 = vmul.f32 %v4030, %v3919
        %v4035 = vmul.f32 %v4030, %v3920
        %v4036 = vmul.f32 %v4030, %v3921
        %v4037 = vmul.f32 %v4030, %v3922
        %v4038 = vmul.f32 %v4030, %v3923
        %v4039 = vmul.f32 %v4030, %v3924
        %v4040 = vmul.f32 %v4030, %v3925
        %v4041 = vmul.f32 %v4030, %v3926
        %v4042 = vmul.f32 %v4030, %v3927
        %v4043 = vmul.f32 %v4030, %v3928
        %v4044 = vmul.f32 %v4030, %v3929
        %v4045 = vmul.f32 %v4030, %v3930
        %v4046 = vmul.f32 %v4030, %v3931
        %v4047 = vadd.f32 %v3803, %v4031
        %v4048 = vadd.f32 %v3804, %v4032
        %v4049 = vadd.f32 %v3805, %v4033
        %v4050 = vadd.f32 %v3806, %v4034
        %v4051 = vadd.f32 %v3807, %v4035
        %v4052 = vadd.f32 %v3808, %v4036
        %v4053 = vadd.f32 %v3809, %v4037
        %v4054 = vadd.f32 %v3810, %v4038
        %v4055 = vadd.f32 %v3811, %v4039
        %v4056 = vadd.f32 %v3812, %v4040
        %v4057 = vadd.f32 %v3813, %v4041
        %v4058 = vadd.f32 %v3814, %v4042
        %v4059 = vadd.f32 %v3815, %v4043
        %v4060 = vadd.f32 %v3816, %v4044
        %v4061 = vadd.f32 %v3817, %v4045
        %v4062 = vadd.f32 %v3818, %v4046
        %s4063 = scalar_lea.vmem %s9, 29
        %v4064 = vld [vmem:[%s4063] sm:$0x1]
        %4066 = vset.pattern.permute.xlu0 0
        %4067 = vperm.xlu0 %4066, %v4064
        %v4068 = vpop.permute.xlu0 %4067
        %v4070 = vlaneseq
        %v4071 = vshrl.u32 %v4070, 7
        %v4072 = vsub.s32 0, %v4071
        %v4073 = vrot.slane %v4068, %v4072
        %v4074 = vmul.f32 %v4073, %v3916
        %v4075 = vmul.f32 %v4073, %v3917
        %v4076 = vmul.f32 %v4073, %v3918
        %v4077 = vmul.f32 %v4073, %v3919
        %v4078 = vmul.f32 %v4073, %v3920
        %v4079 = vmul.f32 %v4073, %v3921
        %v4080 = vmul.f32 %v4073, %v3922
        %v4081 = vmul.f32 %v4073, %v3923
        %v4082 = vmul.f32 %v4073, %v3924
        %v4083 = vmul.f32 %v4073, %v3925
        %v4084 = vmul.f32 %v4073, %v3926
        %v4085 = vmul.f32 %v4073, %v3927
        %v4086 = vmul.f32 %v4073, %v3928
        %v4087 = vmul.f32 %v4073, %v3929
        %v4088 = vmul.f32 %v4073, %v3930
        %v4089 = vmul.f32 %v4073, %v3931
        %v4090 = vadd.f32 %v3846, %v4074
        %v4091 = vadd.f32 %v3847, %v4075
        %v4092 = vadd.f32 %v3848, %v4076
        %v4093 = vadd.f32 %v3849, %v4077
        %v4094 = vadd.f32 %v3850, %v4078
        %v4095 = vadd.f32 %v3851, %v4079
        %v4096 = vadd.f32 %v3852, %v4080
        %v4097 = vadd.f32 %v3853, %v4081
        %v4098 = vadd.f32 %v3854, %v4082
        %v4099 = vadd.f32 %v3855, %v4083
        %v4100 = vadd.f32 %v3856, %v4084
        %v4101 = vadd.f32 %v3857, %v4085
        %v4102 = vadd.f32 %v3858, %v4086
        %v4103 = vadd.f32 %v3859, %v4087
        %v4104 = vadd.f32 %v3860, %v4088
        %v4105 = vadd.f32 %v3861, %v4089
        %s4106 = scalar_lea.vmem %s9, 5
        %v4107 = vld [vmem:[%s4106] sm:$0x1]
        %4109 = vset.pattern.permute.xlu0 0
        %4110 = vperm.xlu0 %4109, %v4107
        %v4111 = vpop.permute.xlu0 %4110
        %v4113 = vlaneseq
        %v4114 = vshrl.u32 %v4113, 7
        %v4115 = vsub.s32 0, %v4114
        %v4116 = vrot.slane %v4111, %v4115
        %v4117 = vmul.f32 %v4116, %v3917
        %v4118 = vmul.f32 %v4116, %v3918
        %v4119 = vmul.f32 %v4116, %v3919
        %v4120 = vmul.f32 %v4116, %v3920
        %v4121 = vmul.f32 %v4116, %v3921
        %v4122 = vmul.f32 %v4116, %v3922
        %v4123 = vmul.f32 %v4116, %v3923
        %v4124 = vmul.f32 %v4116, %v3924
        %v4125 = vmul.f32 %v4116, %v3925
        %v4126 = vmul.f32 %v4116, %v3926
        %v4127 = vmul.f32 %v4116, %v3927
        %v4128 = vmul.f32 %v4116, %v3928
        %v4129 = vmul.f32 %v4116, %v3929
        %v4130 = vmul.f32 %v4116, %v3930
        %v4131 = vmul.f32 %v4116, %v3931
        %v4132 = vmul.f32 %v4116, %v3932
        %v4133 = vadd.f32 %v3961, %v4117
        %v4134 = vadd.f32 %v3962, %v4118
        %v4135 = vadd.f32 %v3963, %v4119
        %v4136 = vadd.f32 %v3964, %v4120
        %v4137 = vadd.f32 %v3965, %v4121
        %v4138 = vadd.f32 %v3966, %v4122
        %v4139 = vadd.f32 %v3967, %v4123
        %v4140 = vadd.f32 %v3968, %v4124
        %v4141 = vadd.f32 %v3969, %v4125
        %v4142 = vadd.f32 %v3970, %v4126
        %v4143 = vadd.f32 %v3971, %v4127
        %v4144 = vadd.f32 %v3972, %v4128
        %v4145 = vadd.f32 %v3973, %v4129
        %v4146 = vadd.f32 %v3974, %v4130
        %v4147 = vadd.f32 %v3975, %v4131
        %v4148 = vadd.f32 %v3976, %v4132
        %s4149 = scalar_lea.vmem %s9, 14
        %v4150 = vld [vmem:[%s4149] sm:$0x1]
        %4152 = vset.pattern.permute.xlu0 0
        %4153 = vperm.xlu0 %4152, %v4150
        %v4154 = vpop.permute.xlu0 %4153
        %v4156 = vlaneseq
        %v4157 = vshrl.u32 %v4156, 7
        %v4158 = vsub.s32 0, %v4157
        %v4159 = vrot.slane %v4154, %v4158
        %v4160 = vmul.f32 %v4159, %v3917
        %v4161 = vmul.f32 %v4159, %v3918
        %v4162 = vmul.f32 %v4159, %v3919
        %v4163 = vmul.f32 %v4159, %v3920
        %v4164 = vmul.f32 %v4159, %v3921
        %v4165 = vmul.f32 %v4159, %v3922
        %v4166 = vmul.f32 %v4159, %v3923
        %v4167 = vmul.f32 %v4159, %v3924
        %v4168 = vmul.f32 %v4159, %v3925
        %v4169 = vmul.f32 %v4159, %v3926
        %v4170 = vmul.f32 %v4159, %v3927
        %v4171 = vmul.f32 %v4159, %v3928
        %v4172 = vmul.f32 %v4159, %v3929
        %v4173 = vmul.f32 %v4159, %v3930
        %v4174 = vmul.f32 %v4159, %v3931
        %v4175 = vmul.f32 %v4159, %v3932
        %v4176 = vadd.f32 %v4004, %v4160
        %v4177 = vadd.f32 %v4005, %v4161
        %v4178 = vadd.f32 %v4006, %v4162
        %v4179 = vadd.f32 %v4007, %v4163
        %v4180 = vadd.f32 %v4008, %v4164
        %v4181 = vadd.f32 %v4009, %v4165
        %v4182 = vadd.f32 %v4010, %v4166
        %v4183 = vadd.f32 %v4011, %v4167
        %v4184 = vadd.f32 %v4012, %v4168
        %v4185 = vadd.f32 %v4013, %v4169
        %v4186 = vadd.f32 %v4014, %v4170
        %v4187 = vadd.f32 %v4015, %v4171
        %v4188 = vadd.f32 %v4016, %v4172
        %v4189 = vadd.f32 %v4017, %v4173
        %v4190 = vadd.f32 %v4018, %v4174
        %v4191 = vadd.f32 %v4019, %v4175
        %s4192 = scalar_lea.vmem %s9, 23
        %v4193 = vld [vmem:[%s4192] sm:$0x1]
        %4195 = vset.pattern.permute.xlu0 0
        %4196 = vperm.xlu0 %4195, %v4193
        %v4197 = vpop.permute.xlu0 %4196
        %v4199 = vlaneseq
        %v4200 = vshrl.u32 %v4199, 7
        %v4201 = vsub.s32 0, %v4200
        %v4202 = vrot.slane %v4197, %v4201
        %v4203 = vmul.f32 %v4202, %v3917
        %v4204 = vmul.f32 %v4202, %v3918
        %v4205 = vmul.f32 %v4202, %v3919
        %v4206 = vmul.f32 %v4202, %v3920
        %v4207 = vmul.f32 %v4202, %v3921
        %v4208 = vmul.f32 %v4202, %v3922
        %v4209 = vmul.f32 %v4202, %v3923
        %v4210 = vmul.f32 %v4202, %v3924
        %v4211 = vmul.f32 %v4202, %v3925
        %v4212 = vmul.f32 %v4202, %v3926
        %v4213 = vmul.f32 %v4202, %v3927
        %v4214 = vmul.f32 %v4202, %v3928
        %v4215 = vmul.f32 %v4202, %v3929
        %v4216 = vmul.f32 %v4202, %v3930
        %v4217 = vmul.f32 %v4202, %v3931
        %v4218 = vmul.f32 %v4202, %v3932
        %v4219 = vadd.f32 %v4047, %v4203
        %v4220 = vadd.f32 %v4048, %v4204
        %v4221 = vadd.f32 %v4049, %v4205
        %v4222 = vadd.f32 %v4050, %v4206
        %v4223 = vadd.f32 %v4051, %v4207
        %v4224 = vadd.f32 %v4052, %v4208
        %v4225 = vadd.f32 %v4053, %v4209
        %v4226 = vadd.f32 %v4054, %v4210
        %v4227 = vadd.f32 %v4055, %v4211
        %v4228 = vadd.f32 %v4056, %v4212
        %v4229 = vadd.f32 %v4057, %v4213
        %v4230 = vadd.f32 %v4058, %v4214
        %v4231 = vadd.f32 %v4059, %v4215
        %v4232 = vadd.f32 %v4060, %v4216
        %v4233 = vadd.f32 %v4061, %v4217
        %v4234 = vadd.f32 %v4062, %v4218
        %s4235 = scalar_lea.vmem %s9, 32
        %v4236 = vld [vmem:[%s4235] sm:$0x1]
        %4238 = vset.pattern.permute.xlu0 0
        %4239 = vperm.xlu0 %4238, %v4236
        %v4240 = vpop.permute.xlu0 %4239
        %v4242 = vlaneseq
        %v4243 = vshrl.u32 %v4242, 7
        %v4244 = vsub.s32 0, %v4243
        %v4245 = vrot.slane %v4240, %v4244
        %v4246 = vmul.f32 %v4245, %v3917
        %v4247 = vmul.f32 %v4245, %v3918
        %v4248 = vmul.f32 %v4245, %v3919
        %v4249 = vmul.f32 %v4245, %v3920
        %v4250 = vmul.f32 %v4245, %v3921
        %v4251 = vmul.f32 %v4245, %v3922
        %v4252 = vmul.f32 %v4245, %v3923
        %v4253 = vmul.f32 %v4245, %v3924
        %v4254 = vmul.f32 %v4245, %v3925
        %v4255 = vmul.f32 %v4245, %v3926
        %v4256 = vmul.f32 %v4245, %v3927
        %v4257 = vmul.f32 %v4245, %v3928
        %v4258 = vmul.f32 %v4245, %v3929
        %v4259 = vmul.f32 %v4245, %v3930
        %v4260 = vmul.f32 %v4245, %v3931
        %v4261 = vmul.f32 %v4245, %v3932
        %v4262 = vadd.f32 %v4090, %v4246
        %v4263 = vadd.f32 %v4091, %v4247
        %v4264 = vadd.f32 %v4092, %v4248
        %v4265 = vadd.f32 %v4093, %v4249
        %v4266 = vadd.f32 %v4094, %v4250
        %v4267 = vadd.f32 %v4095, %v4251
        %v4268 = vadd.f32 %v4096, %v4252
        %v4269 = vadd.f32 %v4097, %v4253
        %v4270 = vadd.f32 %v4098, %v4254
        %v4271 = vadd.f32 %v4099, %v4255
        %v4272 = vadd.f32 %v4100, %v4256
        %v4273 = vadd.f32 %v4101, %v4257
        %v4274 = vadd.f32 %v4102, %v4258
        %v4275 = vadd.f32 %v4103, %v4259
        %v4276 = vadd.f32 %v4104, %v4260
        %v4277 = vadd.f32 %v4105, %v4261
        %s4278 = scalar_lea.vmem %s9, 8
        %v4279 = vld [vmem:[%s4278] sm:$0x1]
        %4281 = vset.pattern.permute.xlu0 0
        %4282 = vperm.xlu0 %4281, %v4279
        %v4283 = vpop.permute.xlu0 %4282
        %v4285 = vlaneseq
        %v4286 = vshrl.u32 %v4285, 7
        %v4287 = vsub.s32 0, %v4286
        %v4288 = vrot.slane %v4283, %v4287
        %v4289 = vmul.f32 %v4288, %v3918
        %v4290 = vmul.f32 %v4288, %v3919
        %v4291 = vmul.f32 %v4288, %v3920
        %v4292 = vmul.f32 %v4288, %v3921
        %v4293 = vmul.f32 %v4288, %v3922
        %v4294 = vmul.f32 %v4288, %v3923
        %v4295 = vmul.f32 %v4288, %v3924
        %v4296 = vmul.f32 %v4288, %v3925
        %v4297 = vmul.f32 %v4288, %v3926
        %v4298 = vmul.f32 %v4288, %v3927
        %v4299 = vmul.f32 %v4288, %v3928
        %v4300 = vmul.f32 %v4288, %v3929
        %v4301 = vmul.f32 %v4288, %v3930
        %v4302 = vmul.f32 %v4288, %v3931
        %v4303 = vmul.f32 %v4288, %v3932
        %v4304 = vmul.f32 %v4288, %v3933
        %v4305 = vadd.f32 %v4133, %v4289
        %v4306 = vadd.f32 %v4134, %v4290
        %v4307 = vadd.f32 %v4135, %v4291
        %v4308 = vadd.f32 %v4136, %v4292
        %v4309 = vadd.f32 %v4137, %v4293
        %v4310 = vadd.f32 %v4138, %v4294
        %v4311 = vadd.f32 %v4139, %v4295
        %v4312 = vadd.f32 %v4140, %v4296
        %v4313 = vadd.f32 %v4141, %v4297
        %v4314 = vadd.f32 %v4142, %v4298
        %v4315 = vadd.f32 %v4143, %v4299
        %v4316 = vadd.f32 %v4144, %v4300
        %v4317 = vadd.f32 %v4145, %v4301
        %v4318 = vadd.f32 %v4146, %v4302
        %v4319 = vadd.f32 %v4147, %v4303
        %v4320 = vadd.f32 %v4148, %v4304
        %s4321 = scalar_lea.vmem %s9, 17
        %v4322 = vld [vmem:[%s4321] sm:$0x1]
        %4324 = vset.pattern.permute.xlu0 0
        %4325 = vperm.xlu0 %4324, %v4322
        %v4326 = vpop.permute.xlu0 %4325
        %v4328 = vlaneseq
        %v4329 = vshrl.u32 %v4328, 7
        %v4330 = vsub.s32 0, %v4329
        %v4331 = vrot.slane %v4326, %v4330
        %v4332 = vmul.f32 %v4331, %v3918
        %v4333 = vmul.f32 %v4331, %v3919
        %v4334 = vmul.f32 %v4331, %v3920
        %v4335 = vmul.f32 %v4331, %v3921
        %v4336 = vmul.f32 %v4331, %v3922
        %v4337 = vmul.f32 %v4331, %v3923
        %v4338 = vmul.f32 %v4331, %v3924
        %v4339 = vmul.f32 %v4331, %v3925
        %v4340 = vmul.f32 %v4331, %v3926
        %v4341 = vmul.f32 %v4331, %v3927
        %v4342 = vmul.f32 %v4331, %v3928
        %v4343 = vmul.f32 %v4331, %v3929
        %v4344 = vmul.f32 %v4331, %v3930
        %v4345 = vmul.f32 %v4331, %v3931
        %v4346 = vmul.f32 %v4331, %v3932
        %v4347 = vmul.f32 %v4331, %v3933
        %v4348 = vadd.f32 %v4176, %v4332
        %v4349 = vadd.f32 %v4177, %v4333
        %v4350 = vadd.f32 %v4178, %v4334
        %v4351 = vadd.f32 %v4179, %v4335
        %v4352 = vadd.f32 %v4180, %v4336
        %v4353 = vadd.f32 %v4181, %v4337
        %v4354 = vadd.f32 %v4182, %v4338
        %v4355 = vadd.f32 %v4183, %v4339
        %v4356 = vadd.f32 %v4184, %v4340
        %v4357 = vadd.f32 %v4185, %v4341
        %v4358 = vadd.f32 %v4186, %v4342
        %v4359 = vadd.f32 %v4187, %v4343
        %v4360 = vadd.f32 %v4188, %v4344
        %v4361 = vadd.f32 %v4189, %v4345
        %v4362 = vadd.f32 %v4190, %v4346
        %v4363 = vadd.f32 %v4191, %v4347
        %s4364 = scalar_lea.vmem %s9, 26
        %v4365 = vld [vmem:[%s4364] sm:$0x1]
        %4367 = vset.pattern.permute.xlu0 0
        %4368 = vperm.xlu0 %4367, %v4365
        %v4369 = vpop.permute.xlu0 %4368
        %v4371 = vlaneseq
        %v4372 = vshrl.u32 %v4371, 7
        %v4373 = vsub.s32 0, %v4372
        %v4374 = vrot.slane %v4369, %v4373
        %v4375 = vmul.f32 %v4374, %v3918
        %v4376 = vmul.f32 %v4374, %v3919
        %v4377 = vmul.f32 %v4374, %v3920
        %v4378 = vmul.f32 %v4374, %v3921
        %v4379 = vmul.f32 %v4374, %v3922
        %v4380 = vmul.f32 %v4374, %v3923
        %v4381 = vmul.f32 %v4374, %v3924
        %v4382 = vmul.f32 %v4374, %v3925
        %v4383 = vmul.f32 %v4374, %v3926
        %v4384 = vmul.f32 %v4374, %v3927
        %v4385 = vmul.f32 %v4374, %v3928
        %v4386 = vmul.f32 %v4374, %v3929
        %v4387 = vmul.f32 %v4374, %v3930
        %v4388 = vmul.f32 %v4374, %v3931
        %v4389 = vmul.f32 %v4374, %v3932
        %v4390 = vmul.f32 %v4374, %v3933
        %v4391 = vadd.f32 %v4219, %v4375
        %v4392 = vadd.f32 %v4220, %v4376
        %v4393 = vadd.f32 %v4221, %v4377
        %v4394 = vadd.f32 %v4222, %v4378
        %v4395 = vadd.f32 %v4223, %v4379
        %v4396 = vadd.f32 %v4224, %v4380
        %v4397 = vadd.f32 %v4225, %v4381
        %v4398 = vadd.f32 %v4226, %v4382
        %v4399 = vadd.f32 %v4227, %v4383
        %v4400 = vadd.f32 %v4228, %v4384
        %v4401 = vadd.f32 %v4229, %v4385
        %v4402 = vadd.f32 %v4230, %v4386
        %v4403 = vadd.f32 %v4231, %v4387
        %v4404 = vadd.f32 %v4232, %v4388
        %v4405 = vadd.f32 %v4233, %v4389
        %v4406 = vadd.f32 %v4234, %v4390
        %s4407 = scalar_lea.vmem %s9, 35
        %v4408 = vld [vmem:[%s4407] sm:$0x1]
        %4410 = vset.pattern.permute.xlu0 0
        %4411 = vperm.xlu0 %4410, %v4408
        %v4412 = vpop.permute.xlu0 %4411
        %v4414 = vlaneseq
        %v4415 = vshrl.u32 %v4414, 7
        %v4416 = vsub.s32 0, %v4415
        %v4417 = vrot.slane %v4412, %v4416
        %v4418 = vmul.f32 %v4417, %v3918
        %v4419 = vmul.f32 %v4417, %v3919
        %v4420 = vmul.f32 %v4417, %v3920
        %v4421 = vmul.f32 %v4417, %v3921
        %v4422 = vmul.f32 %v4417, %v3922
        %v4423 = vmul.f32 %v4417, %v3923
        %v4424 = vmul.f32 %v4417, %v3924
        %v4425 = vmul.f32 %v4417, %v3925
        %v4426 = vmul.f32 %v4417, %v3926
        %v4427 = vmul.f32 %v4417, %v3927
        %v4428 = vmul.f32 %v4417, %v3928
        %v4429 = vmul.f32 %v4417, %v3929
        %v4430 = vmul.f32 %v4417, %v3930
        %v4431 = vmul.f32 %v4417, %v3931
        %v4432 = vmul.f32 %v4417, %v3932
        %v4433 = vmul.f32 %v4417, %v3933
        %v4434 = vadd.f32 %v4262, %v4418
        %v4435 = vadd.f32 %v4263, %v4419
        %v4436 = vadd.f32 %v4264, %v4420
        %v4437 = vadd.f32 %v4265, %v4421
        %v4438 = vadd.f32 %v4266, %v4422
        %v4439 = vadd.f32 %v4267, %v4423
        %v4440 = vadd.f32 %v4268, %v4424
        %v4441 = vadd.f32 %v4269, %v4425
        %v4442 = vadd.f32 %v4270, %v4426
        %v4443 = vadd.f32 %v4271, %v4427
        %v4444 = vadd.f32 %v4272, %v4428
        %v4445 = vadd.f32 %v4273, %v4429
        %v4446 = vadd.f32 %v4274, %v4430
        %v4447 = vadd.f32 %v4275, %v4431
        %v4448 = vadd.f32 %v4276, %v4432
        %v4449 = vadd.f32 %v4277, %v4433
        %vm4450 = vcmask 1040384
        %v4451 = vsel %vm4450, %v4305, %v4348
        %v4452 = vsel %vm4450, %v4306, %v4349
        %v4453 = vsel %vm4450, %v4307, %v4350
        %v4454 = vsel %vm4450, %v4308, %v4351
        %v4455 = vsel %vm4450, %v4309, %v4352
        %v4456 = vsel %vm4450, %v4310, %v4353
        %v4457 = vsel %vm4450, %v4311, %v4354
        %v4458 = vsel %vm4450, %v4312, %v4355
        %v4459 = vsel %vm4450, %v4313, %v4356
        %v4460 = vsel %vm4450, %v4314, %v4357
        %v4461 = vsel %vm4450, %v4315, %v4358
        %v4462 = vsel %vm4450, %v4316, %v4359
        %v4463 = vsel %vm4450, %v4317, %v4360
        %v4464 = vsel %vm4450, %v4318, %v4361
        %v4465 = vsel %vm4450, %v4319, %v4362
        %v4466 = vsel %vm4450, %v4320, %v4363
        %vm4467 = vcmask 1041408
        %v4468 = vsel %vm4467, %v4451, %v4391
        %v4469 = vsel %vm4467, %v4452, %v4392
        %v4470 = vsel %vm4467, %v4453, %v4393
        %v4471 = vsel %vm4467, %v4454, %v4394
        %v4472 = vsel %vm4467, %v4455, %v4395
        %v4473 = vsel %vm4467, %v4456, %v4396
        %v4474 = vsel %vm4467, %v4457, %v4397
        %v4475 = vsel %vm4467, %v4458, %v4398
        %v4476 = vsel %vm4467, %v4459, %v4399
        %v4477 = vsel %vm4467, %v4460, %v4400
        %v4478 = vsel %vm4467, %v4461, %v4401
        %v4479 = vsel %vm4467, %v4462, %v4402
        %v4480 = vsel %vm4467, %v4463, %v4403
        %v4481 = vsel %vm4467, %v4464, %v4404
        %v4482 = vsel %vm4467, %v4465, %v4405
        %v4483 = vsel %vm4467, %v4466, %v4406
        %vm4484 = vcmask 1042432
        %v4485 = vsel %vm4484, %v4468, %v4434
        %v4486 = vsel %vm4484, %v4469, %v4435
        %v4487 = vsel %vm4484, %v4470, %v4436
        %v4488 = vsel %vm4484, %v4471, %v4437
        %v4489 = vsel %vm4484, %v4472, %v4438
        %v4490 = vsel %vm4484, %v4473, %v4439
        %v4491 = vsel %vm4484, %v4474, %v4440
        %v4492 = vsel %vm4484, %v4475, %v4441
        %v4493 = vsel %vm4484, %v4476, %v4442
        %v4494 = vsel %vm4484, %v4477, %v4443
        %v4495 = vsel %vm4484, %v4478, %v4444
        %v4496 = vsel %vm4484, %v4479, %v4445
        %v4497 = vsel %vm4484, %v4480, %v4446
        %v4498 = vsel %vm4484, %v4481, %v4447
        %v4499 = vsel %vm4484, %v4482, %v4448
        %v4500 = vsel %vm4484, %v4483, %v4449
        %v4501 = vld [vmem:[%s10] sm:$0xf]
        %4503 = vset.pattern.permute.xlu0 0
        %4504 = vperm.xlu0 %4503, %v4501
        %v4505 = vpop.permute.xlu0 %4504
        %v4507 = vadd.f32 %v4485, %v4505
        %v4508 = vadd.f32 %v4486, %v4505
        %v4509 = vadd.f32 %v4487, %v4505
        %v4510 = vadd.f32 %v4488, %v4505
        %v4511 = vadd.f32 %v4489, %v4505
        %v4512 = vadd.f32 %v4490, %v4505
        %v4513 = vadd.f32 %v4491, %v4505
        %v4514 = vadd.f32 %v4492, %v4505
        %v4515 = vadd.f32 %v4493, %v4505
        %v4516 = vadd.f32 %v4494, %v4505
        %v4517 = vadd.f32 %v4495, %v4505
        %v4518 = vadd.f32 %v4496, %v4505
        %v4519 = vadd.f32 %v4497, %v4505
        %v4520 = vadd.f32 %v4498, %v4505
        %v4521 = vadd.f32 %v4499, %v4505
        %v4522 = vadd.f32 %v4500, %v4505
        %v4523 = vld [vmem:[%s12] sm:$0xf]
        %4525 = vset.pattern.permute.xlu0 0
        %4526 = vperm.xlu0 %4525, %v4523
        %v4527 = vpop.permute.xlu0 %4526
        %v4529 = vadd.f32 %v4527, 0.0
        %v4530 = vld [vmem:[%s11] sm:$0xf]
        %4532 = vset.pattern.permute.xlu0 0
        %4533 = vperm.xlu0 %4532, %v4530
        %v4534 = vpop.permute.xlu0 %4533
        %v4536 = vlaneseq
        %v4537 = vshrl.u32 %v4536, 7
        %v4538 = vsub.s32 0, %v4537
        %v4539 = vrot.slane %v4507, %v4538
        %v4540 = vlaneseq
        %v4541 = vshrl.u32 %v4540, 7
        %v4542 = vsub.s32 0, %v4541
        %v4543 = vrot.slane %v4508, %v4542
        %v4544 = vlaneseq
        %v4545 = vshrl.u32 %v4544, 7
        %v4546 = vsub.s32 0, %v4545
        %v4547 = vrot.slane %v4509, %v4546
        %v4548 = vlaneseq
        %v4549 = vshrl.u32 %v4548, 7
        %v4550 = vsub.s32 0, %v4549
        %v4551 = vrot.slane %v4510, %v4550
        %v4552 = vlaneseq
        %v4553 = vshrl.u32 %v4552, 7
        %v4554 = vsub.s32 0, %v4553
        %v4555 = vrot.slane %v4511, %v4554
        %v4556 = vlaneseq
        %v4557 = vshrl.u32 %v4556, 7
        %v4558 = vsub.s32 0, %v4557
        %v4559 = vrot.slane %v4512, %v4558
        %v4560 = vlaneseq
        %v4561 = vshrl.u32 %v4560, 7
        %v4562 = vsub.s32 0, %v4561
        %v4563 = vrot.slane %v4513, %v4562
        %v4564 = vlaneseq
        %v4565 = vshrl.u32 %v4564, 7
        %v4566 = vsub.s32 0, %v4565
        %v4567 = vrot.slane %v4514, %v4566
        %v4568 = vlaneseq
        %v4569 = vshrl.u32 %v4568, 7
        %v4570 = vsub.s32 0, %v4569
        %v4571 = vrot.slane %v4515, %v4570
        %v4572 = vlaneseq
        %v4573 = vshrl.u32 %v4572, 7
        %v4574 = vsub.s32 0, %v4573
        %v4575 = vrot.slane %v4516, %v4574
        %v4576 = vlaneseq
        %v4577 = vshrl.u32 %v4576, 7
        %v4578 = vsub.s32 0, %v4577
        %v4579 = vrot.slane %v4517, %v4578
        %v4580 = vlaneseq
        %v4581 = vshrl.u32 %v4580, 7
        %v4582 = vsub.s32 0, %v4581
        %v4583 = vrot.slane %v4518, %v4582
        %v4584 = vlaneseq
        %v4585 = vshrl.u32 %v4584, 7
        %v4586 = vsub.s32 0, %v4585
        %v4587 = vrot.slane %v4519, %v4586
        %v4588 = vlaneseq
        %v4589 = vshrl.u32 %v4588, 7
        %v4590 = vsub.s32 0, %v4589
        %v4591 = vrot.slane %v4520, %v4590
        %v4592 = vlaneseq
        %v4593 = vshrl.u32 %v4592, 7
        %v4594 = vsub.s32 0, %v4593
        %v4595 = vrot.slane %v4521, %v4594
        %v4596 = vlaneseq
        %v4597 = vshrl.u32 %v4596, 7
        %v4598 = vsub.s32 0, %v4597
        %v4599 = vrot.slane %v4522, %v4598
        %v4600 = vmul.f32 %v4534, %v4539
        %v4601 = vmul.f32 %v4534, %v4543
        %v4602 = vmul.f32 %v4534, %v4547
        %v4603 = vmul.f32 %v4534, %v4551
        %v4604 = vmul.f32 %v4534, %v4555
        %v4605 = vmul.f32 %v4534, %v4559
        %v4606 = vmul.f32 %v4534, %v4563
        %v4607 = vmul.f32 %v4534, %v4567
        %v4608 = vmul.f32 %v4534, %v4571
        %v4609 = vmul.f32 %v4534, %v4575
        %v4610 = vmul.f32 %v4534, %v4579
        %v4611 = vmul.f32 %v4534, %v4583
        %v4612 = vmul.f32 %v4534, %v4587
        %v4613 = vmul.f32 %v4534, %v4591
        %v4614 = vmul.f32 %v4534, %v4595
        %v4615 = vmul.f32 %v4534, %v4599
        %v4616 = vadd.f32 %v4529, %v4600
        %v4617 = vadd.f32 %v4529, %v4601
        %v4618 = vadd.f32 %v4529, %v4602
        %v4619 = vadd.f32 %v4529, %v4603
        %v4620 = vadd.f32 %v4529, %v4604
        %v4621 = vadd.f32 %v4529, %v4605
        %v4622 = vadd.f32 %v4529, %v4606
        %v4623 = vadd.f32 %v4529, %v4607
        %v4624 = vadd.f32 %v4529, %v4608
        %v4625 = vadd.f32 %v4529, %v4609
        %v4626 = vadd.f32 %v4529, %v4610
        %v4627 = vadd.f32 %v4529, %v4611
        %v4628 = vadd.f32 %v4529, %v4612
        %v4629 = vadd.f32 %v4529, %v4613
        %v4630 = vadd.f32 %v4529, %v4614
        %v4631 = vadd.f32 %v4529, %v4615
        %s4632 = scalar_lea.vmem %s11, 4
        %v4633 = vld [vmem:[%s4632] sm:$0xf]
        %4635 = vset.pattern.permute.xlu0 0
        %4636 = vperm.xlu0 %4635, %v4633
        %v4637 = vpop.permute.xlu0 %4636
        %v4639 = vlaneseq
        %v4640 = vshrl.u32 %v4639, 7
        %v4641 = vsub.s32 1, %v4640
        %v4642 = vrot.slane %v4507, %v4641
        %v4643 = vlaneseq
        %v4644 = vshrl.u32 %v4643, 7
        %v4645 = vsub.s32 1, %v4644
        %v4646 = vrot.slane %v4508, %v4645
        %v4647 = vlaneseq
        %v4648 = vshrl.u32 %v4647, 7
        %v4649 = vsub.s32 1, %v4648
        %v4650 = vrot.slane %v4509, %v4649
        %v4651 = vlaneseq
        %v4652 = vshrl.u32 %v4651, 7
        %v4653 = vsub.s32 1, %v4652
        %v4654 = vrot.slane %v4510, %v4653
        %v4655 = vlaneseq
        %v4656 = vshrl.u32 %v4655, 7
        %v4657 = vsub.s32 1, %v4656
        %v4658 = vrot.slane %v4511, %v4657
        %v4659 = vlaneseq
        %v4660 = vshrl.u32 %v4659, 7
        %v4661 = vsub.s32 1, %v4660
        %v4662 = vrot.slane %v4512, %v4661
        %v4663 = vlaneseq
        %v4664 = vshrl.u32 %v4663, 7
        %v4665 = vsub.s32 1, %v4664
        %v4666 = vrot.slane %v4513, %v4665
        %v4667 = vlaneseq
        %v4668 = vshrl.u32 %v4667, 7
        %v4669 = vsub.s32 1, %v4668
        %v4670 = vrot.slane %v4514, %v4669
        %v4671 = vlaneseq
        %v4672 = vshrl.u32 %v4671, 7
        %v4673 = vsub.s32 1, %v4672
        %v4674 = vrot.slane %v4515, %v4673
        %v4675 = vlaneseq
        %v4676 = vshrl.u32 %v4675, 7
        %v4677 = vsub.s32 1, %v4676
        %v4678 = vrot.slane %v4516, %v4677
        %v4679 = vlaneseq
        %v4680 = vshrl.u32 %v4679, 7
        %v4681 = vsub.s32 1, %v4680
        %v4682 = vrot.slane %v4517, %v4681
        %v4683 = vlaneseq
        %v4684 = vshrl.u32 %v4683, 7
        %v4685 = vsub.s32 1, %v4684
        %v4686 = vrot.slane %v4518, %v4685
        %v4687 = vlaneseq
        %v4688 = vshrl.u32 %v4687, 7
        %v4689 = vsub.s32 1, %v4688
        %v4690 = vrot.slane %v4519, %v4689
        %v4691 = vlaneseq
        %v4692 = vshrl.u32 %v4691, 7
        %v4693 = vsub.s32 1, %v4692
        %v4694 = vrot.slane %v4520, %v4693
        %v4695 = vlaneseq
        %v4696 = vshrl.u32 %v4695, 7
        %v4697 = vsub.s32 1, %v4696
        %v4698 = vrot.slane %v4521, %v4697
        %v4699 = vlaneseq
        %v4700 = vshrl.u32 %v4699, 7
        %v4701 = vsub.s32 1, %v4700
        %v4702 = vrot.slane %v4522, %v4701
        %v4703 = vmul.f32 %v4637, %v4642
        %v4704 = vmul.f32 %v4637, %v4646
        %v4705 = vmul.f32 %v4637, %v4650
        %v4706 = vmul.f32 %v4637, %v4654
        %v4707 = vmul.f32 %v4637, %v4658
        %v4708 = vmul.f32 %v4637, %v4662
        %v4709 = vmul.f32 %v4637, %v4666
        %v4710 = vmul.f32 %v4637, %v4670
        %v4711 = vmul.f32 %v4637, %v4674
        %v4712 = vmul.f32 %v4637, %v4678
        %v4713 = vmul.f32 %v4637, %v4682
        %v4714 = vmul.f32 %v4637, %v4686
        %v4715 = vmul.f32 %v4637, %v4690
        %v4716 = vmul.f32 %v4637, %v4694
        %v4717 = vmul.f32 %v4637, %v4698
        %v4718 = vmul.f32 %v4637, %v4702
        %v4719 = vadd.f32 %v4616, %v4703
        %v4720 = vadd.f32 %v4617, %v4704
        %v4721 = vadd.f32 %v4618, %v4705
        %v4722 = vadd.f32 %v4619, %v4706
        %v4723 = vadd.f32 %v4620, %v4707
        %v4724 = vadd.f32 %v4621, %v4708
        %v4725 = vadd.f32 %v4622, %v4709
        %v4726 = vadd.f32 %v4623, %v4710
        %v4727 = vadd.f32 %v4624, %v4711
        %v4728 = vadd.f32 %v4625, %v4712
        %v4729 = vadd.f32 %v4626, %v4713
        %v4730 = vadd.f32 %v4627, %v4714
        %v4731 = vadd.f32 %v4628, %v4715
        %v4732 = vadd.f32 %v4629, %v4716
        %v4733 = vadd.f32 %v4630, %v4717
        %v4734 = vadd.f32 %v4631, %v4718
        %s4735 = scalar_lea.vmem %s11, 8
        %v4736 = vld [vmem:[%s4735] sm:$0xf]
        %4738 = vset.pattern.permute.xlu0 0
        %4739 = vperm.xlu0 %4738, %v4736
        %v4740 = vpop.permute.xlu0 %4739
        %v4742 = vlaneseq
        %v4743 = vshrl.u32 %v4742, 7
        %v4744 = vsub.s32 2, %v4743
        %v4745 = vrot.slane %v4507, %v4744
        %v4746 = vlaneseq
        %v4747 = vshrl.u32 %v4746, 7
        %v4748 = vsub.s32 2, %v4747
        %v4749 = vrot.slane %v4508, %v4748
        %v4750 = vlaneseq
        %v4751 = vshrl.u32 %v4750, 7
        %v4752 = vsub.s32 2, %v4751
        %v4753 = vrot.slane %v4509, %v4752
        %v4754 = vlaneseq
        %v4755 = vshrl.u32 %v4754, 7
        %v4756 = vsub.s32 2, %v4755
        %v4757 = vrot.slane %v4510, %v4756
        %v4758 = vlaneseq
        %v4759 = vshrl.u32 %v4758, 7
        %v4760 = vsub.s32 2, %v4759
        %v4761 = vrot.slane %v4511, %v4760
        %v4762 = vlaneseq
        %v4763 = vshrl.u32 %v4762, 7
        %v4764 = vsub.s32 2, %v4763
        %v4765 = vrot.slane %v4512, %v4764
        %v4766 = vlaneseq
        %v4767 = vshrl.u32 %v4766, 7
        %v4768 = vsub.s32 2, %v4767
        %v4769 = vrot.slane %v4513, %v4768
        %v4770 = vlaneseq
        %v4771 = vshrl.u32 %v4770, 7
        %v4772 = vsub.s32 2, %v4771
        %v4773 = vrot.slane %v4514, %v4772
        %v4774 = vlaneseq
        %v4775 = vshrl.u32 %v4774, 7
        %v4776 = vsub.s32 2, %v4775
        %v4777 = vrot.slane %v4515, %v4776
        %v4778 = vlaneseq
        %v4779 = vshrl.u32 %v4778, 7
        %v4780 = vsub.s32 2, %v4779
        %v4781 = vrot.slane %v4516, %v4780
        %v4782 = vlaneseq
        %v4783 = vshrl.u32 %v4782, 7
        %v4784 = vsub.s32 2, %v4783
        %v4785 = vrot.slane %v4517, %v4784
        %v4786 = vlaneseq
        %v4787 = vshrl.u32 %v4786, 7
        %v4788 = vsub.s32 2, %v4787
        %v4789 = vrot.slane %v4518, %v4788
        %v4790 = vlaneseq
        %v4791 = vshrl.u32 %v4790, 7
        %v4792 = vsub.s32 2, %v4791
        %v4793 = vrot.slane %v4519, %v4792
        %v4794 = vlaneseq
        %v4795 = vshrl.u32 %v4794, 7
        %v4796 = vsub.s32 2, %v4795
        %v4797 = vrot.slane %v4520, %v4796
        %v4798 = vlaneseq
        %v4799 = vshrl.u32 %v4798, 7
        %v4800 = vsub.s32 2, %v4799
        %v4801 = vrot.slane %v4521, %v4800
        %v4802 = vlaneseq
        %v4803 = vshrl.u32 %v4802, 7
        %v4804 = vsub.s32 2, %v4803
        %v4805 = vrot.slane %v4522, %v4804
        %v4806 = vmul.f32 %v4740, %v4745
        %v4807 = vmul.f32 %v4740, %v4749
        %v4808 = vmul.f32 %v4740, %v4753
        %v4809 = vmul.f32 %v4740, %v4757
        %v4810 = vmul.f32 %v4740, %v4761
        %v4811 = vmul.f32 %v4740, %v4765
        %v4812 = vmul.f32 %v4740, %v4769
        %v4813 = vmul.f32 %v4740, %v4773
        %v4814 = vmul.f32 %v4740, %v4777
        %v4815 = vmul.f32 %v4740, %v4781
        %v4816 = vmul.f32 %v4740, %v4785
        %v4817 = vmul.f32 %v4740, %v4789
        %v4818 = vmul.f32 %v4740, %v4793
        %v4819 = vmul.f32 %v4740, %v4797
        %v4820 = vmul.f32 %v4740, %v4801
        %v4821 = vmul.f32 %v4740, %v4805
        %v4822 = vadd.f32 %v4719, %v4806
        %v4823 = vadd.f32 %v4720, %v4807
        %v4824 = vadd.f32 %v4721, %v4808
        %v4825 = vadd.f32 %v4722, %v4809
        %v4826 = vadd.f32 %v4723, %v4810
        %v4827 = vadd.f32 %v4724, %v4811
        %v4828 = vadd.f32 %v4725, %v4812
        %v4829 = vadd.f32 %v4726, %v4813
        %v4830 = vadd.f32 %v4727, %v4814
        %v4831 = vadd.f32 %v4728, %v4815
        %v4832 = vadd.f32 %v4729, %v4816
        %v4833 = vadd.f32 %v4730, %v4817
        %v4834 = vadd.f32 %v4731, %v4818
        %v4835 = vadd.f32 %v4732, %v4819
        %v4836 = vadd.f32 %v4733, %v4820
        %v4837 = vadd.f32 %v4734, %v4821
        %s4838 = scalar_lea.vmem %s11, 12
        %v4839 = vld [vmem:[%s4838] sm:$0xf]
        %4841 = vset.pattern.permute.xlu0 0
        %4842 = vperm.xlu0 %4841, %v4839
        %v4843 = vpop.permute.xlu0 %4842
        %v4845 = vlaneseq
        %v4846 = vshrl.u32 %v4845, 7
        %v4847 = vsub.s32 3, %v4846
        %v4848 = vrot.slane %v4507, %v4847
        %v4849 = vlaneseq
        %v4850 = vshrl.u32 %v4849, 7
        %v4851 = vsub.s32 3, %v4850
        %v4852 = vrot.slane %v4508, %v4851
        %v4853 = vlaneseq
        %v4854 = vshrl.u32 %v4853, 7
        %v4855 = vsub.s32 3, %v4854
        %v4856 = vrot.slane %v4509, %v4855
        %v4857 = vlaneseq
        %v4858 = vshrl.u32 %v4857, 7
        %v4859 = vsub.s32 3, %v4858
        %v4860 = vrot.slane %v4510, %v4859
        %v4861 = vlaneseq
        %v4862 = vshrl.u32 %v4861, 7
        %v4863 = vsub.s32 3, %v4862
        %v4864 = vrot.slane %v4511, %v4863
        %v4865 = vlaneseq
        %v4866 = vshrl.u32 %v4865, 7
        %v4867 = vsub.s32 3, %v4866
        %v4868 = vrot.slane %v4512, %v4867
        %v4869 = vlaneseq
        %v4870 = vshrl.u32 %v4869, 7
        %v4871 = vsub.s32 3, %v4870
        %v4872 = vrot.slane %v4513, %v4871
        %v4873 = vlaneseq
        %v4874 = vshrl.u32 %v4873, 7
        %v4875 = vsub.s32 3, %v4874
        %v4876 = vrot.slane %v4514, %v4875
        %v4877 = vlaneseq
        %v4878 = vshrl.u32 %v4877, 7
        %v4879 = vsub.s32 3, %v4878
        %v4880 = vrot.slane %v4515, %v4879
        %v4881 = vlaneseq
        %v4882 = vshrl.u32 %v4881, 7
        %v4883 = vsub.s32 3, %v4882
        %v4884 = vrot.slane %v4516, %v4883
        %v4885 = vlaneseq
        %v4886 = vshrl.u32 %v4885, 7
        %v4887 = vsub.s32 3, %v4886
        %v4888 = vrot.slane %v4517, %v4887
        %v4889 = vlaneseq
        %v4890 = vshrl.u32 %v4889, 7
        %v4891 = vsub.s32 3, %v4890
        %v4892 = vrot.slane %v4518, %v4891
        %v4893 = vlaneseq
        %v4894 = vshrl.u32 %v4893, 7
        %v4895 = vsub.s32 3, %v4894
        %v4896 = vrot.slane %v4519, %v4895
        %v4897 = vlaneseq
        %v4898 = vshrl.u32 %v4897, 7
        %v4899 = vsub.s32 3, %v4898
        %v4900 = vrot.slane %v4520, %v4899
        %v4901 = vlaneseq
        %v4902 = vshrl.u32 %v4901, 7
        %v4903 = vsub.s32 3, %v4902
        %v4904 = vrot.slane %v4521, %v4903
        %v4905 = vlaneseq
        %v4906 = vshrl.u32 %v4905, 7
        %v4907 = vsub.s32 3, %v4906
        %v4908 = vrot.slane %v4522, %v4907
        %v4909 = vmul.f32 %v4843, %v4848
        %v4910 = vmul.f32 %v4843, %v4852
        %v4911 = vmul.f32 %v4843, %v4856
        %v4912 = vmul.f32 %v4843, %v4860
        %v4913 = vmul.f32 %v4843, %v4864
        %v4914 = vmul.f32 %v4843, %v4868
        %v4915 = vmul.f32 %v4843, %v4872
        %v4916 = vmul.f32 %v4843, %v4876
        %v4917 = vmul.f32 %v4843, %v4880
        %v4918 = vmul.f32 %v4843, %v4884
        %v4919 = vmul.f32 %v4843, %v4888
        %v4920 = vmul.f32 %v4843, %v4892
        %v4921 = vmul.f32 %v4843, %v4896
        %v4922 = vmul.f32 %v4843, %v4900
        %v4923 = vmul.f32 %v4843, %v4904
        %v4924 = vmul.f32 %v4843, %v4908
        %v4925 = vadd.f32 %v4822, %v4909
        %v4926 = vadd.f32 %v4823, %v4910
        %v4927 = vadd.f32 %v4824, %v4911
        %v4928 = vadd.f32 %v4825, %v4912
        %v4929 = vadd.f32 %v4826, %v4913
        %v4930 = vadd.f32 %v4827, %v4914
        %v4931 = vadd.f32 %v4828, %v4915
        %v4932 = vadd.f32 %v4829, %v4916
        %v4933 = vadd.f32 %v4830, %v4917
        %v4934 = vadd.f32 %v4831, %v4918
        %v4935 = vadd.f32 %v4832, %v4919
        %v4936 = vadd.f32 %v4833, %v4920
        %v4937 = vadd.f32 %v4834, %v4921
        %v4938 = vadd.f32 %v4835, %v4922
        %v4939 = vadd.f32 %v4836, %v4923
        %v4940 = vadd.f32 %v4837, %v4924
        %v4941 = vld [vmem:[%s13] sm:$0xf]
        %4943 = vset.pattern.permute.xlu0 0
        %4944 = vperm.xlu0 %4943, %v4941
        %v4945 = vpop.permute.xlu0 %4944
        %v4947 = vmul.f32 %v4925, %v4945
        %v4948 = vmul.f32 %v4926, %v4945
        %v4949 = vmul.f32 %v4927, %v4945
        %v4950 = vmul.f32 %v4928, %v4945
        %v4951 = vmul.f32 %v4929, %v4945
        %v4952 = vmul.f32 %v4930, %v4945
        %v4953 = vmul.f32 %v4931, %v4945
        %v4954 = vmul.f32 %v4932, %v4945
        %v4955 = vmul.f32 %v4933, %v4945
        %v4956 = vmul.f32 %v4934, %v4945
        %v4957 = vmul.f32 %v4935, %v4945
        %v4958 = vmul.f32 %v4936, %v4945
        %v4959 = vmul.f32 %v4937, %v4945
        %v4960 = vmul.f32 %v4938, %v4945
        %v4961 = vmul.f32 %v4939, %v4945
        %v4962 = vmul.f32 %v4940, %v4945
        %v4963 = vadd.f32 %v631, %v4947
        %v4964 = vadd.f32 %v632, %v4948
        %v4965 = vadd.f32 %v633, %v4949
        %v4966 = vadd.f32 %v634, %v4950
        %v4967 = vadd.f32 %v635, %v4951
        %v4968 = vadd.f32 %v636, %v4952
        %v4969 = vadd.f32 %v637, %v4953
        %v4970 = vadd.f32 %v638, %v4954
        %v4971 = vadd.f32 %v639, %v4955
        %v4972 = vadd.f32 %v640, %v4956
        %v4973 = vadd.f32 %v641, %v4957
        %v4974 = vadd.f32 %v642, %v4958
        %v4975 = vadd.f32 %v643, %v4959
        %v4976 = vadd.f32 %v644, %v4960
        %v4977 = vadd.f32 %v645, %v4961
        %v4978 = vadd.f32 %v646, %v4962
        %vm4979 = vcmask 125952
        %4980 = vst.msk [vmem:[%s605] sm:$0xf] %vm4979, %v4963
        %4981 = vst.msk [vmem:[%s605 + $0x4] sm:$0xf] %vm4979, %v4964
        %4982 = vst.msk [vmem:[%s605 + $0x8] sm:$0xf] %vm4979, %v4965
        %4983 = vst.msk [vmem:[%s605 + $0xc] sm:$0xf] %vm4979, %v4966
        %4984 = vst.msk [vmem:[%s605 + $0x10] sm:$0xf] %vm4979, %v4967
        %4985 = vst.msk [vmem:[%s605 + $0x14] sm:$0xf] %vm4979, %v4968
        %4986 = vst.msk [vmem:[%s605 + $0x18] sm:$0xf] %vm4979, %v4969
        %4987 = vst.msk [vmem:[%s605 + $0x1c] sm:$0xf] %vm4979, %v4970
        %4988 = vst.msk [vmem:[%s605 + $0x20] sm:$0xf] %vm4979, %v4971
        %4989 = vst.msk [vmem:[%s605 + $0x24] sm:$0xf] %vm4979, %v4972
        %4990 = vst.msk [vmem:[%s605 + $0x28] sm:$0xf] %vm4979, %v4973
        %4991 = vst.msk [vmem:[%s605 + $0x2c] sm:$0xf] %vm4979, %v4974
        %4992 = vst.msk [vmem:[%s605 + $0x30] sm:$0xf] %vm4979, %v4975
        %4993 = vst.msk [vmem:[%s605 + $0x34] sm:$0xf] %vm4979, %v4976
        %4994 = vst.msk [vmem:[%s605 + $0x38] sm:$0xf] %vm4979, %v4977
        %4995 = vst.msk [vmem:[%s605 + $0x3c] sm:$0xf] %vm4979, %v4978
        %s4996 = sand.u32 %s387, 1
        %s4997 = scalar_lea.sflag [#allocation4], %s4996
        %s4998 = sand.u32 %s387, 1
        %s4999 = smul.addr %s4998, 64
        %s5000 = scalar_lea.vmem [#allocation7], %s4999
        // Predicated region
        $region85: #{tpu_custom_call.1} parent=75 // pred_check
          %p5001 = pneg %p397
        $region86: #{tpu_custom_call.1} parent=75 // pred_check_branch
          %5003 = sbr.rel (%p5001) target = $region88
        $region87: #{tpu_custom_call.1} parent=75 // pred_region
          %s5004 = smul.u32 16, %s39
          %s5006 = ssub.s32 1024, 1024
          %5007 = vsyncadd %s4997, %s5006
          %s5008 = smul.addr %s38, 16
          %s5009 = sadd.s32 %s5004, %s5008
          %s5010 = smul.addr %s5009, 64
          %s5011 = scalar_lea.hbm %s14, %s5010
          %s5012 = sshll.u32 %s5000, 4
          %s5013 = int_to_ptr.vmem [resolvable:$true] %s5012
          %5018 = dma.vmem_to_hbm [thread:$0]  %s5013, 1024, %s5011, %s4997, 64, 64, 4
        $region88: #{tpu_custom_call.1} parent=75 // pred_fallthru
          _
      $region76: #{tpu_custom_call.1} parent=5 // pred_fallthru
        _
      %p5019 = scmp.le.s32.totalorder 2, %s29
      // Predicated region
      $region89: #{tpu_custom_call.1} parent=5 // pred_check
        %p5020 = pneg %p5019
      $region90: #{tpu_custom_call.1} parent=5 // pred_check_branch
        %5022 = sbr.rel (%p5020) target = $region92
      $region91: #{tpu_custom_call.1} parent=5 // pred_region
        %s5023 = ssub.s32 %s29, 2
        // Predicated region
        $region93: #{tpu_custom_call.1} parent=91 // pred_check
          %p5024 = pneg %p403
        $region94: #{tpu_custom_call.1} parent=91 // pred_check_branch
          %5026 = sbr.rel (%p5024) target = $region96
        $region95: #{tpu_custom_call.1} parent=91 // pred_region
          %s5027 = sand.u32 %s388, 1
          %s5028 = scalar_lea.sflag [#allocation4], %s5027
          %s5029 = sand.u32 %s388, 1
          %s5030 = smul.addr %s5029, 64
          %s5031 = scalar_lea.vmem [#allocation7], %s5030
          %5032 = dma.done %s5028, 1024
        $region96: #{tpu_custom_call.1} parent=91 // pred_fallthru
          _
      $region92: #{tpu_custom_call.1} parent=5 // pred_fallthru
        _
    $region6: #{tpu_custom_call.1} parent=1 // loop_footer
      %s33 = sadd.s32 1, %s29
    $region7: #{tpu_custom_call.1} parent=1 // loop_footer_branch
      %28 = sbr.rel target = $region3
    $region8: #{tpu_custom_call.1} parent=1 // loop_exit
      _
    %5033 = vsyncpa [#allocation3], 1
    %s5034 = scalar_lea.sflag [#allocation3], 1
    %5035 = vsyncpa %s5034, 1
    %5036 = vsyncpa [#allocation6], 1
    %s5037 = scalar_lea.sflag [#allocation6], 1
    %5038 = vsyncpa %s5037, 1
    %5039 = vsyncpa [#allocation4], 1
    %s5040 = scalar_lea.sflag [#allocation4], 1
    %5041 = vsyncpa %s5040, 1

</llo_original>
